<compile_context>
chip_gen: v6e
topology: v6e:2x2x1
jax: 0.10.0
libtpu: 0.0.40
codegen_flags: <defaults>
</compile_context>

<pallas_src>
import functools

import jax
import jax.numpy as jnp
from jax.experimental import pallas as pl
from jax.experimental.pallas import tpu as pltpu


def _ceil_to(v, m):
    return -(-v // m) * m


# ----------------------- Pallas GEMM kernel (bias + ReLU fused) -----------------------

def _mm_bias_kernel(a_ref, b_ref, bias_ref, o_ref, acc_ref, *, apply_relu):
    k = pl.program_id(2)

    @pl.when(k == 0)
    def _init():
        acc_ref[...] = jnp.zeros_like(acc_ref)

    acc_ref[...] += jnp.dot(a_ref[...], b_ref[...],
                            preferred_element_type=jnp.float32)

    @pl.when(k == pl.num_programs(2) - 1)
    def _finish():
        out = acc_ref[...] + bias_ref[...]
        if apply_relu:
            out = jnp.maximum(out, 0.0)
        o_ref[...] = out.astype(o_ref.dtype)


def pallas_matmul_bias(a, b, bias, relu=False, out_dtype=jnp.float32):
    """(M,K) @ (K,N) + bias[N]; optional fused ReLU.  MXU in bf16, f32 accumulate."""
    M, K = a.shape
    K2, N = b.shape
    assert K == K2

    # M tiles up to 512 rows (sublane-aligned).
    Mp = _ceil_to(M, 8)
    TM = min(512, Mp)
    Mp = _ceil_to(Mp, TM)

    # Skinny N (Cout = 3/4/8/12/32): keep the full-extent lane block, no 128-pad.
    if N >= 128:
        Np = _ceil_to(N, 128)
        TN = min(256, Np)
        Np = _ceil_to(Np, TN)
    else:
        TN, Np = N, N

    # Small K: single un-padded reduction step (full-extent K block).
    if K <= 512:
        TK, Kp = K, K
    else:
        Kp = _ceil_to(K, 128)
        TK = 512
        Kp = _ceil_to(Kp, TK)

    ap = a.astype(jnp.bfloat16)
    bp = b.astype(jnp.bfloat16)
    if (Mp, Kp) != (M, K):
        ap = jnp.pad(ap, ((0, Mp - M), (0, Kp - K)))
    if (Kp, Np) != (K, N):
        bp = jnp.pad(bp, ((0, Kp - K), (0, Np - N)))
    biasp = bias.astype(jnp.float32)
    if Np != N:
        biasp = jnp.pad(biasp, ((0, Np - N),))
    biasp = biasp.reshape(1, Np)

    grid = (Mp // TM, Np // TN, Kp // TK)
    cost = pl.CostEstimate(
        flops=2 * Mp * Np * Kp,
        transcendentals=0,
        bytes_accessed=(Mp * Kp + Kp * Np) * 2 + Mp * Np * 4 + Np * 4,
    )
    out = pl.pallas_call(
        functools.partial(_mm_bias_kernel, apply_relu=relu),
        out_shape=jax.ShapeDtypeStruct((Mp, Np), out_dtype),
        grid=grid,
        in_specs=[
            pl.BlockSpec((TM, TK), lambda i, j, k: (i, k)),   # A
            pl.BlockSpec((TK, TN), lambda i, j, k: (k, j)),   # B
            pl.BlockSpec((1, TN), lambda i, j, k: (0, j)),    # bias
        ],
        out_specs=pl.BlockSpec((TM, TN), lambda i, j, k: (i, j)),
        scratch_shapes=[pltpu.VMEM((TM, TN), jnp.float32)],
        compiler_params=pltpu.CompilerParams(
            dimension_semantics=("parallel", "parallel", "arbitrary"),
            vmem_limit_bytes=32 * 1024 * 1024),
        cost_estimate=cost,
    )(ap, bp, biasp)
    if (Mp, Np) != (M, N):
        out = out[:M, :N]
    return out


# -------------- Pallas fused 1x1-context-conv + mixture bit-cost kernel --------------

def _ctx_bitcost_kernel(y_ref, w_ref, b_ref, out_ref, *,
                        gmm_K, tr, cb, n_valid_rows, need_mask):
    i = pl.program_id(0)
    y = y_ref[...].astype(jnp.float32)                       # (TR, Cb)

    def head(j):
        # 1x1 conv head j: (TR, Cb) @ (Cb, Cb) + (1, Cb)
        return jnp.dot(y, w_ref[j], preferred_element_type=jnp.float32) + b_ref[j]

    logits = [head(k) for k in range(gmm_K)]
    mus = [head(gmm_K + k) for k in range(gmm_K)]
    rss = [head(2 * gmm_K + k) for k in range(gmm_K)]

    m = logits[0]
    for k in range(1, gmm_K):
        m = jnp.maximum(m, logits[k])

    num = jnp.zeros_like(y)
    den = jnp.zeros_like(y)
    for k in range(gmm_K):                                    # short static unroll
        e = jnp.exp(logits[k] - m)
        rs = rss[k]
        # numerically stable softplus, exact reciprocal (sigma can be ~1e-6)
        sig = jnp.where(rs > 20.0, rs,
                        jnp.log(1.0 + jnp.exp(jnp.minimum(rs, 20.0)))) + 1e-6
        inv_s = 1.0 / sig
        # logistic CDF via a single EUP tanh: sigmoid(z) = 0.5 + 0.5*tanh(z/2)
        up = 0.5 + 0.5 * jnp.tanh(0.5 * ((y + 0.5 - mus[k]) * inv_s))
        lo = 0.5 + 0.5 * jnp.tanh(0.5 * ((y - 0.5 - mus[k]) * inv_s))
        num = num + e * (up - lo)
        den = den + e

    p = jnp.clip(num / den, 1e-9, 1.0)                        # one divide / element
    bits = -jnp.log(p) * (1.0 / jnp.log(2.0))
    if need_mask:
        rows = jax.lax.broadcasted_iota(jnp.int32, (tr, cb), 0) + i * tr
        bits = jnp.where(rows < n_valid_rows, bits, 0.0)
    out_ref[i] = jnp.sum(bits)                                # per-tile partial (SMEM)


def pallas_context_bitcost(y_nhwc, ctx_w, ctx_b, gmm_K):
    """y_nhwc: (N,Hy,Wy,Cb); ctx_w: (Cb, 3*K*Cb); ctx_b: (3*K*Cb,). Returns scalar bits."""
    N, Hy, Wy, Cb = y_nhwc.shape
    rows = N * Hy * Wy
    y2 = y_nhwc.reshape(rows, Cb).astype(jnp.float32)

    TR = min(512, _ceil_to(rows, 8))
    rows_p = _ceil_to(_ceil_to(rows, 8), TR)
    need_mask = rows_p != rows
    if need_mask:
        y2 = jnp.pad(y2, ((0, rows_p - rows), (0, 0)))

    # (Cb, 3*K*Cb) 1x1-conv matrix -> per-head (3K, Cb, Cb) weights / (3K, 1, Cb) bias.
    w3 = ctx_w.astype(jnp.float32).reshape(Cb, 3 * gmm_K, Cb).transpose(1, 0, 2)
    b3 = ctx_b.astype(jnp.float32).reshape(3 * gmm_K, 1, Cb)

    n_tiles = rows_p // TR
    partials = pl.pallas_call(
        functools.partial(_ctx_bitcost_kernel, gmm_K=gmm_K, tr=TR, cb=Cb,
                          n_valid_rows=rows, need_mask=need_mask),
        out_shape=jax.ShapeDtypeStruct((n_tiles,), jnp.float32),
        grid=(n_tiles,),
        in_specs=[
            pl.BlockSpec((TR, Cb), lambda i: (i, 0)),
            pl.BlockSpec((3 * gmm_K, Cb, Cb), lambda i: (0, 0, 0)),
            pl.BlockSpec((3 * gmm_K, 1, Cb), lambda i: (0, 0, 0)),
        ],
        out_specs=pl.BlockSpec(memory_space=pltpu.MemorySpace.SMEM),
        compiler_params=pltpu.CompilerParams(
            dimension_semantics=("arbitrary",),
            vmem_limit_bytes=32 * 1024 * 1024),
    )(y2, w3, b3)
    return jnp.sum(partials)


# ----------------------- conv glue (NHWC im2col + Pallas GEMM) -----------------------

def _im2col_nhwc(x, kh, kw, stride, pad):
    # x: (N, H, W, C) (already bf16).  Column order: (kh, kw, C).
    N, H, W, C = x.shape
    xp = jnp.pad(x, ((0, 0), (pad, pad), (pad, pad), (0, 0)))
    Hp, Wp = H + 2 * pad, W + 2 * pad
    Ho = (Hp - kh) // stride + 1
    Wo = (Wp - kw) // stride + 1
    patches = []
    for i in range(kh):
        for j in range(kw):
            patches.append(xp[:, i:i + stride * Ho:stride,
                               j:j + stride * Wo:stride, :])
    cols = jnp.stack(patches, axis=3).reshape(N * Ho * Wo, kh * kw * C)
    return cols, Ho, Wo


def conv2d_nhwc(x, w, b, stride, pad, relu=False, out_dtype=jnp.float32):
    # x: (N,H,W,Cin);  w: (Cout, Cin, kh, kw);  b: (Cout,)
    N, H, W, Cin = x.shape
    Cout, _, kh, kw = w.shape
    cols, Ho, Wo = _im2col_nhwc(x.astype(jnp.bfloat16), kh, kw, stride, pad)
    wm = w.astype(jnp.bfloat16).transpose(2, 3, 1, 0).reshape(kh * kw * Cin, Cout)
    out = pallas_matmul_bias(cols, wm, b, relu=relu, out_dtype=out_dtype)
    return out.reshape(N, Ho, Wo, Cout)


def _pack_deconv_weight(w_t):
    # PyTorch ConvTranspose2d weight (Cin, Cout, 4, 4), stride=2, padding=1.
    # Phase-pack into an equivalent stride-1 3x3 conv with 4*Cout output channels.
    # Output phase rh uses taps t in {0,1,2} (input row iy = my - 1 + t):
    #   rh=0: t=0 -> ky=3, t=1 -> ky=1 ;  rh=1: t=1 -> ky=2, t=2 -> ky=0
    Cin, Cout, kh, kw = w_t.shape
    assert kh == 4 and kw == 4
    tap = {(0, 0): 3, (0, 1): 1, (1, 1): 2, (1, 2): 0}
    wp = jnp.zeros((2, 2, Cout, Cin, 3, 3), w_t.dtype)
    for (rh, th), ky in tap.items():
        for (rw, tw), kx in tap.items():
            wp = wp.at[rh, rw, :, :, th, tw].set(w_t[:, :, ky, kx].T)
    return wp.reshape(4 * Cout, Cin, 3, 3)


def conv_transpose2d_nhwc(x, w_t, b, relu=False, out_dtype=jnp.float32):
    # ConvTranspose2d(k=4, stride=2, padding=1) == ONE stride-1 3x3 conv with
    # phase-packed output channels (N = 4*Cout) followed by depth-to-space.
    N, H, W, Cin = x.shape
    _, Cout, _, _ = w_t.shape
    wp = _pack_deconv_weight(w_t)
    bp = jnp.tile(b, 4)
    y = conv2d_nhwc(x, wp, bp, stride=1, pad=1, relu=relu, out_dtype=out_dtype)
    y = y.reshape(N, H, W, 2, 2, Cout).transpose(0, 1, 3, 2, 4, 5)
    return y.reshape(N, 2 * H, 2 * W, Cout)


# ----------------------- CompModel forward -----------------------

def comp_model_forward(p, x_nchw, noise_key, gmm_K):
    N, Cin, H, W = x_nchw.shape
    x = x_nchw.transpose(0, 2, 3, 1)                           # NHWC internally

    # Encoder (intermediate activation kept bf16 -> halves HBM writeback).
    h = conv2d_nhwc(x, p["enc_w1"], p["enc_b1"], stride=2, pad=1,
                    relu=True, out_dtype=jnp.bfloat16)
    y = conv2d_nhwc(h, p["enc_w2"], p["enc_b2"], stride=2, pad=1,
                    relu=False, out_dtype=jnp.float32)

    # Quantizer (training path: additive uniform noise).
    noise = jax.random.uniform(noise_key, y.shape, jnp.float32, -0.5, 0.5)
    y_noise = y + noise

    # Decoder: each transposed conv is one phase-packed GEMM + depth-to-space.
    d = conv_transpose2d_nhwc(y_noise, p["dec_w1"], p["dec_b1"],
                              relu=True, out_dtype=jnp.bfloat16)
    out = conv_transpose2d_nhwc(d, p["dec_w2"], p["dec_b2"],
                                relu=False, out_dtype=jnp.float32)

    # Entropy model: 1x1 ctx conv fused into the bitcost kernel.
    bitcost = pallas_context_bitcost(y_noise, p["ctx_w"], p["ctx_b"], gmm_K)
    bpp = bitcost / N / H / W
    return out.transpose(0, 3, 1, 2), bpp                      # back to NCHW


# ----------------------- main -----------------------

if __name__ == "__main__":
    # args: main_channel=8, bottleneck=4, gmm_K=3
    N, Cin, H, W = 2, 3, 16, 16
    ch, bottleneck, gmm_K = 8, 4, 3

    key = jax.random.PRNGKey(0)
    ks = jax.random.split(key, 8)

    def init(k, shape):
        return 0.1 * jax.random.normal(k, shape, jnp.float32)

    params = {
        "enc_w1": init(ks[0], (ch, Cin, 4, 4)),
        "enc_b1": jnp.zeros((ch,), jnp.float32),
        "enc_w2": init(ks[1], (bottleneck, ch, 4, 4)),
        "enc_b2": jnp.zeros((bottleneck,), jnp.float32),
        "dec_w1": init(ks[2], (bottleneck, ch, 4, 4)),   # ConvTranspose2d layout
        "dec_b1": jnp.zeros((ch,), jnp.float32),
        "dec_w2": init(ks[3], (ch, Cin, 4, 4)),
        "dec_b2": jnp.zeros((Cin,), jnp.float32),
        "ctx_w": init(ks[4], (bottleneck, 3 * gmm_K * bottleneck)),  # 1x1 conv as matrix
        "ctx_b": jnp.zeros((3 * gmm_K * bottleneck,), jnp.float32),
    }

    x = jax.random.normal(ks[5], (N, Cin, H, W), jnp.float32)
    noise_key = ks[6]

    fwd = jax.jit(comp_model_forward, static_argnums=(3,))
    out_img, bpp = fwd(params, x, noise_key, gmm_K)
    jax.block_until_ready((out_img, bpp))

    assert out_img.shape == (N, Cin, H, W), out_img.shape
    assert bpp.shape == (), bpp.shape
    assert bool(jnp.isfinite(bpp)), "bpp not finite"
    assert bool(jnp.all(jnp.isfinite(out_img))), "out_img not finite"
    print("KERNEL_OK")
</pallas_src>

<mosaic_0001>
module attributes {stable_mosaic.version = 11 : i64} {
  func.func @_mm_bias_kernel(%arg0: i32, %arg1: i32, %arg2: i32, %arg3: memref<128x48xbf16, #tpu.memory_space<vmem>>, %arg4: memref<48x8xbf16, #tpu.memory_space<vmem>>, %arg5: memref<1x8xf32, #tpu.memory_space<vmem>>, %arg6: memref<128x8xbf16, #tpu.memory_space<vmem>>, %arg7: memref<128x8xf32, #tpu.memory_space<vmem>>) attributes {dimension_semantics = [#tpu.dimension_semantics<parallel>, #tpu.dimension_semantics<parallel>, #tpu.dimension_semantics<arbitrary>], iteration_bounds = array<i64: 1, 1, 1>, scalar_prefetch = 0 : i64, scratch_operands = 1 : i64, tpu.core_type = #tpu.core_type<tc>, window_params = [{transform_indices = @transform_0, window_bounds = array<i64: 128, 48>}, {transform_indices = @transform_1, window_bounds = array<i64: 48, 8>}, {transform_indices = @transform_2, window_bounds = array<i64: 1, 8>}, {transform_indices = @transform_3, window_bounds = array<i64: 128, 8>}]} {
    %c0_i32 = arith.constant 0 : i32
    %0 = arith.cmpi eq, %arg2, %c0_i32 : i32
    %1 = arith.extui %0 : i1 to i32
    %c0_i32_0 = arith.constant 0 : i32
    %2 = arith.cmpi ne, %1, %c0_i32_0 : i32
    scf.if %2 {
      %cst_10 = arith.constant 0.000000e+00 : f32
      %12 = vector.broadcast %cst_10 : f32 to vector<128x8xf32>
      %c0_11 = arith.constant 0 : index
      %c0_12 = arith.constant 0 : index
      %13 = vector.load %arg7[%c0_11, %c0_12] : memref<128x8xf32, #tpu.memory_space<vmem>>, vector<128x8xf32>
      tpu.vector_store %arg7[%c0_11, %c0_12], %12 {strides = array<i32>} : memref<128x8xf32, #tpu.memory_space<vmem>>, vector<128x8xf32>,
    } else {
    }
    %c0 = arith.constant 0 : index
    %c0_1 = arith.constant 0 : index
    %3 = vector.load %arg7[%c0, %c0_1] : memref<128x8xf32, #tpu.memory_space<vmem>>, vector<128x8xf32>
    %c0_2 = arith.constant 0 : index
    %c0_3 = arith.constant 0 : index
    %4 = vector.load %arg3[%c0_2, %c0_3] : memref<128x48xbf16, #tpu.memory_space<vmem>>, vector<128x48xbf16>
    %c0_4 = arith.constant 0 : index
    %c0_5 = arith.constant 0 : index
    %5 = vector.load %arg4[%c0_4, %c0_5] : memref<48x8xbf16, #tpu.memory_space<vmem>>, vector<48x8xbf16>
    %cst = arith.constant dense<0.000000e+00> : vector<128x8xf32>
    %6 = tpu.matmul %4, %5, %cst {dimension_numbers = #tpu.dot_dimension_numbers<[1], [0], [0], [1], [0, 0, 1, 1], [], []>} : vector<128x48xbf16>, vector<48x8xbf16>, vector<128x8xf32> -> vector<128x8xf32>
    %7 = arith.addf %3, %6 : vector<128x8xf32>
    %c0_6 = arith.constant 0 : index
    %c0_7 = arith.constant 0 : index
    %8 = vector.load %arg7[%c0_6, %c0_7] : memref<128x8xf32, #tpu.memory_space<vmem>>, vector<128x8xf32>
    tpu.vector_store %arg7[%c0_6, %c0_7], %7 {strides = array<i32>} : memref<128x8xf32, #tpu.memory_space<vmem>>, vector<128x8xf32>,
    %c0_i32_8 = arith.constant 0 : i32
    %9 = arith.cmpi eq, %arg2, %c0_i32_8 : i32
    %10 = arith.extui %9 : i1 to i32
    %c0_i32_9 = arith.constant 0 : i32
    %11 = arith.cmpi ne, %10, %c0_i32_9 : i32
    scf.if %11 {
      %c0_10 = arith.constant 0 : index
      %c0_11 = arith.constant 0 : index
      %12 = vector.load %arg7[%c0_10, %c0_11] : memref<128x8xf32, #tpu.memory_space<vmem>>, vector<128x8xf32>
      %c0_12 = arith.constant 0 : index
      %c0_13 = arith.constant 0 : index
      %13 = vector.load %arg5[%c0_12, %c0_13] : memref<1x8xf32, #tpu.memory_space<vmem>>, vector<1x8xf32>
      %14 = vector.broadcast %13 : vector<1x8xf32> to vector<128x8xf32>
      %15 = arith.addf %12, %14 : vector<128x8xf32>
      %cst_14 = arith.constant 0.000000e+00 : f32
      %16 = vector.broadcast %cst_14 : f32 to vector<128x8xf32>
      %17 = arith.maximumf %15, %16 : vector<128x8xf32>
      %18 = arith.truncf %17 : vector<128x8xf32> to vector<128x8xbf16>
      %c0_15 = arith.constant 0 : index
      %c0_16 = arith.constant 0 : index
      %19 = vector.load %arg6[%c0_15, %c0_16] : memref<128x8xbf16, #tpu.memory_space<vmem>>, vector<128x8xbf16>
      tpu.vector_store %arg6[%c0_15, %c0_16], %18 {strides = array<i32>} : memref<128x8xbf16, #tpu.memory_space<vmem>>, vector<128x8xbf16>,
    } else {
    }
    return
  }
  func.func @transform_0(%arg0: i32, %arg1: i32, %arg2: i32) -> (i32, i32) {
    %c0_i32 = arith.constant 0 : i32
    return %arg0, %arg2 : i32, i32
  }
  func.func @transform_1(%arg0: i32, %arg1: i32, %arg2: i32) -> (i32, i32) {
    %c0_i32 = arith.constant 0 : i32
    return %arg2, %arg1 : i32, i32
  }
  func.func @transform_2(%arg0: i32, %arg1: i32, %arg2: i32) -> (i32, i32) {
    %c0_i32 = arith.constant 0 : i32
    %c0_i32_0 = arith.constant 0 : i32
    return %c0_i32, %arg1 : i32, i32
  }
  func.func @transform_3(%arg0: i32, %arg1: i32, %arg2: i32) -> (i32, i32) {
    %c0_i32 = arith.constant 0 : i32
    return %arg0, %arg1 : i32, i32
  }
}

module attributes {stable_mosaic.version = 11 : i64} {
  func.func @_mm_bias_kernel(%arg0: i32, %arg1: i32, %arg2: i32, %arg3: memref<32x128xbf16, #tpu.memory_space<vmem>>, %arg4: memref<128x4xbf16, #tpu.memory_space<vmem>>, %arg5: memref<1x4xf32, #tpu.memory_space<vmem>>, %arg6: memref<32x4xf32, #tpu.memory_space<vmem>>, %arg7: memref<32x4xf32, #tpu.memory_space<vmem>>) attributes {dimension_semantics = [#tpu.dimension_semantics<parallel>, #tpu.dimension_semantics<parallel>, #tpu.dimension_semantics<arbitrary>], iteration_bounds = array<i64: 1, 1, 1>, scalar_prefetch = 0 : i64, scratch_operands = 1 : i64, tpu.core_type = #tpu.core_type<tc>, window_params = [{transform_indices = @transform_0, window_bounds = array<i64: 32, 128>}, {transform_indices = @transform_1, window_bounds = array<i64: 128, 4>}, {transform_indices = @transform_2, window_bounds = array<i64: 1, 4>}, {transform_indices = @transform_3, window_bounds = array<i64: 32, 4>}]} {
    %c0_i32 = arith.constant 0 : i32
    %0 = arith.cmpi eq, %arg2, %c0_i32 : i32
    %1 = arith.extui %0 : i1 to i32
    %c0_i32_0 = arith.constant 0 : i32
    %2 = arith.cmpi ne, %1, %c0_i32_0 : i32
    scf.if %2 {
      %cst_10 = arith.constant 0.000000e+00 : f32
      %12 = vector.broadcast %cst_10 : f32 to vector<32x4xf32>
      %c0_11 = arith.constant 0 : index
      %c0_12 = arith.constant 0 : index
      %13 = vector.load %arg7[%c0_11, %c0_12] : memref<32x4xf32, #tpu.memory_space<vmem>>, vector<32x4xf32>
      tpu.vector_store %arg7[%c0_11, %c0_12], %12 {strides = array<i32>} : memref<32x4xf32, #tpu.memory_space<vmem>>, vector<32x4xf32>,
    } else {
    }
    %c0 = arith.constant 0 : index
    %c0_1 = arith.constant 0 : index
    %3 = vector.load %arg7[%c0, %c0_1] : memref<32x4xf32, #tpu.memory_space<vmem>>, vector<32x4xf32>
    %c0_2 = arith.constant 0 : index
    %c0_3 = arith.constant 0 : index
    %4 = vector.load %arg3[%c0_2, %c0_3] : memref<32x128xbf16, #tpu.memory_space<vmem>>, vector<32x128xbf16>
    %c0_4 = arith.constant 0 : index
    %c0_5 = arith.constant 0 : index
    %5 = vector.load %arg4[%c0_4, %c0_5] : memref<128x4xbf16, #tpu.memory_space<vmem>>, vector<128x4xbf16>
    %cst = arith.constant dense<0.000000e+00> : vector<32x4xf32>
    %6 = tpu.matmul %4, %5, %cst {dimension_numbers = #tpu.dot_dimension_numbers<[1], [0], [0], [1], [0, 0, 1, 1], [], []>} : vector<32x128xbf16>, vector<128x4xbf16>, vector<32x4xf32> -> vector<32x4xf32>
    %7 = arith.addf %3, %6 : vector<32x4xf32>
    %c0_6 = arith.constant 0 : index
    %c0_7 = arith.constant 0 : index
    %8 = vector.load %arg7[%c0_6, %c0_7] : memref<32x4xf32, #tpu.memory_space<vmem>>, vector<32x4xf32>
    tpu.vector_store %arg7[%c0_6, %c0_7], %7 {strides = array<i32>} : memref<32x4xf32, #tpu.memory_space<vmem>>, vector<32x4xf32>,
    %c0_i32_8 = arith.constant 0 : i32
    %9 = arith.cmpi eq, %arg2, %c0_i32_8 : i32
    %10 = arith.extui %9 : i1 to i32
    %c0_i32_9 = arith.constant 0 : i32
    %11 = arith.cmpi ne, %10, %c0_i32_9 : i32
    scf.if %11 {
      %c0_10 = arith.constant 0 : index
      %c0_11 = arith.constant 0 : index
      %12 = vector.load %arg7[%c0_10, %c0_11] : memref<32x4xf32, #tpu.memory_space<vmem>>, vector<32x4xf32>
      %c0_12 = arith.constant 0 : index
      %c0_13 = arith.constant 0 : index
      %13 = vector.load %arg5[%c0_12, %c0_13] : memref<1x4xf32, #tpu.memory_space<vmem>>, vector<1x4xf32>
      %14 = vector.broadcast %13 : vector<1x4xf32> to vector<32x4xf32>
      %15 = arith.addf %12, %14 : vector<32x4xf32>
      %c0_14 = arith.constant 0 : index
      %c0_15 = arith.constant 0 : index
      %16 = vector.load %arg6[%c0_14, %c0_15] : memref<32x4xf32, #tpu.memory_space<vmem>>, vector<32x4xf32>
      tpu.vector_store %arg6[%c0_14, %c0_15], %15 {strides = array<i32>} : memref<32x4xf32, #tpu.memory_space<vmem>>, vector<32x4xf32>,
    } else {
    }
    return
  }
  func.func @transform_0(%arg0: i32, %arg1: i32, %arg2: i32) -> (i32, i32) {
    %c0_i32 = arith.constant 0 : i32
    return %arg0, %arg2 : i32, i32
  }
  func.func @transform_1(%arg0: i32, %arg1: i32, %arg2: i32) -> (i32, i32) {
    %c0_i32 = arith.constant 0 : i32
    return %arg2, %arg1 : i32, i32
  }
  func.func @transform_2(%arg0: i32, %arg1: i32, %arg2: i32) -> (i32, i32) {
    %c0_i32 = arith.constant 0 : i32
    %c0_i32_0 = arith.constant 0 : i32
    return %c0_i32, %arg1 : i32, i32
  }
  func.func @transform_3(%arg0: i32, %arg1: i32, %arg2: i32) -> (i32, i32) {
    %c0_i32 = arith.constant 0 : i32
    return %arg0, %arg1 : i32, i32
  }
}

module attributes {stable_mosaic.version = 11 : i64} {
  func.func @_mm_bias_kernel(%arg0: i32, %arg1: i32, %arg2: i32, %arg3: memref<32x36xbf16, #tpu.memory_space<vmem>>, %arg4: memref<36x32xbf16, #tpu.memory_space<vmem>>, %arg5: memref<1x32xf32, #tpu.memory_space<vmem>>, %arg6: memref<32x32xbf16, #tpu.memory_space<vmem>>, %arg7: memref<32x32xf32, #tpu.memory_space<vmem>>) attributes {dimension_semantics = [#tpu.dimension_semantics<parallel>, #tpu.dimension_semantics<parallel>, #tpu.dimension_semantics<arbitrary>], iteration_bounds = array<i64: 1, 1, 1>, scalar_prefetch = 0 : i64, scratch_operands = 1 : i64, tpu.core_type = #tpu.core_type<tc>, window_params = [{transform_indices = @transform_0, window_bounds = array<i64: 32, 36>}, {transform_indices = @transform_1, window_bounds = array<i64: 36, 32>}, {transform_indices = @transform_2, window_bounds = array<i64: 1, 32>}, {transform_indices = @transform_3, window_bounds = array<i64: 32, 32>}]} {
    %c0_i32 = arith.constant 0 : i32
    %0 = arith.cmpi eq, %arg2, %c0_i32 : i32
    %1 = arith.extui %0 : i1 to i32
    %c0_i32_0 = arith.constant 0 : i32
    %2 = arith.cmpi ne, %1, %c0_i32_0 : i32
    scf.if %2 {
      %cst_10 = arith.constant 0.000000e+00 : f32
      %12 = vector.broadcast %cst_10 : f32 to vector<32x32xf32>
      %c0_11 = arith.constant 0 : index
      %c0_12 = arith.constant 0 : index
      %13 = vector.load %arg7[%c0_11, %c0_12] : memref<32x32xf32, #tpu.memory_space<vmem>>, vector<32x32xf32>
      tpu.vector_store %arg7[%c0_11, %c0_12], %12 {strides = array<i32>} : memref<32x32xf32, #tpu.memory_space<vmem>>, vector<32x32xf32>,
    } else {
    }
    %c0 = arith.constant 0 : index
    %c0_1 = arith.constant 0 : index
    %3 = vector.load %arg7[%c0, %c0_1] : memref<32x32xf32, #tpu.memory_space<vmem>>, vector<32x32xf32>
    %c0_2 = arith.constant 0 : index
    %c0_3 = arith.constant 0 : index
    %4 = vector.load %arg3[%c0_2, %c0_3] : memref<32x36xbf16, #tpu.memory_space<vmem>>, vector<32x36xbf16>
    %c0_4 = arith.constant 0 : index
    %c0_5 = arith.constant 0 : index
    %5 = vector.load %arg4[%c0_4, %c0_5] : memref<36x32xbf16, #tpu.memory_space<vmem>>, vector<36x32xbf16>
    %cst = arith.constant dense<0.000000e+00> : vector<32x32xf32>
    %6 = tpu.matmul %4, %5, %cst {dimension_numbers = #tpu.dot_dimension_numbers<[1], [0], [0], [1], [0, 0, 1, 1], [], []>} : vector<32x36xbf16>, vector<36x32xbf16>, vector<32x32xf32> -> vector<32x32xf32>
    %7 = arith.addf %3, %6 : vector<32x32xf32>
    %c0_6 = arith.constant 0 : index
    %c0_7 = arith.constant 0 : index
    %8 = vector.load %arg7[%c0_6, %c0_7] : memref<32x32xf32, #tpu.memory_space<vmem>>, vector<32x32xf32>
    tpu.vector_store %arg7[%c0_6, %c0_7], %7 {strides = array<i32>} : memref<32x32xf32, #tpu.memory_space<vmem>>, vector<32x32xf32>,
    %c0_i32_8 = arith.constant 0 : i32
    %9 = arith.cmpi eq, %arg2, %c0_i32_8 : i32
    %10 = arith.extui %9 : i1 to i32
    %c0_i32_9 = arith.constant 0 : i32
    %11 = arith.cmpi ne, %10, %c0_i32_9 : i32
    scf.if %11 {
      %c0_10 = arith.constant 0 : index
      %c0_11 = arith.constant 0 : index
      %12 = vector.load %arg7[%c0_10, %c0_11] : memref<32x32xf32, #tpu.memory_space<vmem>>, vector<32x32xf32>
      %c0_12 = arith.constant 0 : index
      %c0_13 = arith.constant 0 : index
      %13 = vector.load %arg5[%c0_12, %c0_13] : memref<1x32xf32, #tpu.memory_space<vmem>>, vector<1x32xf32>
      %14 = vector.broadcast %13 : vector<1x32xf32> to vector<32x32xf32>
      %15 = arith.addf %12, %14 : vector<32x32xf32>
      %cst_14 = arith.constant 0.000000e+00 : f32
      %16 = vector.broadcast %cst_14 : f32 to vector<32x32xf32>
      %17 = arith.maximumf %15, %16 : vector<32x32xf32>
      %18 = arith.truncf %17 : vector<32x32xf32> to vector<32x32xbf16>
      %c0_15 = arith.constant 0 : index
      %c0_16 = arith.constant 0 : index
      %19 = vector.load %arg6[%c0_15, %c0_16] : memref<32x32xbf16, #tpu.memory_space<vmem>>, vector<32x32xbf16>
      tpu.vector_store %arg6[%c0_15, %c0_16], %18 {strides = array<i32>} : memref<32x32xbf16, #tpu.memory_space<vmem>>, vector<32x32xbf16>,
    } else {
    }
    return
  }
  func.func @transform_0(%arg0: i32, %arg1: i32, %arg2: i32) -> (i32, i32) {
    %c0_i32 = arith.constant 0 : i32
    return %arg0, %arg2 : i32, i32
  }
  func.func @transform_1(%arg0: i32, %arg1: i32, %arg2: i32) -> (i32, i32) {
    %c0_i32 = arith.constant 0 : i32
    return %arg2, %arg1 : i32, i32
  }
  func.func @transform_2(%arg0: i32, %arg1: i32, %arg2: i32) -> (i32, i32) {
    %c0_i32 = arith.constant 0 : i32
    %c0_i32_0 = arith.constant 0 : i32
    return %c0_i32, %arg1 : i32, i32
  }
  func.func @transform_3(%arg0: i32, %arg1: i32, %arg2: i32) -> (i32, i32) {
    %c0_i32 = arith.constant 0 : i32
    return %arg0, %arg1 : i32, i32
  }
}

module attributes {stable_mosaic.version = 11 : i64} {
  func.func @_mm_bias_kernel(%arg0: i32, %arg1: i32, %arg2: i32, %arg3: memref<128x72xbf16, #tpu.memory_space<vmem>>, %arg4: memref<72x12xbf16, #tpu.memory_space<vmem>>, %arg5: memref<1x12xf32, #tpu.memory_space<vmem>>, %arg6: memref<128x12xf32, #tpu.memory_space<vmem>>, %arg7: memref<128x12xf32, #tpu.memory_space<vmem>>) attributes {dimension_semantics = [#tpu.dimension_semantics<parallel>, #tpu.dimension_semantics<parallel>, #tpu.dimension_semantics<arbitrary>], iteration_bounds = array<i64: 1, 1, 1>, scalar_prefetch = 0 : i64, scratch_operands = 1 : i64, tpu.core_type = #tpu.core_type<tc>, window_params = [{transform_indices = @transform_0, window_bounds = array<i64: 128, 72>}, {transform_indices = @transform_1, window_bounds = array<i64: 72, 12>}, {transform_indices = @transform_2, window_bounds = array<i64: 1, 12>}, {transform_indices = @transform_3, window_bounds = array<i64: 128, 12>}]} {
    %c0_i32 = arith.constant 0 : i32
    %0 = arith.cmpi eq, %arg2, %c0_i32 : i32
    %1 = arith.extui %0 : i1 to i32
    %c0_i32_0 = arith.constant 0 : i32
    %2 = arith.cmpi ne, %1, %c0_i32_0 : i32
    scf.if %2 {
      %cst_10 = arith.constant 0.000000e+00 : f32
      %12 = vector.broadcast %cst_10 : f32 to vector<128x12xf32>
      %c0_11 = arith.constant 0 : index
      %c0_12 = arith.constant 0 : index
      %13 = vector.load %arg7[%c0_11, %c0_12] : memref<128x12xf32, #tpu.memory_space<vmem>>, vector<128x12xf32>
      tpu.vector_store %arg7[%c0_11, %c0_12], %12 {strides = array<i32>} : memref<128x12xf32, #tpu.memory_space<vmem>>, vector<128x12xf32>,
    } else {
    }
    %c0 = arith.constant 0 : index
    %c0_1 = arith.constant 0 : index
    %3 = vector.load %arg7[%c0, %c0_1] : memref<128x12xf32, #tpu.memory_space<vmem>>, vector<128x12xf32>
    %c0_2 = arith.constant 0 : index
    %c0_3 = arith.constant 0 : index
    %4 = vector.load %arg3[%c0_2, %c0_3] : memref<128x72xbf16, #tpu.memory_space<vmem>>, vector<128x72xbf16>
    %c0_4 = arith.constant 0 : index
    %c0_5 = arith.constant 0 : index
    %5 = vector.load %arg4[%c0_4, %c0_5] : memref<72x12xbf16, #tpu.memory_space<vmem>>, vector<72x12xbf16>
    %cst = arith.constant dense<0.000000e+00> : vector<128x12xf32>
    %6 = tpu.matmul %4, %5, %cst {dimension_numbers = #tpu.dot_dimension_numbers<[1], [0], [0], [1], [0, 0, 1, 1], [], []>} : vector<128x72xbf16>, vector<72x12xbf16>, vector<128x12xf32> -> vector<128x12xf32>
    %7 = arith.addf %3, %6 : vector<128x12xf32>
    %c0_6 = arith.constant 0 : index
    %c0_7 = arith.constant 0 : index
    %8 = vector.load %arg7[%c0_6, %c0_7] : memref<128x12xf32, #tpu.memory_space<vmem>>, vector<128x12xf32>
    tpu.vector_store %arg7[%c0_6, %c0_7], %7 {strides = array<i32>} : memref<128x12xf32, #tpu.memory_space<vmem>>, vector<128x12xf32>,
    %c0_i32_8 = arith.constant 0 : i32
    %9 = arith.cmpi eq, %arg2, %c0_i32_8 : i32
    %10 = arith.extui %9 : i1 to i32
    %c0_i32_9 = arith.constant 0 : i32
    %11 = arith.cmpi ne, %10, %c0_i32_9 : i32
    scf.if %11 {
      %c0_10 = arith.constant 0 : index
      %c0_11 = arith.constant 0 : index
      %12 = vector.load %arg7[%c0_10, %c0_11] : memref<128x12xf32, #tpu.memory_space<vmem>>, vector<128x12xf32>
      %c0_12 = arith.constant 0 : index
      %c0_13 = arith.constant 0 : index
      %13 = vector.load %arg5[%c0_12, %c0_13] : memref<1x12xf32, #tpu.memory_space<vmem>>, vector<1x12xf32>
      %14 = vector.broadcast %13 : vector<1x12xf32> to vector<128x12xf32>
      %15 = arith.addf %12, %14 : vector<128x12xf32>
      %c0_14 = arith.constant 0 : index
      %c0_15 = arith.constant 0 : index
      %16 = vector.load %arg6[%c0_14, %c0_15] : memref<128x12xf32, #tpu.memory_space<vmem>>, vector<128x12xf32>
      tpu.vector_store %arg6[%c0_14, %c0_15], %15 {strides = array<i32>} : memref<128x12xf32, #tpu.memory_space<vmem>>, vector<128x12xf32>,
    } else {
    }
    return
  }
  func.func @transform_0(%arg0: i32, %arg1: i32, %arg2: i32) -> (i32, i32) {
    %c0_i32 = arith.constant 0 : i32
    return %arg0, %arg2 : i32, i32
  }
  func.func @transform_1(%arg0: i32, %arg1: i32, %arg2: i32) -> (i32, i32) {
    %c0_i32 = arith.constant 0 : i32
    return %arg2, %arg1 : i32, i32
  }
  func.func @transform_2(%arg0: i32, %arg1: i32, %arg2: i32) -> (i32, i32) {
    %c0_i32 = arith.constant 0 : i32
    %c0_i32_0 = arith.constant 0 : i32
    return %c0_i32, %arg1 : i32, i32
  }
  func.func @transform_3(%arg0: i32, %arg1: i32, %arg2: i32) -> (i32, i32) {
    %c0_i32 = arith.constant 0 : i32
    return %arg0, %arg1 : i32, i32
  }
}

module attributes {stable_mosaic.version = 11 : i64} {
  func.func @_ctx_bitcost_kernel(%arg0: i32, %arg1: memref<32x4xf32, #tpu.memory_space<vmem>>, %arg2: memref<9x4x4xf32, #tpu.memory_space<vmem>>, %arg3: memref<9x1x4xf32, #tpu.memory_space<vmem>>, %arg4: memref<1xf32, #tpu.memory_space<smem>>) attributes {dimension_semantics = [#tpu.dimension_semantics<arbitrary>], iteration_bounds = array<i64: 1>, scalar_prefetch = 0 : i64, scratch_operands = 0 : i64, tpu.core_type = #tpu.core_type<tc>, window_params = [{transform_indices = @transform_0, window_bounds = array<i64: 32, 4>}, {pipeline_mode = #tpu.pipeline_mode<synchronous>, transform_indices = @transform_1, window_bounds = array<i64: 9, 4, 4>}, {pipeline_mode = #tpu.pipeline_mode<synchronous>, transform_indices = @transform_2, window_bounds = array<i64: 9, 1, 4>}, {transform_indices = @transform_3, window_bounds = array<i64: 1>}]} {
    %c0 = arith.constant 0 : index
    %c0_0 = arith.constant 0 : index
    %0 = vector.load %arg1[%c0, %c0_0] : memref<32x4xf32, #tpu.memory_space<vmem>>, vector<32x4xf32>
    %c0_1 = arith.constant 0 : index
    %c0_2 = arith.constant 0 : index
    %c0_3 = arith.constant 0 : index
    %1 = vector.load %arg2[%c0_1, %c0_2, %c0_3] : memref<9x4x4xf32, #tpu.memory_space<vmem>>, vector<1x4x4xf32>
    %2 = vector.shape_cast %1 : vector<1x4x4xf32> to vector<4x4xf32>
    %cst = arith.constant dense<0.000000e+00> : vector<32x4xf32>
    %3 = tpu.matmul %0, %2, %cst {dimension_numbers = #tpu.dot_dimension_numbers<[1], [0], [0], [1], [0, 0, 1, 1], [], []>} : vector<32x4xf32>, vector<4x4xf32>, vector<32x4xf32> -> vector<32x4xf32>
    %c0_4 = arith.constant 0 : index
    %c0_5 = arith.constant 0 : index
    %c0_6 = arith.constant 0 : index
    %4 = vector.load %arg3[%c0_4, %c0_5, %c0_6] : memref<9x1x4xf32, #tpu.memory_space<vmem>>, vector<1x1x4xf32>
    %5 = vector.shape_cast %4 : vector<1x1x4xf32> to vector<1x4xf32>
    %6 = vector.broadcast %5 : vector<1x4xf32> to vector<32x4xf32>
    %7 = arith.addf %3, %6 : vector<32x4xf32>
    %c1 = arith.constant 1 : index
    %c0_7 = arith.constant 0 : index
    %c0_8 = arith.constant 0 : index
    %8 = vector.load %arg2[%c1, %c0_7, %c0_8] : memref<9x4x4xf32, #tpu.memory_space<vmem>>, vector<1x4x4xf32>
    %9 = vector.shape_cast %8 : vector<1x4x4xf32> to vector<4x4xf32>
    %cst_9 = arith.constant dense<0.000000e+00> : vector<32x4xf32>
    %10 = tpu.matmul %0, %9, %cst_9 {dimension_numbers = #tpu.dot_dimension_numbers<[1], [0], [0], [1], [0, 0, 1, 1], [], []>} : vector<32x4xf32>, vector<4x4xf32>, vector<32x4xf32> -> vector<32x4xf32>
    %c1_10 = arith.constant 1 : index
    %c0_11 = arith.constant 0 : index
    %c0_12 = arith.constant 0 : index
    %11 = vector.load %arg3[%c1_10, %c0_11, %c0_12] : memref<9x1x4xf32, #tpu.memory_space<vmem>>, vector<1x1x4xf32>
    %12 = vector.shape_cast %11 : vector<1x1x4xf32> to vector<1x4xf32>
    %13 = vector.broadcast %12 : vector<1x4xf32> to vector<32x4xf32>
    %14 = arith.addf %10, %13 : vector<32x4xf32>
    %c2 = arith.constant 2 : index
    %c0_13 = arith.constant 0 : index
    %c0_14 = arith.constant 0 : index
    %15 = vector.load %arg2[%c2, %c0_13, %c0_14] : memref<9x4x4xf32, #tpu.memory_space<vmem>>, vector<1x4x4xf32>
    %16 = vector.shape_cast %15 : vector<1x4x4xf32> to vector<4x4xf32>
    %cst_15 = arith.constant dense<0.000000e+00> : vector<32x4xf32>
    %17 = tpu.matmul %0, %16, %cst_15 {dimension_numbers = #tpu.dot_dimension_numbers<[1], [0], [0], [1], [0, 0, 1, 1], [], []>} : vector<32x4xf32>, vector<4x4xf32>, vector<32x4xf32> -> vector<32x4xf32>
    %c2_16 = arith.constant 2 : index
    %c0_17 = arith.constant 0 : index
    %c0_18 = arith.constant 0 : index
    %18 = vector.load %arg3[%c2_16, %c0_17, %c0_18] : memref<9x1x4xf32, #tpu.memory_space<vmem>>, vector<1x1x4xf32>
    %19 = vector.shape_cast %18 : vector<1x1x4xf32> to vector<1x4xf32>
    %20 = vector.broadcast %19 : vector<1x4xf32> to vector<32x4xf32>
    %21 = arith.addf %17, %20 : vector<32x4xf32>
    %c3 = arith.constant 3 : index
    %c0_19 = arith.constant 0 : index
    %c0_20 = arith.constant 0 : index
    %22 = vector.load %arg2[%c3, %c0_19, %c0_20] : memref<9x4x4xf32, #tpu.memory_space<vmem>>, vector<1x4x4xf32>
    %23 = vector.shape_cast %22 : vector<1x4x4xf32> to vector<4x4xf32>
    %cst_21 = arith.constant dense<0.000000e+00> : vector<32x4xf32>
    %24 = tpu.matmul %0, %23, %cst_21 {dimension_numbers = #tpu.dot_dimension_numbers<[1], [0], [0], [1], [0, 0, 1, 1], [], []>} : vector<32x4xf32>, vector<4x4xf32>, vector<32x4xf32> -> vector<32x4xf32>
    %c3_22 = arith.constant 3 : index
    %c0_23 = arith.constant 0 : index
    %c0_24 = arith.constant 0 : index
    %25 = vector.load %arg3[%c3_22, %c0_23, %c0_24] : memref<9x1x4xf32, #tpu.memory_space<vmem>>, vector<1x1x4xf32>
    %26 = vector.shape_cast %25 : vector<1x1x4xf32> to vector<1x4xf32>
    %27 = vector.broadcast %26 : vector<1x4xf32> to vector<32x4xf32>
    %28 = arith.addf %24, %27 : vector<32x4xf32>
    %c4 = arith.constant 4 : index
    %c0_25 = arith.constant 0 : index
    %c0_26 = arith.constant 0 : index
    %29 = vector.load %arg2[%c4, %c0_25, %c0_26] : memref<9x4x4xf32, #tpu.memory_space<vmem>>, vector<1x4x4xf32>
    %30 = vector.shape_cast %29 : vector<1x4x4xf32> to vector<4x4xf32>
    %cst_27 = arith.constant dense<0.000000e+00> : vector<32x4xf32>
    %31 = tpu.matmul %0, %30, %cst_27 {dimension_numbers = #tpu.dot_dimension_numbers<[1], [0], [0], [1], [0, 0, 1, 1], [], []>} : vector<32x4xf32>, vector<4x4xf32>, vector<32x4xf32> -> vector<32x4xf32>
    %c4_28 = arith.constant 4 : index
    %c0_29 = arith.constant 0 : index
    %c0_30 = arith.constant 0 : index
    %32 = vector.load %arg3[%c4_28, %c0_29, %c0_30] : memref<9x1x4xf32, #tpu.memory_space<vmem>>, vector<1x1x4xf32>
    %33 = vector.shape_cast %32 : vector<1x1x4xf32> to vector<1x4xf32>
    %34 = vector.broadcast %33 : vector<1x4xf32> to vector<32x4xf32>
    %35 = arith.addf %31, %34 : vector<32x4xf32>
    %c5 = arith.constant 5 : index
    %c0_31 = arith.constant 0 : index
    %c0_32 = arith.constant 0 : index
    %36 = vector.load %arg2[%c5, %c0_31, %c0_32] : memref<9x4x4xf32, #tpu.memory_space<vmem>>, vector<1x4x4xf32>
    %37 = vector.shape_cast %36 : vector<1x4x4xf32> to vector<4x4xf32>
    %cst_33 = arith.constant dense<0.000000e+00> : vector<32x4xf32>
    %38 = tpu.matmul %0, %37, %cst_33 {dimension_numbers = #tpu.dot_dimension_numbers<[1], [0], [0], [1], [0, 0, 1, 1], [], []>} : vector<32x4xf32>, vector<4x4xf32>, vector<32x4xf32> -> vector<32x4xf32>
    %c5_34 = arith.constant 5 : index
    %c0_35 = arith.constant 0 : index
    %c0_36 = arith.constant 0 : index
    %39 = vector.load %arg3[%c5_34, %c0_35, %c0_36] : memref<9x1x4xf32, #tpu.memory_space<vmem>>, vector<1x1x4xf32>
    %40 = vector.shape_cast %39 : vector<1x1x4xf32> to vector<1x4xf32>
    %41 = vector.broadcast %40 : vector<1x4xf32> to vector<32x4xf32>
    %42 = arith.addf %38, %41 : vector<32x4xf32>
    %c6 = arith.constant 6 : index
    %c0_37 = arith.constant 0 : index
    %c0_38 = arith.constant 0 : index
    %43 = vector.load %arg2[%c6, %c0_37, %c0_38] : memref<9x4x4xf32, #tpu.memory_space<vmem>>, vector<1x4x4xf32>
    %44 = vector.shape_cast %43 : vector<1x4x4xf32> to vector<4x4xf32>
    %cst_39 = arith.constant dense<0.000000e+00> : vector<32x4xf32>
    %45 = tpu.matmul %0, %44, %cst_39 {dimension_numbers = #tpu.dot_dimension_numbers<[1], [0], [0], [1], [0, 0, 1, 1], [], []>} : vector<32x4xf32>, vector<4x4xf32>, vector<32x4xf32> -> vector<32x4xf32>
    %c6_40 = arith.constant 6 : index
    %c0_41 = arith.constant 0 : index
    %c0_42 = arith.constant 0 : index
    %46 = vector.load %arg3[%c6_40, %c0_41, %c0_42] : memref<9x1x4xf32, #tpu.memory_space<vmem>>, vector<1x1x4xf32>
    %47 = vector.shape_cast %46 : vector<1x1x4xf32> to vector<1x4xf32>
    %48 = vector.broadcast %47 : vector<1x4xf32> to vector<32x4xf32>
    %49 = arith.addf %45, %48 : vector<32x4xf32>
    %c7 = arith.constant 7 : index
    %c0_43 = arith.constant 0 : index
    %c0_44 = arith.constant 0 : index
    %50 = vector.load %arg2[%c7, %c0_43, %c0_44] : memref<9x4x4xf32, #tpu.memory_space<vmem>>, vector<1x4x4xf32>
    %51 = vector.shape_cast %50 : vector<1x4x4xf32> to vector<4x4xf32>
    %cst_45 = arith.constant dense<0.000000e+00> : vector<32x4xf32>
    %52 = tpu.matmul %0, %51, %cst_45 {dimension_numbers = #tpu.dot_dimension_numbers<[1], [0], [0], [1], [0, 0, 1, 1], [], []>} : vector<32x4xf32>, vector<4x4xf32>, vector<32x4xf32> -> vector<32x4xf32>
    %c7_46 = arith.constant 7 : index
    %c0_47 = arith.constant 0 : index
    %c0_48 = arith.constant 0 : index
    %53 = vector.load %arg3[%c7_46, %c0_47, %c0_48] : memref<9x1x4xf32, #tpu.memory_space<vmem>>, vector<1x1x4xf32>
    %54 = vector.shape_cast %53 : vector<1x1x4xf32> to vector<1x4xf32>
    %55 = vector.broadcast %54 : vector<1x4xf32> to vector<32x4xf32>
    %56 = arith.addf %52, %55 : vector<32x4xf32>
    %c8 = arith.constant 8 : index
    %c0_49 = arith.constant 0 : index
    %c0_50 = arith.constant 0 : index
    %57 = vector.load %arg2[%c8, %c0_49, %c0_50] : memref<9x4x4xf32, #tpu.memory_space<vmem>>, vector<1x4x4xf32>
    %58 = vector.shape_cast %57 : vector<1x4x4xf32> to vector<4x4xf32>
    %cst_51 = arith.constant dense<0.000000e+00> : vector<32x4xf32>
    %59 = tpu.matmul %0, %58, %cst_51 {dimension_numbers = #tpu.dot_dimension_numbers<[1], [0], [0], [1], [0, 0, 1, 1], [], []>} : vector<32x4xf32>, vector<4x4xf32>, vector<32x4xf32> -> vector<32x4xf32>
    %c8_52 = arith.constant 8 : index
    %c0_53 = arith.constant 0 : index
    %c0_54 = arith.constant 0 : index
    %60 = vector.load %arg3[%c8_52, %c0_53, %c0_54] : memref<9x1x4xf32, #tpu.memory_space<vmem>>, vector<1x1x4xf32>
    %61 = vector.shape_cast %60 : vector<1x1x4xf32> to vector<1x4xf32>
    %62 = vector.broadcast %61 : vector<1x4xf32> to vector<32x4xf32>
    %63 = arith.addf %59, %62 : vector<32x4xf32>
    %64 = arith.maximumf %7, %14 : vector<32x4xf32>
    %65 = arith.maximumf %64, %21 : vector<32x4xf32>
    %cst_55 = arith.constant 0.000000e+00 : f32
    %66 = vector.broadcast %cst_55 : f32 to vector<32x4xf32>
    %cst_56 = arith.constant 0.000000e+00 : f32
    %67 = vector.broadcast %cst_56 : f32 to vector<32x4xf32>
    %68 = arith.subf %7, %65 : vector<32x4xf32>
    %69 = math.exp %68 : vector<32x4xf32>
    %cst_57 = arith.constant 2.000000e+01 : f32
    %70 = vector.broadcast %cst_57 : f32 to vector<32x4xf32>
    %71 = arith.cmpf ogt, %49, %70 : vector<32x4xf32>
    %cst_58 = arith.constant 2.000000e+01 : f32
    %72 = vector.broadcast %cst_58 : f32 to vector<32x4xf32>
    %73 = arith.minimumf %49, %72 : vector<32x4xf32>
    %74 = math.exp %73 : vector<32x4xf32>
    %cst_59 = arith.constant 1.000000e+00 : f32
    %75 = vector.broadcast %cst_59 : f32 to vector<32x4xf32>
    %76 = arith.addf %75, %74 : vector<32x4xf32>
    %77 = math.log %76 : vector<32x4xf32>
    %78 = arith.select %71, %49, %77 : vector<32x4xi1>, vector<32x4xf32>
    %cst_60 = arith.constant 9.99999997E-7 : f32
    %79 = vector.broadcast %cst_60 : f32 to vector<32x4xf32>
    %80 = arith.addf %78, %79 : vector<32x4xf32>
    %cst_61 = arith.constant 1.000000e+00 : f32
    %81 = vector.broadcast %cst_61 : f32 to vector<32x4xf32>
    %82 = arith.divf %81, %80 : vector<32x4xf32>
    %cst_62 = arith.constant 5.000000e-01 : f32
    %83 = vector.broadcast %cst_62 : f32 to vector<32x4xf32>
    %84 = arith.addf %0, %83 : vector<32x4xf32>
    %85 = arith.subf %84, %28 : vector<32x4xf32>
    %86 = arith.mulf %85, %82 : vector<32x4xf32>
    %cst_63 = arith.constant 5.000000e-01 : f32
    %87 = vector.broadcast %cst_63 : f32 to vector<32x4xf32>
    %88 = arith.mulf %87, %86 : vector<32x4xf32>
    %89 = math.tanh %88 : vector<32x4xf32>
    %cst_64 = arith.constant 5.000000e-01 : f32
    %90 = vector.broadcast %cst_64 : f32 to vector<32x4xf32>
    %91 = arith.mulf %90, %89 : vector<32x4xf32>
    %cst_65 = arith.constant 5.000000e-01 : f32
    %92 = vector.broadcast %cst_65 : f32 to vector<32x4xf32>
    %93 = arith.addf %92, %91 : vector<32x4xf32>
    %cst_66 = arith.constant 5.000000e-01 : f32
    %94 = vector.broadcast %cst_66 : f32 to vector<32x4xf32>
    %95 = arith.subf %0, %94 : vector<32x4xf32>
    %96 = arith.subf %95, %28 : vector<32x4xf32>
    %97 = arith.mulf %96, %82 : vector<32x4xf32>
    %cst_67 = arith.constant 5.000000e-01 : f32
    %98 = vector.broadcast %cst_67 : f32 to vector<32x4xf32>
    %99 = arith.mulf %98, %97 : vector<32x4xf32>
    %100 = math.tanh %99 : vector<32x4xf32>
    %cst_68 = arith.constant 5.000000e-01 : f32
    %101 = vector.broadcast %cst_68 : f32 to vector<32x4xf32>
    %102 = arith.mulf %101, %100 : vector<32x4xf32>
    %cst_69 = arith.constant 5.000000e-01 : f32
    %103 = vector.broadcast %cst_69 : f32 to vector<32x4xf32>
    %104 = arith.addf %103, %102 : vector<32x4xf32>
    %105 = arith.subf %93, %104 : vector<32x4xf32>
    %106 = arith.mulf %69, %105 : vector<32x4xf32>
    %107 = arith.addf %66, %106 : vector<32x4xf32>
    %108 = arith.addf %67, %69 : vector<32x4xf32>
    %109 = arith.subf %14, %65 : vector<32x4xf32>
    %110 = math.exp %109 : vector<32x4xf32>
    %cst_70 = arith.constant 2.000000e+01 : f32
    %111 = vector.broadcast %cst_70 : f32 to vector<32x4xf32>
    %112 = arith.cmpf ogt, %56, %111 : vector<32x4xf32>
    %cst_71 = arith.constant 2.000000e+01 : f32
    %113 = vector.broadcast %cst_71 : f32 to vector<32x4xf32>
    %114 = arith.minimumf %56, %113 : vector<32x4xf32>
    %115 = math.exp %114 : vector<32x4xf32>
    %cst_72 = arith.constant 1.000000e+00 : f32
    %116 = vector.broadcast %cst_72 : f32 to vector<32x4xf32>
    %117 = arith.addf %116, %115 : vector<32x4xf32>
    %118 = math.log %117 : vector<32x4xf32>
    %119 = arith.select %112, %56, %118 : vector<32x4xi1>, vector<32x4xf32>
    %cst_73 = arith.constant 9.99999997E-7 : f32
    %120 = vector.broadcast %cst_73 : f32 to vector<32x4xf32>
    %121 = arith.addf %119, %120 : vector<32x4xf32>
    %cst_74 = arith.constant 1.000000e+00 : f32
    %122 = vector.broadcast %cst_74 : f32 to vector<32x4xf32>
    %123 = arith.divf %122, %121 : vector<32x4xf32>
    %cst_75 = arith.constant 5.000000e-01 : f32
    %124 = vector.broadcast %cst_75 : f32 to vector<32x4xf32>
    %125 = arith.addf %0, %124 : vector<32x4xf32>
    %126 = arith.subf %125, %35 : vector<32x4xf32>
    %127 = arith.mulf %126, %123 : vector<32x4xf32>
    %cst_76 = arith.constant 5.000000e-01 : f32
    %128 = vector.broadcast %cst_76 : f32 to vector<32x4xf32>
    %129 = arith.mulf %128, %127 : vector<32x4xf32>
    %130 = math.tanh %129 : vector<32x4xf32>
    %cst_77 = arith.constant 5.000000e-01 : f32
    %131 = vector.broadcast %cst_77 : f32 to vector<32x4xf32>
    %132 = arith.mulf %131, %130 : vector<32x4xf32>
    %cst_78 = arith.constant 5.000000e-01 : f32
    %133 = vector.broadcast %cst_78 : f32 to vector<32x4xf32>
    %134 = arith.addf %133, %132 : vector<32x4xf32>
    %cst_79 = arith.constant 5.000000e-01 : f32
    %135 = vector.broadcast %cst_79 : f32 to vector<32x4xf32>
    %136 = arith.subf %0, %135 : vector<32x4xf32>
    %137 = arith.subf %136, %35 : vector<32x4xf32>
    %138 = arith.mulf %137, %123 : vector<32x4xf32>
    %cst_80 = arith.constant 5.000000e-01 : f32
    %139 = vector.broadcast %cst_80 : f32 to vector<32x4xf32>
    %140 = arith.mulf %139, %138 : vector<32x4xf32>
    %141 = math.tanh %140 : vector<32x4xf32>
    %cst_81 = arith.constant 5.000000e-01 : f32
    %142 = vector.broadcast %cst_81 : f32 to vector<32x4xf32>
    %143 = arith.mulf %142, %141 : vector<32x4xf32>
    %cst_82 = arith.constant 5.000000e-01 : f32
    %144 = vector.broadcast %cst_82 : f32 to vector<32x4xf32>
    %145 = arith.addf %144, %143 : vector<32x4xf32>
    %146 = arith.subf %134, %145 : vector<32x4xf32>
    %147 = arith.mulf %110, %146 : vector<32x4xf32>
    %148 = arith.addf %107, %147 : vector<32x4xf32>
    %149 = arith.addf %108, %110 : vector<32x4xf32>
    %150 = arith.subf %21, %65 : vector<32x4xf32>
    %151 = math.exp %150 : vector<32x4xf32>
    %cst_83 = arith.constant 2.000000e+01 : f32
    %152 = vector.broadcast %cst_83 : f32 to vector<32x4xf32>
    %153 = arith.cmpf ogt, %63, %152 : vector<32x4xf32>
    %cst_84 = arith.constant 2.000000e+01 : f32
    %154 = vector.broadcast %cst_84 : f32 to vector<32x4xf32>
    %155 = arith.minimumf %63, %154 : vector<32x4xf32>
    %156 = math.exp %155 : vector<32x4xf32>
    %cst_85 = arith.constant 1.000000e+00 : f32
    %157 = vector.broadcast %cst_85 : f32 to vector<32x4xf32>
    %158 = arith.addf %157, %156 : vector<32x4xf32>
    %159 = math.log %158 : vector<32x4xf32>
    %160 = arith.select %153, %63, %159 : vector<32x4xi1>, vector<32x4xf32>
    %cst_86 = arith.constant 9.99999997E-7 : f32
    %161 = vector.broadcast %cst_86 : f32 to vector<32x4xf32>
    %162 = arith.addf %160, %161 : vector<32x4xf32>
    %cst_87 = arith.constant 1.000000e+00 : f32
    %163 = vector.broadcast %cst_87 : f32 to vector<32x4xf32>
    %164 = arith.divf %163, %162 : vector<32x4xf32>
    %cst_88 = arith.constant 5.000000e-01 : f32
    %165 = vector.broadcast %cst_88 : f32 to vector<32x4xf32>
    %166 = arith.addf %0, %165 : vector<32x4xf32>
    %167 = arith.subf %166, %42 : vector<32x4xf32>
    %168 = arith.mulf %167, %164 : vector<32x4xf32>
    %cst_89 = arith.constant 5.000000e-01 : f32
    %169 = vector.broadcast %cst_89 : f32 to vector<32x4xf32>
    %170 = arith.mulf %169, %168 : vector<32x4xf32>
    %171 = math.tanh %170 : vector<32x4xf32>
    %cst_90 = arith.constant 5.000000e-01 : f32
    %172 = vector.broadcast %cst_90 : f32 to vector<32x4xf32>
    %173 = arith.mulf %172, %171 : vector<32x4xf32>
    %cst_91 = arith.constant 5.000000e-01 : f32
    %174 = vector.broadcast %cst_91 : f32 to vector<32x4xf32>
    %175 = arith.addf %174, %173 : vector<32x4xf32>
    %cst_92 = arith.constant 5.000000e-01 : f32
    %176 = vector.broadcast %cst_92 : f32 to vector<32x4xf32>
    %177 = arith.subf %0, %176 : vector<32x4xf32>
    %178 = arith.subf %177, %42 : vector<32x4xf32>
    %179 = arith.mulf %178, %164 : vector<32x4xf32>
    %cst_93 = arith.constant 5.000000e-01 : f32
    %180 = vector.broadcast %cst_93 : f32 to vector<32x4xf32>
    %181 = arith.mulf %180, %179 : vector<32x4xf32>
    %182 = math.tanh %181 : vector<32x4xf32>
    %cst_94 = arith.constant 5.000000e-01 : f32
    %183 = vector.broadcast %cst_94 : f32 to vector<32x4xf32>
    %184 = arith.mulf %183, %182 : vector<32x4xf32>
    %cst_95 = arith.constant 5.000000e-01 : f32
    %185 = vector.broadcast %cst_95 : f32 to vector<32x4xf32>
    %186 = arith.addf %185, %184 : vector<32x4xf32>
    %187 = arith.subf %175, %186 : vector<32x4xf32>
    %188 = arith.mulf %151, %187 : vector<32x4xf32>
    %189 = arith.addf %148, %188 : vector<32x4xf32>
    %190 = arith.addf %149, %151 : vector<32x4xf32>
    %191 = arith.divf %189, %190 : vector<32x4xf32>
    %cst_96 = arith.constant 9.99999971E-10 : f32
    %cst_97 = arith.constant 1.000000e+00 : f32
    %192 = vector.broadcast %cst_96 : f32 to vector<32x4xf32>
    %193 = arith.maximumf %192, %191 : vector<32x4xf32>
    %194 = vector.broadcast %cst_97 : f32 to vector<32x4xf32>
    %195 = arith.minimumf %194, %193 : vector<32x4xf32>
    %196 = math.log %195 : vector<32x4xf32>
    %cst_98 = arith.constant 0.000000e+00 : f32
    %197 = vector.broadcast %cst_98 : f32 to vector<32x4xf32>
    %198 = arith.subf %197, %196 : vector<32x4xf32>
    %cst_99 = arith.constant 2.000000e+00 : f32
    %199 = math.log %cst_99 : f32
    %cst_100 = arith.constant 1.000000e+00 : f32
    %200 = arith.divf %cst_100, %199 : f32
    %201 = vector.broadcast %200 : f32 to vector<32x4xf32>
    %202 = arith.mulf %198, %201 : vector<32x4xf32>
    %203 = vector.shape_cast %202 : vector<32x4xf32> to vector<1x32x4xf32>
    %cst_101 = arith.constant dense<0.000000e+00> : vector<1xf32>
    %204 = vector.multi_reduction <add>, %203, %cst_101 [1, 2] : vector<1x32x4xf32> to vector<1xf32>
    %205 = vector.shape_cast %204 : vector<1xf32> to vector<1x1x1xf32>
    %206 = vector.extract %205[0, 0, 0] : f32 from vector<1x1x1xf32>
    %207 = arith.index_cast %arg0 : i32 to index
    %208 = memref.load %arg4[%207] : memref<1xf32, #tpu.memory_space<smem>>
    memref.store %206, %arg4[%207] : memref<1xf32, #tpu.memory_space<smem>>
    return
  }
  func.func @transform_0(%arg0: i32) -> (i32, i32) {
    %c0_i32 = arith.constant 0 : i32
    %c0_i32_0 = arith.constant 0 : i32
    return %arg0, %c0_i32 : i32, i32
  }
  func.func @transform_1(%arg0: i32) -> (i32, i32, i32) {
    %c0_i32 = arith.constant 0 : i32
    %c0_i32_0 = arith.constant 0 : i32
    %c0_i32_1 = arith.constant 0 : i32
    %c0_i32_2 = arith.constant 0 : i32
    return %c0_i32, %c0_i32_0, %c0_i32_1 : i32, i32, i32
  }
  func.func @transform_2(%arg0: i32) -> (i32, i32, i32) {
    %c0_i32 = arith.constant 0 : i32
    %c0_i32_0 = arith.constant 0 : i32
    %c0_i32_1 = arith.constant 0 : i32
    %c0_i32_2 = arith.constant 0 : i32
    return %c0_i32, %c0_i32_0, %c0_i32_1 : i32, i32, i32
  }
  func.func @transform_3(%arg0: i32) -> i32 {
    %c0_i32 = arith.constant 0 : i32
    %c0_i32_0 = arith.constant 0 : i32
    return %c0_i32 : i32
  }
}

</mosaic_0001>

<llo_original>
// kernel: comp_model_forward.5
$region0: #{comp_model_forward.5}
  #allocation0 [shape = 'u32[]', space=smem, size = 0x4, offset = 0x4, fixed_abs, tag = 'smem constant byte address 0x4 - core index']
  #allocation1 [shape = 'u32[144,128]{1,0:T(1,128)}', space=vmem, size = 0x12000, scoped, tag = 'internal scratch']
  #allocation2 [shape = 'f32[128,8]{1,0:T(8,128)}', space=vmem, size = 0x10000, scoped, tag = 'scratch operand']
  %s0 = inlined_call_operand.vmem [shape: bf16[128,48], index: 0, kind: input, shape index: {}]
  %s1 = inlined_call_operand.vmem [shape: bf16[48,8], index: 1, kind: input, shape index: {}]
  %s2 = inlined_call_operand.vmem [shape: f32[1,8], index: 2, kind: input, shape index: {}]
  %s3 = inlined_call_operand.vmem [shape: bf16[128,8], index: 3, kind: output, shape index: {}]
  %s4 = sld [smem:[#allocation0]]
  $region30: #{comp_model_forward.5} parent=0
    _
  %s6 = ssub.s32 1, %s4
  %s7 = scalar_select 0, %s6, %s4
  // Predicated region
  $region2: #{comp_model_forward.5} parent=0 // pred_check
    _
  $region3: #{comp_model_forward.5} parent=0 // pred_check_branch
    %9 = sbr.rel (0) target = $region5
  $region4: #{comp_model_forward.5} parent=0 // pred_region
    _
  $region5: #{comp_model_forward.5} parent=0 // pred_fallthru
    _
  // Predicated region
  $region6: #{comp_model_forward.5} parent=0 // pred_check
    _
  $region7: #{comp_model_forward.5} parent=0 // pred_check_branch
    %11 = sbr.rel (0) target = $region9
  $region8: #{comp_model_forward.5} parent=0 // pred_region
    _
  $region9: #{comp_model_forward.5} parent=0 // pred_fallthru
    _
  // Predicated region
  $region10: #{comp_model_forward.5} parent=0 // pred_check
    _
  $region11: #{comp_model_forward.5} parent=0 // pred_check_branch
    %13 = sbr.rel (0) target = $region13
  $region12: #{comp_model_forward.5} parent=0 // pred_region
    _
  $region13: #{comp_model_forward.5} parent=0 // pred_fallthru
    _
  %p15 = scmp.eq.s32.totalorder 0, 0
  // Predicated region
  $region14: #{comp_model_forward.5} parent=0 // pred_check
    %p16 = pneg %p15
  $region15: #{comp_model_forward.5} parent=0 // pred_check_branch
    %18 = sbr.rel (%p16) target = $region17
  $region16: #{comp_model_forward.5} parent=0 // pred_region
    %vm19 = vcmask 64512
    %20 = vst.msk [vmem:[#allocation2] sm:$0xff] %vm19, 0.0
    %21 = vst.msk [vmem:[#allocation2 + $0x8] sm:$0xff] %vm19, 0.0
    %22 = vst.msk [vmem:[#allocation2 + $0x10] sm:$0xff] %vm19, 0.0
    %23 = vst.msk [vmem:[#allocation2 + $0x18] sm:$0xff] %vm19, 0.0
    %24 = vst.msk [vmem:[#allocation2 + $0x20] sm:$0xff] %vm19, 0.0
    %25 = vst.msk [vmem:[#allocation2 + $0x28] sm:$0xff] %vm19, 0.0
    %26 = vst.msk [vmem:[#allocation2 + $0x30] sm:$0xff] %vm19, 0.0
    %27 = vst.msk [vmem:[#allocation2 + $0x38] sm:$0xff] %vm19, 0.0
    %28 = vst.msk [vmem:[#allocation2 + $0x40] sm:$0xff] %vm19, 0.0
    %29 = vst.msk [vmem:[#allocation2 + $0x48] sm:$0xff] %vm19, 0.0
    %30 = vst.msk [vmem:[#allocation2 + $0x50] sm:$0xff] %vm19, 0.0
    %31 = vst.msk [vmem:[#allocation2 + $0x58] sm:$0xff] %vm19, 0.0
    %32 = vst.msk [vmem:[#allocation2 + $0x60] sm:$0xff] %vm19, 0.0
    %33 = vst.msk [vmem:[#allocation2 + $0x68] sm:$0xff] %vm19, 0.0
    %34 = vst.msk [vmem:[#allocation2 + $0x70] sm:$0xff] %vm19, 0.0
    %35 = vst.msk [vmem:[#allocation2 + $0x78] sm:$0xff] %vm19, 0.0
  $region17: #{comp_model_forward.5} parent=0 // pred_fallthru
    _
  %v36 = vld [vmem:[#allocation2] sm:$0xff]
  %v37 = vld [vmem:[#allocation2 + $0x8] sm:$0xff]
  %v38 = vld [vmem:[#allocation2 + $0x10] sm:$0xff]
  %v39 = vld [vmem:[#allocation2 + $0x18] sm:$0xff]
  %v40 = vld [vmem:[#allocation2 + $0x20] sm:$0xff]
  %v41 = vld [vmem:[#allocation2 + $0x28] sm:$0xff]
  %v42 = vld [vmem:[#allocation2 + $0x30] sm:$0xff]
  %v43 = vld [vmem:[#allocation2 + $0x38] sm:$0xff]
  %v44 = vld [vmem:[#allocation2 + $0x40] sm:$0xff]
  %v45 = vld [vmem:[#allocation2 + $0x48] sm:$0xff]
  %v46 = vld [vmem:[#allocation2 + $0x50] sm:$0xff]
  %v47 = vld [vmem:[#allocation2 + $0x58] sm:$0xff]
  %v48 = vld [vmem:[#allocation2 + $0x60] sm:$0xff]
  %v49 = vld [vmem:[#allocation2 + $0x68] sm:$0xff]
  %v50 = vld [vmem:[#allocation2 + $0x70] sm:$0xff]
  %v51 = vld [vmem:[#allocation2 + $0x78] sm:$0xff]
  %v52 = vld [vmem:[%s0] sm:$0xf]
  %v53 = vld [vmem:[%s0 + $0x4] sm:$0xf]
  %v54 = vld [vmem:[%s0 + $0x8] sm:$0xf]
  %v55 = vld [vmem:[%s0 + $0xc] sm:$0xf]
  %v56 = vld [vmem:[%s0 + $0x10] sm:$0xf]
  %v57 = vld [vmem:[%s0 + $0x14] sm:$0xf]
  %v58 = vld [vmem:[%s0 + $0x18] sm:$0xf]
  %v59 = vld [vmem:[%s0 + $0x1c] sm:$0xf]
  %v60 = vld [vmem:[%s0 + $0x20] sm:$0xf]
  %v61 = vld [vmem:[%s0 + $0x24] sm:$0xf]
  %v62 = vld [vmem:[%s0 + $0x28] sm:$0xf]
  %v63 = vld [vmem:[%s0 + $0x2c] sm:$0xf]
  %v64 = vld [vmem:[%s0 + $0x30] sm:$0xf]
  %v65 = vld [vmem:[%s0 + $0x34] sm:$0xf]
  %v66 = vld [vmem:[%s0 + $0x38] sm:$0xf]
  %v67 = vld [vmem:[%s0 + $0x3c] sm:$0xf]
  %v68 = vld [vmem:[%s1] sm:$0xf]
  %v69 = vld [vmem:[%s1 + $0x4] sm:$0xf]
  %v70 = vld [vmem:[%s1 + $0x8] sm:$0xf]
  %v71 = vld [vmem:[%s1 + $0xc] sm:$0xf]
  %v72 = vld [vmem:[%s1 + $0x10] sm:$0xf]
  %v73 = vld [vmem:[%s1 + $0x14] sm:$0xf]
  %v90 = vunpack.c.l.b16 %v52
  %v91 = vunpack.c.l.b16 %v53
  %v92 = vunpack.c.l.b16 %v54
  %v93 = vunpack.c.l.b16 %v55
  %v94 = vunpack.c.l.b16 %v56
  %v95 = vunpack.c.l.b16 %v57
  %v96 = vunpack.c.l.b16 %v58
  %v97 = vunpack.c.l.b16 %v59
  %v98 = vunpack.c.l.b16 %v60
  %v99 = vunpack.c.l.b16 %v61
  %v100 = vunpack.c.l.b16 %v62
  %v101 = vunpack.c.l.b16 %v63
  %v102 = vunpack.c.l.b16 %v64
  %v103 = vunpack.c.l.b16 %v65
  %v104 = vunpack.c.l.b16 %v66
  %v105 = vunpack.c.l.b16 %v67
  %v106 = vpack.c.b16 %v91, %v90
  %v107 = vpack.c.b16 %v93, %v92
  %v108 = vpack.c.b16 %v95, %v94
  %v109 = vpack.c.b16 %v97, %v96
  %v110 = vpack.c.b16 %v99, %v98
  %v111 = vpack.c.b16 %v101, %v100
  %v112 = vpack.c.b16 %v103, %v102
  %v113 = vpack.c.b16 %v105, %v104
  %v120 = vunpack.c.l.b16 %v68
  %v121 = vunpack.c.l.b16 %v69
  %v122 = vunpack.c.l.b16 %v70
  %v123 = vunpack.c.l.b16 %v71
  %v124 = vunpack.c.l.b16 %v72
  %v125 = vunpack.c.l.b16 %v73
  %v126 = vpack.c.b16 %v121, %v120
  %v127 = vpack.c.b16 %v123, %v122
  %v128 = vpack.c.b16 %v125, %v124
  %vm132 = vcmask 392192
  %v134 = vsel %vm132, %v106, 0
  %v137 = vsel %vm132, %v107, 0
  %v140 = vsel %vm132, %v108, 0
  %v143 = vsel %vm132, %v109, 0
  %v146 = vsel %vm132, %v110, 0
  %v149 = vsel %vm132, %v111, 0
  %v152 = vsel %vm132, %v112, 0
  %v155 = vsel %vm132, %v113, 0
  %157 = vmatprep.subr.bf16.mxu0 0
  %158 = vmatpush1.bf16.msra.mxu0 0
  %159 = vmatprep.subr.bf16.mxu0 0
  %160 = vmatpush1.bf16.msra.mxu0 0
  %161 = vmatprep.subr.bf16.mxu0 0
  %162 = vmatpush1.bf16.msra.mxu0 0
  %163 = vmatprep.subr.bf16.mxu0 0
  %164 = vmatpush1.bf16.msra.mxu0 0
  %165 = vmatprep.subr.bf16.mxu0 0
  %166 = vmatpush1.bf16.msra.mxu0 0
  %167 = vmatprep.subr.bf16.mxu0 0
  %168 = vmatpush1.bf16.msra.mxu0 %v128
  %169 = vmatprep.subr.bf16.mxu0 0
  %170 = vmatpush1.bf16.msra.mxu0 %v127
  %171 = vmatprep.subr.bf16.mxu0 0
  %172 = vmatpush1.bf16.msra.mxu0 %v126
  %173 = vmatprep.subr.bf16.mxu0 0
  %174 = vmatpush2.bf16.msra.mxu0 0
  %175 = vmatprep.subr.bf16.mxu0 0
  %176 = vmatpush2.bf16.msra.mxu0 0
  %177 = vmatprep.subr.bf16.mxu0 0
  %178 = vmatpush2.bf16.msra.mxu0 0
  %179 = vmatprep.subr.bf16.mxu0 0
  %180 = vmatpush2.bf16.msra.mxu0 0
  %181 = vmatprep.subr.bf16.mxu0 0
  %182 = vmatpush2.bf16.msra.mxu0 0
  %183 = vmatprep.subr.bf16.mxu0 0
  %184 = vmatpush2.bf16.msra.mxu0 0
  %185 = vmatprep.subr.bf16.mxu0 0
  %186 = vmatpush2.bf16.msra.mxu0 0
  %187 = vmatprep.subr.bf16.mxu0 0
  %188 = vmatpush2.bf16.msra.mxu0 0
  %189 = vmatprep.mubr.bf16.mxu0 0
  %190 = vmatmul.mubr.bf16.gmra.mxu0 %v134
  %v191 = vpop.f32.mrf.mxu0
  %v192 = vadd.f32 0.0, %v191
  %v193 = vpop.f32.mrf.mxu0
  %v194 = vpop.f32.mrf.mxu0
  %v195 = vadd.f32 0.0, %v194
  %v196 = vpop.f32.mrf.mxu0
  %197 = vmatprep.mubr.bf16.mxu0 0
  %198 = vmatmul.mubr.bf16.gmra.mxu0 %v137
  %v199 = vpop.f32.mrf.mxu0
  %v200 = vadd.f32 0.0, %v199
  %v201 = vpop.f32.mrf.mxu0
  %v202 = vpop.f32.mrf.mxu0
  %v203 = vadd.f32 0.0, %v202
  %v204 = vpop.f32.mrf.mxu0
  %205 = vmatprep.mubr.bf16.mxu0 0
  %206 = vmatmul.mubr.bf16.gmra.mxu0 %v140
  %v207 = vpop.f32.mrf.mxu0
  %v208 = vadd.f32 0.0, %v207
  %v209 = vpop.f32.mrf.mxu0
  %v210 = vpop.f32.mrf.mxu0
  %v211 = vadd.f32 0.0, %v210
  %v212 = vpop.f32.mrf.mxu0
  %213 = vmatprep.mubr.bf16.mxu0 0
  %214 = vmatmul.mubr.bf16.gmra.mxu0 %v143
  %v215 = vpop.f32.mrf.mxu0
  %v216 = vadd.f32 0.0, %v215
  %v217 = vpop.f32.mrf.mxu0
  %v218 = vpop.f32.mrf.mxu0
  %v219 = vadd.f32 0.0, %v218
  %v220 = vpop.f32.mrf.mxu0
  %221 = vmatprep.mubr.bf16.mxu0 0
  %222 = vmatmul.mubr.bf16.gmra.mxu0 %v146
  %v223 = vpop.f32.mrf.mxu0
  %v224 = vadd.f32 0.0, %v223
  %v225 = vpop.f32.mrf.mxu0
  %v226 = vpop.f32.mrf.mxu0
  %v227 = vadd.f32 0.0, %v226
  %v228 = vpop.f32.mrf.mxu0
  %229 = vmatprep.mubr.bf16.mxu0 0
  %230 = vmatmul.mubr.bf16.gmra.mxu0 %v149
  %v231 = vpop.f32.mrf.mxu0
  %v232 = vadd.f32 0.0, %v231
  %v233 = vpop.f32.mrf.mxu0
  %v234 = vpop.f32.mrf.mxu0
  %v235 = vadd.f32 0.0, %v234
  %v236 = vpop.f32.mrf.mxu0
  %237 = vmatprep.mubr.bf16.mxu0 0
  %238 = vmatmul.mubr.bf16.gmra.mxu0 %v152
  %v239 = vpop.f32.mrf.mxu0
  %v240 = vadd.f32 0.0, %v239
  %v241 = vpop.f32.mrf.mxu0
  %v242 = vpop.f32.mrf.mxu0
  %v243 = vadd.f32 0.0, %v242
  %v244 = vpop.f32.mrf.mxu0
  %245 = vmatprep.mubr.bf16.mxu0 0
  %246 = vmatmul.mubr.bf16.gmra.mxu0 %v155
  %v247 = vpop.f32.mrf.mxu0
  %v248 = vadd.f32 0.0, %v247
  %v249 = vpop.f32.mrf.mxu0
  %v250 = vpop.f32.mrf.mxu0
  %v251 = vadd.f32 0.0, %v250
  %v252 = vpop.f32.mrf.mxu0
  %253 = vdwg.mxu0
  %v254 = vadd.f32 %v36, %v192
  %v255 = vadd.f32 %v37, %v195
  %v256 = vadd.f32 %v38, %v200
  %v257 = vadd.f32 %v39, %v203
  %v258 = vadd.f32 %v40, %v208
  %v259 = vadd.f32 %v41, %v211
  %v260 = vadd.f32 %v42, %v216
  %v261 = vadd.f32 %v43, %v219
  %v262 = vadd.f32 %v44, %v224
  %v263 = vadd.f32 %v45, %v227
  %v264 = vadd.f32 %v46, %v232
  %v265 = vadd.f32 %v47, %v235
  %v266 = vadd.f32 %v48, %v240
  %v267 = vadd.f32 %v49, %v243
  %v268 = vadd.f32 %v50, %v248
  %v269 = vadd.f32 %v51, %v251
  %vm270 = vcmask 64512
  %271 = vst.msk [vmem:[#allocation2] sm:$0xff] %vm270, %v254
  %272 = vst.msk [vmem:[#allocation2 + $0x8] sm:$0xff] %vm270, %v255
  %273 = vst.msk [vmem:[#allocation2 + $0x10] sm:$0xff] %vm270, %v256
  %274 = vst.msk [vmem:[#allocation2 + $0x18] sm:$0xff] %vm270, %v257
  %275 = vst.msk [vmem:[#allocation2 + $0x20] sm:$0xff] %vm270, %v258
  %276 = vst.msk [vmem:[#allocation2 + $0x28] sm:$0xff] %vm270, %v259
  %277 = vst.msk [vmem:[#allocation2 + $0x30] sm:$0xff] %vm270, %v260
  %278 = vst.msk [vmem:[#allocation2 + $0x38] sm:$0xff] %vm270, %v261
  %279 = vst.msk [vmem:[#allocation2 + $0x40] sm:$0xff] %vm270, %v262
  %280 = vst.msk [vmem:[#allocation2 + $0x48] sm:$0xff] %vm270, %v263
  %281 = vst.msk [vmem:[#allocation2 + $0x50] sm:$0xff] %vm270, %v264
  %282 = vst.msk [vmem:[#allocation2 + $0x58] sm:$0xff] %vm270, %v265
  %283 = vst.msk [vmem:[#allocation2 + $0x60] sm:$0xff] %vm270, %v266
  %284 = vst.msk [vmem:[#allocation2 + $0x68] sm:$0xff] %vm270, %v267
  %285 = vst.msk [vmem:[#allocation2 + $0x70] sm:$0xff] %vm270, %v268
  %286 = vst.msk [vmem:[#allocation2 + $0x78] sm:$0xff] %vm270, %v269
  // Predicated region
  $region18: #{comp_model_forward.5} parent=0 // pred_check
    %p287 = pneg %p15
  $region19: #{comp_model_forward.5} parent=0 // pred_check_branch
    %289 = sbr.rel (%p287) target = $region21
  $region20: #{comp_model_forward.5} parent=0 // pred_region
    %v290 = vld [vmem:[#allocation2] sm:$0xff]
    %v291 = vld [vmem:[#allocation2 + $0x8] sm:$0xff]
    %v292 = vld [vmem:[#allocation2 + $0x10] sm:$0xff]
    %v293 = vld [vmem:[#allocation2 + $0x18] sm:$0xff]
    %v294 = vld [vmem:[#allocation2 + $0x20] sm:$0xff]
    %v295 = vld [vmem:[#allocation2 + $0x28] sm:$0xff]
    %v296 = vld [vmem:[#allocation2 + $0x30] sm:$0xff]
    %v297 = vld [vmem:[#allocation2 + $0x38] sm:$0xff]
    %v298 = vld [vmem:[#allocation2 + $0x40] sm:$0xff]
    %v299 = vld [vmem:[#allocation2 + $0x48] sm:$0xff]
    %v300 = vld [vmem:[#allocation2 + $0x50] sm:$0xff]
    %v301 = vld [vmem:[#allocation2 + $0x58] sm:$0xff]
    %v302 = vld [vmem:[#allocation2 + $0x60] sm:$0xff]
    %v303 = vld [vmem:[#allocation2 + $0x68] sm:$0xff]
    %v304 = vld [vmem:[#allocation2 + $0x70] sm:$0xff]
    %v305 = vld [vmem:[#allocation2 + $0x78] sm:$0xff]
    %v306 = vld [vmem:[%s2] sm:$0x1]
    %v308 = vlaneseq
    %v309 = vshrl.u32 %v308, 7
    %v310 = vsub.s32 0, %v309
    %v311 = vrot.slane %v306, %v310
    %v313 = vadd.f32 %v290, %v311
    %v314 = vadd.f32 %v291, %v311
    %v315 = vadd.f32 %v292, %v311
    %v316 = vadd.f32 %v293, %v311
    %v317 = vadd.f32 %v294, %v311
    %v318 = vadd.f32 %v295, %v311
    %v319 = vadd.f32 %v296, %v311
    %v320 = vadd.f32 %v297, %v311
    %v321 = vadd.f32 %v298, %v311
    %v322 = vadd.f32 %v299, %v311
    %v323 = vadd.f32 %v300, %v311
    %v324 = vadd.f32 %v301, %v311
    %v325 = vadd.f32 %v302, %v311
    %v326 = vadd.f32 %v303, %v311
    %v327 = vadd.f32 %v304, %v311
    %v328 = vadd.f32 %v305, %v311
    %v329 = vmax.f32 %v313, 0.0
    %v330 = vmax.f32 %v314, 0.0
    %v331 = vmax.f32 %v315, 0.0
    %v332 = vmax.f32 %v316, 0.0
    %v333 = vmax.f32 %v317, 0.0
    %v334 = vmax.f32 %v318, 0.0
    %v335 = vmax.f32 %v319, 0.0
    %v336 = vmax.f32 %v320, 0.0
    %v337 = vmax.f32 %v321, 0.0
    %v338 = vmax.f32 %v322, 0.0
    %v339 = vmax.f32 %v323, 0.0
    %v340 = vmax.f32 %v324, 0.0
    %v341 = vmax.f32 %v325, 0.0
    %v342 = vmax.f32 %v326, 0.0
    %v343 = vmax.f32 %v327, 0.0
    %v344 = vmax.f32 %v328, 0.0
    %v345 = vpack.c.bf16 %v330, %v329
    %v346 = vpack.c.bf16 %v332, %v331
    %v347 = vpack.c.bf16 %v334, %v333
    %v348 = vpack.c.bf16 %v336, %v335
    %v349 = vpack.c.bf16 %v338, %v337
    %v350 = vpack.c.bf16 %v340, %v339
    %v351 = vpack.c.bf16 %v342, %v341
    %v352 = vpack.c.bf16 %v344, %v343
    %v361 = vunpack.c.l.b16 %v345
    %v362 = vunpack.c.h.b16 %v345
    %v363 = vunpack.c.l.b16 %v346
    %v364 = vunpack.c.h.b16 %v346
    %v365 = vunpack.c.l.b16 %v347
    %v366 = vunpack.c.h.b16 %v347
    %v367 = vunpack.c.l.b16 %v348
    %v368 = vunpack.c.h.b16 %v348
    %v369 = vunpack.c.l.b16 %v349
    %v370 = vunpack.c.h.b16 %v349
    %v371 = vunpack.c.l.b16 %v350
    %v372 = vunpack.c.h.b16 %v350
    %v373 = vunpack.c.l.b16 %v351
    %v374 = vunpack.c.h.b16 %v351
    %v375 = vunpack.c.l.b16 %v352
    %v376 = vunpack.c.h.b16 %v352
    %v377 = vpack.c.b16 %v361, %v361
    %v378 = vpack.c.b16 %v362, %v362
    %v379 = vpack.c.b16 %v363, %v363
    %v380 = vpack.c.b16 %v364, %v364
    %v381 = vpack.c.b16 %v365, %v365
    %v382 = vpack.c.b16 %v366, %v366
    %v383 = vpack.c.b16 %v367, %v367
    %v384 = vpack.c.b16 %v368, %v368
    %v385 = vpack.c.b16 %v369, %v369
    %v386 = vpack.c.b16 %v370, %v370
    %v387 = vpack.c.b16 %v371, %v371
    %v388 = vpack.c.b16 %v372, %v372
    %v389 = vpack.c.b16 %v373, %v373
    %v390 = vpack.c.b16 %v374, %v374
    %v391 = vpack.c.b16 %v375, %v375
    %v392 = vpack.c.b16 %v376, %v376
    %vm409 = vcmask 60416
    %410 = vst.msk [vmem:[%s3] sm:$0xf] %vm409, %v377
    %411 = vst.msk [vmem:[%s3 + $0x4] sm:$0xf] %vm409, %v378
    %412 = vst.msk [vmem:[%s3 + $0x8] sm:$0xf] %vm409, %v379
    %413 = vst.msk [vmem:[%s3 + $0xc] sm:$0xf] %vm409, %v380
    %414 = vst.msk [vmem:[%s3 + $0x10] sm:$0xf] %vm409, %v381
    %415 = vst.msk [vmem:[%s3 + $0x14] sm:$0xf] %vm409, %v382
    %416 = vst.msk [vmem:[%s3 + $0x18] sm:$0xf] %vm409, %v383
    %417 = vst.msk [vmem:[%s3 + $0x1c] sm:$0xf] %vm409, %v384
    %418 = vst.msk [vmem:[%s3 + $0x20] sm:$0xf] %vm409, %v385
    %419 = vst.msk [vmem:[%s3 + $0x24] sm:$0xf] %vm409, %v386
    %420 = vst.msk [vmem:[%s3 + $0x28] sm:$0xf] %vm409, %v387
    %421 = vst.msk [vmem:[%s3 + $0x2c] sm:$0xf] %vm409, %v388
    %422 = vst.msk [vmem:[%s3 + $0x30] sm:$0xf] %vm409, %v389
    %423 = vst.msk [vmem:[%s3 + $0x34] sm:$0xf] %vm409, %v390
    %424 = vst.msk [vmem:[%s3 + $0x38] sm:$0xf] %vm409, %v391
    %425 = vst.msk [vmem:[%s3 + $0x3c] sm:$0xf] %vm409, %v392
  $region21: #{comp_model_forward.5} parent=0 // pred_fallthru
    _
  // Predicated region
  $region22: #{comp_model_forward.5} parent=0 // pred_check
    _
  $region23: #{comp_model_forward.5} parent=0 // pred_check_branch
    %427 = sbr.rel (0) target = $region25
  $region24: #{comp_model_forward.5} parent=0 // pred_region
    _
  $region25: #{comp_model_forward.5} parent=0 // pred_fallthru
    _
  // Predicated region
  $region26: #{comp_model_forward.5} parent=0 // pred_check
    _
  $region27: #{comp_model_forward.5} parent=0 // pred_check_branch
    %429 = sbr.rel (0) target = $region29
  $region28: #{comp_model_forward.5} parent=0 // pred_region
    _
  $region29: #{comp_model_forward.5} parent=0 // pred_fallthru
    _

// kernel: comp_model_forward.6
$region0: #{comp_model_forward.6}
  #allocation0 [shape = 'u32[]', space=smem, size = 0x4, offset = 0x4, fixed_abs, tag = 'smem constant byte address 0x4 - core index']
  #allocation1 [shape = 'u32[144,128]{1,0:T(1,128)}', space=vmem, size = 0x12000, scoped, tag = 'internal scratch']
  #allocation2 [shape = 'f32[32,4]{1,0:T(8,128)}', space=vmem, size = 0x4000, scoped, tag = 'scratch operand']
  %s0 = inlined_call_operand.vmem [shape: bf16[32,128], index: 0, kind: input, shape index: {}]
  %s1 = inlined_call_operand.vmem [shape: bf16[128,4], index: 1, kind: input, shape index: {}]
  %s2 = inlined_call_operand.vmem [shape: f32[1,4], index: 2, kind: input, shape index: {}]
  %s3 = inlined_call_operand.vmem [shape: f32[32,4], index: 3, kind: output, shape index: {}]
  %s4 = sld [smem:[#allocation0]]
  $region30: #{comp_model_forward.6} parent=0
    _
  %s6 = ssub.s32 1, %s4
  %s7 = scalar_select 0, %s6, %s4
  // Predicated region
  $region2: #{comp_model_forward.6} parent=0 // pred_check
    _
  $region3: #{comp_model_forward.6} parent=0 // pred_check_branch
    %9 = sbr.rel (0) target = $region5
  $region4: #{comp_model_forward.6} parent=0 // pred_region
    _
  $region5: #{comp_model_forward.6} parent=0 // pred_fallthru
    _
  // Predicated region
  $region6: #{comp_model_forward.6} parent=0 // pred_check
    _
  $region7: #{comp_model_forward.6} parent=0 // pred_check_branch
    %11 = sbr.rel (0) target = $region9
  $region8: #{comp_model_forward.6} parent=0 // pred_region
    _
  $region9: #{comp_model_forward.6} parent=0 // pred_fallthru
    _
  // Predicated region
  $region10: #{comp_model_forward.6} parent=0 // pred_check
    _
  $region11: #{comp_model_forward.6} parent=0 // pred_check_branch
    %13 = sbr.rel (0) target = $region13
  $region12: #{comp_model_forward.6} parent=0 // pred_region
    _
  $region13: #{comp_model_forward.6} parent=0 // pred_fallthru
    _
  %p15 = scmp.eq.s32.totalorder 0, 0
  // Predicated region
  $region14: #{comp_model_forward.6} parent=0 // pred_check
    %p16 = pneg %p15
  $region15: #{comp_model_forward.6} parent=0 // pred_check_branch
    %18 = sbr.rel (%p16) target = $region17
  $region16: #{comp_model_forward.6} parent=0 // pred_region
    %vm19 = vcmask 31744
    %20 = vst.msk [vmem:[#allocation2] sm:$0xff] %vm19, 0.0
    %21 = vst.msk [vmem:[#allocation2 + $0x8] sm:$0xff] %vm19, 0.0
    %22 = vst.msk [vmem:[#allocation2 + $0x10] sm:$0xff] %vm19, 0.0
    %23 = vst.msk [vmem:[#allocation2 + $0x18] sm:$0xff] %vm19, 0.0
  $region17: #{comp_model_forward.6} parent=0 // pred_fallthru
    _
  %v24 = vld [vmem:[#allocation2] sm:$0xff]
  %v25 = vld [vmem:[#allocation2 + $0x8] sm:$0xff]
  %v26 = vld [vmem:[#allocation2 + $0x10] sm:$0xff]
  %v27 = vld [vmem:[#allocation2 + $0x18] sm:$0xff]
  %v28 = vld [vmem:[%s0] sm:$0xf]
  %v29 = vld [vmem:[%s0 + $0x4] sm:$0xf]
  %v30 = vld [vmem:[%s0 + $0x8] sm:$0xf]
  %v31 = vld [vmem:[%s0 + $0xc] sm:$0xf]
  %v32 = vld [vmem:[%s1] sm:$0xf]
  %v33 = vld [vmem:[%s1 + $0x4] sm:$0xf]
  %v34 = vld [vmem:[%s1 + $0x8] sm:$0xf]
  %v35 = vld [vmem:[%s1 + $0xc] sm:$0xf]
  %v36 = vld [vmem:[%s1 + $0x10] sm:$0xf]
  %v37 = vld [vmem:[%s1 + $0x14] sm:$0xf]
  %v38 = vld [vmem:[%s1 + $0x18] sm:$0xf]
  %v39 = vld [vmem:[%s1 + $0x1c] sm:$0xf]
  %v40 = vld [vmem:[%s1 + $0x20] sm:$0xf]
  %v41 = vld [vmem:[%s1 + $0x24] sm:$0xf]
  %v42 = vld [vmem:[%s1 + $0x28] sm:$0xf]
  %v43 = vld [vmem:[%s1 + $0x2c] sm:$0xf]
  %v44 = vld [vmem:[%s1 + $0x30] sm:$0xf]
  %v45 = vld [vmem:[%s1 + $0x34] sm:$0xf]
  %v46 = vld [vmem:[%s1 + $0x38] sm:$0xf]
  %v47 = vld [vmem:[%s1 + $0x3c] sm:$0xf]
  %v52 = vunpack.c.l.b16 %v28
  %v53 = vunpack.c.l.b16 %v29
  %v54 = vunpack.c.l.b16 %v30
  %v55 = vunpack.c.l.b16 %v31
  %v56 = vpack.c.b16 %v53, %v52
  %v57 = vpack.c.b16 %v55, %v54
  %v76 = vunpack.c.l.b16 %v32
  %v77 = vunpack.c.l.b16 %v33
  %v78 = vunpack.c.l.b16 %v34
  %v79 = vunpack.c.l.b16 %v35
  %v80 = vunpack.c.l.b16 %v36
  %v81 = vunpack.c.l.b16 %v37
  %v82 = vunpack.c.l.b16 %v38
  %v83 = vunpack.c.l.b16 %v39
  %v84 = vunpack.c.l.b16 %v40
  %v85 = vunpack.c.l.b16 %v41
  %v86 = vunpack.c.l.b16 %v42
  %v87 = vunpack.c.l.b16 %v43
  %v88 = vunpack.c.l.b16 %v44
  %v89 = vunpack.c.l.b16 %v45
  %v90 = vunpack.c.l.b16 %v46
  %v91 = vunpack.c.l.b16 %v47
  %v92 = vpack.c.b16 %v77, %v76
  %v93 = vpack.c.b16 %v79, %v78
  %v94 = vpack.c.b16 %v81, %v80
  %v95 = vpack.c.b16 %v83, %v82
  %v96 = vpack.c.b16 %v85, %v84
  %v97 = vpack.c.b16 %v87, %v86
  %v98 = vpack.c.b16 %v89, %v88
  %v99 = vpack.c.b16 %v91, %v90
  %108 = vmatprep.subr.bf16.mxu0 0
  %109 = vmatpush1.bf16.msra.mxu0 %v99
  %110 = vmatprep.subr.bf16.mxu0 0
  %111 = vmatpush1.bf16.msra.mxu0 %v98
  %112 = vmatprep.subr.bf16.mxu0 0
  %113 = vmatpush1.bf16.msra.mxu0 %v97
  %114 = vmatprep.subr.bf16.mxu0 0
  %115 = vmatpush1.bf16.msra.mxu0 %v96
  %116 = vmatprep.subr.bf16.mxu0 0
  %117 = vmatpush1.bf16.msra.mxu0 %v95
  %118 = vmatprep.subr.bf16.mxu0 0
  %119 = vmatpush1.bf16.msra.mxu0 %v94
  %120 = vmatprep.subr.bf16.mxu0 0
  %121 = vmatpush1.bf16.msra.mxu0 %v93
  %122 = vmatprep.subr.bf16.mxu0 0
  %123 = vmatpush1.bf16.msra.mxu0 %v92
  %124 = vmatprep.subr.bf16.mxu0 0
  %125 = vmatpush2.bf16.msra.mxu0 0
  %126 = vmatprep.subr.bf16.mxu0 0
  %127 = vmatpush2.bf16.msra.mxu0 0
  %128 = vmatprep.subr.bf16.mxu0 0
  %129 = vmatpush2.bf16.msra.mxu0 0
  %130 = vmatprep.subr.bf16.mxu0 0
  %131 = vmatpush2.bf16.msra.mxu0 0
  %132 = vmatprep.subr.bf16.mxu0 0
  %133 = vmatpush2.bf16.msra.mxu0 0
  %134 = vmatprep.subr.bf16.mxu0 0
  %135 = vmatpush2.bf16.msra.mxu0 0
  %136 = vmatprep.subr.bf16.mxu0 0
  %137 = vmatpush2.bf16.msra.mxu0 0
  %138 = vmatprep.subr.bf16.mxu0 0
  %139 = vmatpush2.bf16.msra.mxu0 0
  %140 = vmatprep.mubr.bf16.mxu0 0
  %141 = vmatmul.mubr.bf16.gmra.mxu0 %v56
  %v142 = vpop.f32.mrf.mxu0
  %v143 = vadd.f32 0.0, %v142
  %v144 = vpop.f32.mrf.mxu0
  %v145 = vpop.f32.mrf.mxu0
  %v146 = vadd.f32 0.0, %v145
  %v147 = vpop.f32.mrf.mxu0
  %148 = vmatprep.mubr.bf16.mxu0 0
  %149 = vmatmul.mubr.bf16.gmra.mxu0 %v57
  %v150 = vpop.f32.mrf.mxu0
  %v151 = vadd.f32 0.0, %v150
  %v152 = vpop.f32.mrf.mxu0
  %v153 = vpop.f32.mrf.mxu0
  %v154 = vadd.f32 0.0, %v153
  %v155 = vpop.f32.mrf.mxu0
  %156 = vdwg.mxu0
  %v157 = vadd.f32 %v24, %v143
  %v158 = vadd.f32 %v25, %v146
  %v159 = vadd.f32 %v26, %v151
  %v160 = vadd.f32 %v27, %v154
  %vm161 = vcmask 31744
  %162 = vst.msk [vmem:[#allocation2] sm:$0xff] %vm161, %v157
  %163 = vst.msk [vmem:[#allocation2 + $0x8] sm:$0xff] %vm161, %v158
  %164 = vst.msk [vmem:[#allocation2 + $0x10] sm:$0xff] %vm161, %v159
  %165 = vst.msk [vmem:[#allocation2 + $0x18] sm:$0xff] %vm161, %v160
  // Predicated region
  $region18: #{comp_model_forward.6} parent=0 // pred_check
    %p166 = pneg %p15
  $region19: #{comp_model_forward.6} parent=0 // pred_check_branch
    %168 = sbr.rel (%p166) target = $region21
  $region20: #{comp_model_forward.6} parent=0 // pred_region
    %v169 = vld [vmem:[#allocation2] sm:$0xff]
    %v170 = vld [vmem:[#allocation2 + $0x8] sm:$0xff]
    %v171 = vld [vmem:[#allocation2 + $0x10] sm:$0xff]
    %v172 = vld [vmem:[#allocation2 + $0x18] sm:$0xff]
    %v173 = vld [vmem:[%s2] sm:$0x1]
    %v175 = vlaneseq
    %v176 = vshrl.u32 %v175, 7
    %v177 = vsub.s32 0, %v176
    %v178 = vrot.slane %v173, %v177
    %v180 = vadd.f32 %v169, %v178
    %v181 = vadd.f32 %v170, %v178
    %v182 = vadd.f32 %v171, %v178
    %v183 = vadd.f32 %v172, %v178
    %184 = vst.msk [vmem:[%s3] sm:$0xff] %vm161, %v180
    %185 = vst.msk [vmem:[%s3 + $0x8] sm:$0xff] %vm161, %v181
    %186 = vst.msk [vmem:[%s3 + $0x10] sm:$0xff] %vm161, %v182
    %187 = vst.msk [vmem:[%s3 + $0x18] sm:$0xff] %vm161, %v183
  $region21: #{comp_model_forward.6} parent=0 // pred_fallthru
    _
  // Predicated region
  $region22: #{comp_model_forward.6} parent=0 // pred_check
    _
  $region23: #{comp_model_forward.6} parent=0 // pred_check_branch
    %189 = sbr.rel (0) target = $region25
  $region24: #{comp_model_forward.6} parent=0 // pred_region
    _
  $region25: #{comp_model_forward.6} parent=0 // pred_fallthru
    _
  // Predicated region
  $region26: #{comp_model_forward.6} parent=0 // pred_check
    _
  $region27: #{comp_model_forward.6} parent=0 // pred_check_branch
    %191 = sbr.rel (0) target = $region29
  $region28: #{comp_model_forward.6} parent=0 // pred_region
    _
  $region29: #{comp_model_forward.6} parent=0 // pred_fallthru
    _

// kernel: tile.13
$region0: #{tile.13}
  #allocation0 [shape = 's32[1]{0}', space=sflag, size = 0x4, scoped, tag = 'scoped memory for tile.13']
  %s0 = inlined_call_operand.vmem [shape: f32[8], index: 0, kind: input, shape index: {}]
  %s1 = inlined_call_operand.vmem [shape: f32[4,8], index: 1, kind: output, shape index: {}]
  // Predicated region
  $region2: #{tile.13} parent=0 // pred_check
    _
  $region3: #{tile.13} parent=0 // pred_check_branch
    %3 = sbr.rel (0) target = $region5
  $region4: #{tile.13} parent=0 // pred_region
    _
  $region5: #{tile.13} parent=0 // pred_fallthru
    _
  %v4 = vld [vmem:[%s0] ss:$0 sm:$0xff]
  %5 = vst [vmem:[%s1] sm:$0xf] %v4

// kernel: tile.14
$region0: #{tile.14}
  %s0 = inlined_call_operand.vmem [shape: f32[4,8], index: 0, kind: input, shape index: {}]
  %s1 = inlined_call_operand.vmem [shape: f32[1,32], index: 1, kind: output, shape index: {}]
  $region1: #{tile.14} parent=0
    #allocation0 [shape = 'u8[4096]{0}', space=vmem, size = 0x1000, scoped, tag = 'scoped mem for output reshape']
    #allocation1 [shape = 'u8[4096]{0}', space=vmem, size = 0x1000, scoped, tag = 'scoped mem for input reshape']
    %s3 = sshll.u32 1, 4
    %s4 = ssub.s32 %s3, 1
    %v5 = vld [vmem:[%s0] sm:%s4]
    %6 = vst [vmem:[#allocation1] sm:%s4] %v5
    %v7 = vld [vmem:[#allocation1] sm:$0x1]
    %vm8 = vcmask 64512
    %9 = vst.msk [vmem:[#allocation0] sm:$0x1] %vm8, %v7
    %s10 = scalar_lea.vmem [#allocation1], 3
    %v11 = vld [vmem:[%s10] sm:$0x1]
    %12 = vrot.lane.b32.xlu0 %v11, 24
    %v13 = vpop.permute.xlu0 %12
    %vm14 = vcmask 261312
    %15 = vst.msk [vmem:[#allocation0] sm:$0x1] %vm14, %v13
    %s16 = scalar_lea.vmem [#allocation1], 2
    %v17 = vld [vmem:[%s16] sm:$0x1]
    %18 = vrot.lane.b32.xlu0 %v17, 16
    %v19 = vpop.permute.xlu0 %18
    %vm20 = vcmask 195712
    %21 = vst.msk [vmem:[#allocation0] sm:$0x1] %vm20, %v19
    %s22 = scalar_lea.vmem [#allocation1], 1
    %v23 = vld [vmem:[%s22] sm:$0x1]
    %24 = vrot.lane.b32.xlu0 %v23, 8
    %v25 = vpop.permute.xlu0 %24
    %vm26 = vcmask 130112
    %27 = vst.msk [vmem:[#allocation0] sm:$0x1] %vm26, %v25
    %s29 = sshll.u32 1, 1
    %s30 = ssub.s32 %s29, 1
    %v32 = vld [vmem:[#allocation0] sm:%s30]
    %s33 = sshll.u32 1, 1
    %s34 = ssub.s32 %s33, 1
    %35 = vst [vmem:[%s1] sm:%s34] %v32

// kernel: comp_model_forward.7
$region0: #{comp_model_forward.7}
  #allocation0 [shape = 'u32[]', space=smem, size = 0x4, offset = 0x4, fixed_abs, tag = 'smem constant byte address 0x4 - core index']
  #allocation1 [shape = 'u32[144,128]{1,0:T(1,128)}', space=vmem, size = 0x12000, scoped, tag = 'internal scratch']
  #allocation2 [shape = 'f32[32,32]{1,0:T(8,128)}', space=vmem, size = 0x4000, scoped, tag = 'scratch operand']
  %s0 = inlined_call_operand.vmem [shape: bf16[32,36], index: 0, kind: input, shape index: {}]
  %s1 = inlined_call_operand.vmem [shape: bf16[36,32], index: 1, kind: input, shape index: {}]
  %s2 = inlined_call_operand.vmem [shape: f32[1,32], index: 2, kind: input, shape index: {}]
  %s3 = inlined_call_operand.vmem [shape: bf16[32,32], index: 3, kind: output, shape index: {}]
  %s4 = sld [smem:[#allocation0]]
  $region30: #{comp_model_forward.7} parent=0
    _
  %s6 = ssub.s32 1, %s4
  %s7 = scalar_select 0, %s6, %s4
  // Predicated region
  $region2: #{comp_model_forward.7} parent=0 // pred_check
    _
  $region3: #{comp_model_forward.7} parent=0 // pred_check_branch
    %9 = sbr.rel (0) target = $region5
  $region4: #{comp_model_forward.7} parent=0 // pred_region
    _
  $region5: #{comp_model_forward.7} parent=0 // pred_fallthru
    _
  // Predicated region
  $region6: #{comp_model_forward.7} parent=0 // pred_check
    _
  $region7: #{comp_model_forward.7} parent=0 // pred_check_branch
    %11 = sbr.rel (0) target = $region9
  $region8: #{comp_model_forward.7} parent=0 // pred_region
    _
  $region9: #{comp_model_forward.7} parent=0 // pred_fallthru
    _
  // Predicated region
  $region10: #{comp_model_forward.7} parent=0 // pred_check
    _
  $region11: #{comp_model_forward.7} parent=0 // pred_check_branch
    %13 = sbr.rel (0) target = $region13
  $region12: #{comp_model_forward.7} parent=0 // pred_region
    _
  $region13: #{comp_model_forward.7} parent=0 // pred_fallthru
    _
  %p15 = scmp.eq.s32.totalorder 0, 0
  // Predicated region
  $region14: #{comp_model_forward.7} parent=0 // pred_check
    %p16 = pneg %p15
  $region15: #{comp_model_forward.7} parent=0 // pred_check_branch
    %18 = sbr.rel (%p16) target = $region17
  $region16: #{comp_model_forward.7} parent=0 // pred_region
    %vm19 = vcmask 261120
    %20 = vst.msk [vmem:[#allocation2] sm:$0xff] %vm19, 0.0
    %21 = vst.msk [vmem:[#allocation2 + $0x8] sm:$0xff] %vm19, 0.0
    %22 = vst.msk [vmem:[#allocation2 + $0x10] sm:$0xff] %vm19, 0.0
    %23 = vst.msk [vmem:[#allocation2 + $0x18] sm:$0xff] %vm19, 0.0
  $region17: #{comp_model_forward.7} parent=0 // pred_fallthru
    _
  %v24 = vld [vmem:[#allocation2] sm:$0xff]
  %v25 = vld [vmem:[#allocation2 + $0x8] sm:$0xff]
  %v26 = vld [vmem:[#allocation2 + $0x10] sm:$0xff]
  %v27 = vld [vmem:[#allocation2 + $0x18] sm:$0xff]
  %v28 = vld [vmem:[%s0] sm:$0xf]
  %v29 = vld [vmem:[%s0 + $0x4] sm:$0xf]
  %v30 = vld [vmem:[%s0 + $0x8] sm:$0xf]
  %v31 = vld [vmem:[%s0 + $0xc] sm:$0xf]
  %v32 = vld [vmem:[%s1] sm:$0xf]
  %v33 = vld [vmem:[%s1 + $0x4] sm:$0xf]
  %v34 = vld [vmem:[%s1 + $0x8] sm:$0xf]
  %v35 = vld [vmem:[%s1 + $0xc] sm:$0xf]
  %v36 = vld [vmem:[%s1 + $0x10] sm:$0x3]
  %v41 = vunpack.c.l.b16 %v28
  %v42 = vunpack.c.l.b16 %v29
  %v43 = vunpack.c.l.b16 %v30
  %v44 = vunpack.c.l.b16 %v31
  %v45 = vpack.c.b16 %v42, %v41
  %v46 = vpack.c.b16 %v44, %v43
  %v52 = vunpack.c.l.b16 %v32
  %v53 = vunpack.c.l.b16 %v33
  %v54 = vunpack.c.l.b16 %v34
  %v55 = vunpack.c.l.b16 %v35
  %v56 = vunpack.c.l.b16 %v36
  %v57 = vpack.c.b16 %v53, %v52
  %v58 = vpack.c.b16 %v55, %v54
  %v59 = vpack.c.b16 %v56, %v56
  %vm62 = vcmask 293888
  %v64 = vsel %vm62, %v45, 0
  %v67 = vsel %vm62, %v46, 0
  %vm69 = vcmask 1041408
  %v71 = vsel %vm69, %v59, 0
  %73 = vmatprep.subr.bf16.mxu0 0
  %74 = vmatpush1.bf16.msra.mxu0 0
  %75 = vmatprep.subr.bf16.mxu0 0
  %76 = vmatpush1.bf16.msra.mxu0 0
  %77 = vmatprep.subr.bf16.mxu0 0
  %78 = vmatpush1.bf16.msra.mxu0 0
  %79 = vmatprep.subr.bf16.mxu0 0
  %80 = vmatpush1.bf16.msra.mxu0 0
  %81 = vmatprep.subr.bf16.mxu0 0
  %82 = vmatpush1.bf16.msra.mxu0 0
  %83 = vmatprep.subr.bf16.mxu0 0
  %84 = vmatpush1.bf16.msra.mxu0 %v71
  %85 = vmatprep.subr.bf16.mxu0 0
  %86 = vmatpush1.bf16.msra.mxu0 %v58
  %87 = vmatprep.subr.bf16.mxu0 0
  %88 = vmatpush1.bf16.msra.mxu0 %v57
  %89 = vmatprep.subr.bf16.mxu0 0
  %90 = vmatpush2.bf16.msra.mxu0 0
  %91 = vmatprep.subr.bf16.mxu0 0
  %92 = vmatpush2.bf16.msra.mxu0 0
  %93 = vmatprep.subr.bf16.mxu0 0
  %94 = vmatpush2.bf16.msra.mxu0 0
  %95 = vmatprep.subr.bf16.mxu0 0
  %96 = vmatpush2.bf16.msra.mxu0 0
  %97 = vmatprep.subr.bf16.mxu0 0
  %98 = vmatpush2.bf16.msra.mxu0 0
  %99 = vmatprep.subr.bf16.mxu0 0
  %100 = vmatpush2.bf16.msra.mxu0 0
  %101 = vmatprep.subr.bf16.mxu0 0
  %102 = vmatpush2.bf16.msra.mxu0 0
  %103 = vmatprep.subr.bf16.mxu0 0
  %104 = vmatpush2.bf16.msra.mxu0 0
  %105 = vmatprep.mubr.bf16.mxu0 0
  %106 = vmatmul.mubr.bf16.gmra.mxu0 %v64
  %v107 = vpop.f32.mrf.mxu0
  %v108 = vadd.f32 0.0, %v107
  %v109 = vpop.f32.mrf.mxu0
  %v110 = vpop.f32.mrf.mxu0
  %v111 = vadd.f32 0.0, %v110
  %v112 = vpop.f32.mrf.mxu0
  %113 = vmatprep.mubr.bf16.mxu0 0
  %114 = vmatmul.mubr.bf16.gmra.mxu0 %v67
  %v115 = vpop.f32.mrf.mxu0
  %v116 = vadd.f32 0.0, %v115
  %v117 = vpop.f32.mrf.mxu0
  %v118 = vpop.f32.mrf.mxu0
  %v119 = vadd.f32 0.0, %v118
  %v120 = vpop.f32.mrf.mxu0
  %121 = vdwg.mxu0
  %v122 = vadd.f32 %v24, %v108
  %v123 = vadd.f32 %v25, %v111
  %v124 = vadd.f32 %v26, %v116
  %v125 = vadd.f32 %v27, %v119
  %vm126 = vcmask 261120
  %127 = vst.msk [vmem:[#allocation2] sm:$0xff] %vm126, %v122
  %128 = vst.msk [vmem:[#allocation2 + $0x8] sm:$0xff] %vm126, %v123
  %129 = vst.msk [vmem:[#allocation2 + $0x10] sm:$0xff] %vm126, %v124
  %130 = vst.msk [vmem:[#allocation2 + $0x18] sm:$0xff] %vm126, %v125
  // Predicated region
  $region18: #{comp_model_forward.7} parent=0 // pred_check
    %p131 = pneg %p15
  $region19: #{comp_model_forward.7} parent=0 // pred_check_branch
    %133 = sbr.rel (%p131) target = $region21
  $region20: #{comp_model_forward.7} parent=0 // pred_region
    %v134 = vld [vmem:[#allocation2] sm:$0xff]
    %v135 = vld [vmem:[#allocation2 + $0x8] sm:$0xff]
    %v136 = vld [vmem:[#allocation2 + $0x10] sm:$0xff]
    %v137 = vld [vmem:[#allocation2 + $0x18] sm:$0xff]
    %v138 = vld [vmem:[%s2] sm:$0x1]
    %v140 = vlaneseq
    %v141 = vshrl.u32 %v140, 7
    %v142 = vsub.s32 0, %v141
    %v143 = vrot.slane %v138, %v142
    %v145 = vadd.f32 %v134, %v143
    %v146 = vadd.f32 %v135, %v143
    %v147 = vadd.f32 %v136, %v143
    %v148 = vadd.f32 %v137, %v143
    %v149 = vmax.f32 %v145, 0.0
    %v150 = vmax.f32 %v146, 0.0
    %v151 = vmax.f32 %v147, 0.0
    %v152 = vmax.f32 %v148, 0.0
    %v153 = vpack.c.bf16 %v150, %v149
    %v154 = vpack.c.bf16 %v152, %v151
    %v157 = vunpack.c.l.b16 %v153
    %v158 = vunpack.c.h.b16 %v153
    %v159 = vunpack.c.l.b16 %v154
    %v160 = vunpack.c.h.b16 %v154
    %v161 = vpack.c.b16 %v157, %v157
    %v162 = vpack.c.b16 %v158, %v158
    %v163 = vpack.c.b16 %v159, %v159
    %v164 = vpack.c.b16 %v160, %v160
    %vm169 = vcmask 257024
    %170 = vst.msk [vmem:[%s3] sm:$0xf] %vm169, %v161
    %171 = vst.msk [vmem:[%s3 + $0x4] sm:$0xf] %vm169, %v162
    %172 = vst.msk [vmem:[%s3 + $0x8] sm:$0xf] %vm169, %v163
    %173 = vst.msk [vmem:[%s3 + $0xc] sm:$0xf] %vm169, %v164
  $region21: #{comp_model_forward.7} parent=0 // pred_fallthru
    _
  // Predicated region
  $region22: #{comp_model_forward.7} parent=0 // pred_check
    _
  $region23: #{comp_model_forward.7} parent=0 // pred_check_branch
    %175 = sbr.rel (0) target = $region25
  $region24: #{comp_model_forward.7} parent=0 // pred_region
    _
  $region25: #{comp_model_forward.7} parent=0 // pred_fallthru
    _
  // Predicated region
  $region26: #{comp_model_forward.7} parent=0 // pred_check
    _
  $region27: #{comp_model_forward.7} parent=0 // pred_check_branch
    %177 = sbr.rel (0) target = $region29
  $region28: #{comp_model_forward.7} parent=0 // pred_region
    _
  $region29: #{comp_model_forward.7} parent=0 // pred_fallthru
    _

// kernel: tile.18
$region0: #{tile.18}
  #allocation0 [shape = 's32[1]{0}', space=sflag, size = 0x4, scoped, tag = 'scoped memory for tile.18']
  %s0 = inlined_call_operand.vmem [shape: f32[3], index: 0, kind: input, shape index: {}]
  %s1 = inlined_call_operand.vmem [shape: f32[4,3], index: 1, kind: output, shape index: {}]
  // Predicated region
  $region2: #{tile.18} parent=0 // pred_check
    _
  $region3: #{tile.18} parent=0 // pred_check_branch
    %3 = sbr.rel (0) target = $region5
  $region4: #{tile.18} parent=0 // pred_region
    _
  $region5: #{tile.18} parent=0 // pred_fallthru
    _
  %v4 = vld [vmem:[%s0] ss:$0 sm:$0xff]
  %5 = vst [vmem:[%s1] sm:$0xf] %v4

// kernel: tile.19
$region0: #{tile.19}
  %s0 = inlined_call_operand.vmem [shape: f32[4,3], index: 0, kind: input, shape index: {}]
  %s1 = inlined_call_operand.vmem [shape: f32[1,12], index: 1, kind: output, shape index: {}]
  $region1: #{tile.19} parent=0
    #allocation0 [shape = 'u8[4096]{0}', space=vmem, size = 0x1000, scoped, tag = 'scoped mem for output reshape']
    #allocation1 [shape = 'u8[4096]{0}', space=vmem, size = 0x1000, scoped, tag = 'scoped mem for input reshape']
    %s3 = sshll.u32 1, 4
    %s4 = ssub.s32 %s3, 1
    %v5 = vld [vmem:[%s0] sm:%s4]
    %6 = vst [vmem:[#allocation1] sm:%s4] %v5
    %v7 = vld [vmem:[#allocation1] sm:$0x1]
    %vm8 = vcmask 23552
    %9 = vst.msk [vmem:[#allocation0] sm:$0x1] %vm8, %v7
    %s10 = scalar_lea.vmem [#allocation1], 3
    %v11 = vld [vmem:[%s10] sm:$0x1]
    %12 = vrot.lane.b32.xlu0 %v11, 9
    %v13 = vpop.permute.xlu0 %12
    %vm14 = vcmask 97352
    %15 = vst.msk [vmem:[#allocation0] sm:$0x1] %vm14, %v13
    %s16 = scalar_lea.vmem [#allocation1], 2
    %v17 = vld [vmem:[%s16] sm:$0x1]
    %18 = vrot.lane.b32.xlu0 %v17, 6
    %v19 = vpop.permute.xlu0 %18
    %vm20 = vcmask 72752
    %21 = vst.msk [vmem:[#allocation0] sm:$0x1] %vm20, %v19
    %s22 = scalar_lea.vmem [#allocation1], 1
    %v23 = vld [vmem:[%s22] sm:$0x1]
    %24 = vrot.lane.b32.xlu0 %v23, 3
    %v25 = vpop.permute.xlu0 %24
    %vm26 = vcmask 48152
    %27 = vst.msk [vmem:[#allocation0] sm:$0x1] %vm26, %v25
    %s29 = sshll.u32 1, 1
    %s30 = ssub.s32 %s29, 1
    %v32 = vld [vmem:[#allocation0] sm:%s30]
    %s33 = sshll.u32 1, 1
    %s34 = ssub.s32 %s33, 1
    %35 = vst [vmem:[%s1] sm:%s34] %v32

// kernel: comp_model_forward.8
$region0: #{comp_model_forward.8}
  #allocation0 [shape = 'u32[]', space=smem, size = 0x4, offset = 0x4, fixed_abs, tag = 'smem constant byte address 0x4 - core index']
  #allocation1 [shape = 'u32[144,128]{1,0:T(1,128)}', space=vmem, size = 0x12000, scoped, tag = 'internal scratch']
  #allocation2 [shape = 'f32[128,12]{1,0:T(8,128)}', space=vmem, size = 0x10000, scoped, tag = 'scratch operand']
  %s0 = inlined_call_operand.vmem [shape: bf16[128,72], index: 0, kind: input, shape index: {}]
  %s1 = inlined_call_operand.vmem [shape: bf16[72,12], index: 1, kind: input, shape index: {}]
  %s2 = inlined_call_operand.vmem [shape: f32[1,12], index: 2, kind: input, shape index: {}]
  %s3 = inlined_call_operand.vmem [shape: f32[128,12], index: 3, kind: output, shape index: {}]
  %s4 = sld [smem:[#allocation0]]
  $region30: #{comp_model_forward.8} parent=0
    _
  %s6 = ssub.s32 1, %s4
  %s7 = scalar_select 0, %s6, %s4
  // Predicated region
  $region2: #{comp_model_forward.8} parent=0 // pred_check
    _
  $region3: #{comp_model_forward.8} parent=0 // pred_check_branch
    %9 = sbr.rel (0) target = $region5
  $region4: #{comp_model_forward.8} parent=0 // pred_region
    _
  $region5: #{comp_model_forward.8} parent=0 // pred_fallthru
    _
  // Predicated region
  $region6: #{comp_model_forward.8} parent=0 // pred_check
    _
  $region7: #{comp_model_forward.8} parent=0 // pred_check_branch
    %11 = sbr.rel (0) target = $region9
  $region8: #{comp_model_forward.8} parent=0 // pred_region
    _
  $region9: #{comp_model_forward.8} parent=0 // pred_fallthru
    _
  // Predicated region
  $region10: #{comp_model_forward.8} parent=0 // pred_check
    _
  $region11: #{comp_model_forward.8} parent=0 // pred_check_branch
    %13 = sbr.rel (0) target = $region13
  $region12: #{comp_model_forward.8} parent=0 // pred_region
    _
  $region13: #{comp_model_forward.8} parent=0 // pred_fallthru
    _
  %p15 = scmp.eq.s32.totalorder 0, 0
  // Predicated region
  $region14: #{comp_model_forward.8} parent=0 // pred_check
    %p16 = pneg %p15
  $region15: #{comp_model_forward.8} parent=0 // pred_check_branch
    %18 = sbr.rel (%p16) target = $region17
  $region16: #{comp_model_forward.8} parent=0 // pred_region
    %vm19 = vcmask 97280
    %20 = vst.msk [vmem:[#allocation2] sm:$0xff] %vm19, 0.0
    %21 = vst.msk [vmem:[#allocation2 + $0x8] sm:$0xff] %vm19, 0.0
    %22 = vst.msk [vmem:[#allocation2 + $0x10] sm:$0xff] %vm19, 0.0
    %23 = vst.msk [vmem:[#allocation2 + $0x18] sm:$0xff] %vm19, 0.0
    %24 = vst.msk [vmem:[#allocation2 + $0x20] sm:$0xff] %vm19, 0.0
    %25 = vst.msk [vmem:[#allocation2 + $0x28] sm:$0xff] %vm19, 0.0
    %26 = vst.msk [vmem:[#allocation2 + $0x30] sm:$0xff] %vm19, 0.0
    %27 = vst.msk [vmem:[#allocation2 + $0x38] sm:$0xff] %vm19, 0.0
    %28 = vst.msk [vmem:[#allocation2 + $0x40] sm:$0xff] %vm19, 0.0
    %29 = vst.msk [vmem:[#allocation2 + $0x48] sm:$0xff] %vm19, 0.0
    %30 = vst.msk [vmem:[#allocation2 + $0x50] sm:$0xff] %vm19, 0.0
    %31 = vst.msk [vmem:[#allocation2 + $0x58] sm:$0xff] %vm19, 0.0
    %32 = vst.msk [vmem:[#allocation2 + $0x60] sm:$0xff] %vm19, 0.0
    %33 = vst.msk [vmem:[#allocation2 + $0x68] sm:$0xff] %vm19, 0.0
    %34 = vst.msk [vmem:[#allocation2 + $0x70] sm:$0xff] %vm19, 0.0
    %35 = vst.msk [vmem:[#allocation2 + $0x78] sm:$0xff] %vm19, 0.0
  $region17: #{comp_model_forward.8} parent=0 // pred_fallthru
    _
  %v36 = vld [vmem:[#allocation2] sm:$0xff]
  %v37 = vld [vmem:[#allocation2 + $0x8] sm:$0xff]
  %v38 = vld [vmem:[#allocation2 + $0x10] sm:$0xff]
  %v39 = vld [vmem:[#allocation2 + $0x18] sm:$0xff]
  %v40 = vld [vmem:[#allocation2 + $0x20] sm:$0xff]
  %v41 = vld [vmem:[#allocation2 + $0x28] sm:$0xff]
  %v42 = vld [vmem:[#allocation2 + $0x30] sm:$0xff]
  %v43 = vld [vmem:[#allocation2 + $0x38] sm:$0xff]
  %v44 = vld [vmem:[#allocation2 + $0x40] sm:$0xff]
  %v45 = vld [vmem:[#allocation2 + $0x48] sm:$0xff]
  %v46 = vld [vmem:[#allocation2 + $0x50] sm:$0xff]
  %v47 = vld [vmem:[#allocation2 + $0x58] sm:$0xff]
  %v48 = vld [vmem:[#allocation2 + $0x60] sm:$0xff]
  %v49 = vld [vmem:[#allocation2 + $0x68] sm:$0xff]
  %v50 = vld [vmem:[#allocation2 + $0x70] sm:$0xff]
  %v51 = vld [vmem:[#allocation2 + $0x78] sm:$0xff]
  %v52 = vld [vmem:[%s0] sm:$0xf]
  %v53 = vld [vmem:[%s0 + $0x4] sm:$0xf]
  %v54 = vld [vmem:[%s0 + $0x8] sm:$0xf]
  %v55 = vld [vmem:[%s0 + $0xc] sm:$0xf]
  %v56 = vld [vmem:[%s0 + $0x10] sm:$0xf]
  %v57 = vld [vmem:[%s0 + $0x14] sm:$0xf]
  %v58 = vld [vmem:[%s0 + $0x18] sm:$0xf]
  %v59 = vld [vmem:[%s0 + $0x1c] sm:$0xf]
  %v60 = vld [vmem:[%s0 + $0x20] sm:$0xf]
  %v61 = vld [vmem:[%s0 + $0x24] sm:$0xf]
  %v62 = vld [vmem:[%s0 + $0x28] sm:$0xf]
  %v63 = vld [vmem:[%s0 + $0x2c] sm:$0xf]
  %v64 = vld [vmem:[%s0 + $0x30] sm:$0xf]
  %v65 = vld [vmem:[%s0 + $0x34] sm:$0xf]
  %v66 = vld [vmem:[%s0 + $0x38] sm:$0xf]
  %v67 = vld [vmem:[%s0 + $0x3c] sm:$0xf]
  %v68 = vld [vmem:[%s1] sm:$0xf]
  %v69 = vld [vmem:[%s1 + $0x4] sm:$0xf]
  %v70 = vld [vmem:[%s1 + $0x8] sm:$0xf]
  %v71 = vld [vmem:[%s1 + $0xc] sm:$0xf]
  %v72 = vld [vmem:[%s1 + $0x10] sm:$0xf]
  %v73 = vld [vmem:[%s1 + $0x14] sm:$0xf]
  %v74 = vld [vmem:[%s1 + $0x18] sm:$0xf]
  %v75 = vld [vmem:[%s1 + $0x1c] sm:$0xf]
  %v76 = vld [vmem:[%s1 + $0x20] sm:$0xf]
  %v93 = vunpack.c.l.b16 %v52
  %v94 = vunpack.c.l.b16 %v53
  %v95 = vunpack.c.l.b16 %v54
  %v96 = vunpack.c.l.b16 %v55
  %v97 = vunpack.c.l.b16 %v56
  %v98 = vunpack.c.l.b16 %v57
  %v99 = vunpack.c.l.b16 %v58
  %v100 = vunpack.c.l.b16 %v59
  %v101 = vunpack.c.l.b16 %v60
  %v102 = vunpack.c.l.b16 %v61
  %v103 = vunpack.c.l.b16 %v62
  %v104 = vunpack.c.l.b16 %v63
  %v105 = vunpack.c.l.b16 %v64
  %v106 = vunpack.c.l.b16 %v65
  %v107 = vunpack.c.l.b16 %v66
  %v108 = vunpack.c.l.b16 %v67
  %v109 = vpack.c.b16 %v94, %v93
  %v110 = vpack.c.b16 %v96, %v95
  %v111 = vpack.c.b16 %v98, %v97
  %v112 = vpack.c.b16 %v100, %v99
  %v113 = vpack.c.b16 %v102, %v101
  %v114 = vpack.c.b16 %v104, %v103
  %v115 = vpack.c.b16 %v106, %v105
  %v116 = vpack.c.b16 %v108, %v107
  %v126 = vunpack.c.l.b16 %v68
  %v127 = vunpack.c.l.b16 %v69
  %v128 = vunpack.c.l.b16 %v70
  %v129 = vunpack.c.l.b16 %v71
  %v130 = vunpack.c.l.b16 %v72
  %v131 = vunpack.c.l.b16 %v73
  %v132 = vunpack.c.l.b16 %v74
  %v133 = vunpack.c.l.b16 %v75
  %v134 = vunpack.c.l.b16 %v76
  %v135 = vpack.c.b16 %v127, %v126
  %v136 = vpack.c.b16 %v129, %v128
  %v137 = vpack.c.b16 %v131, %v130
  %v138 = vpack.c.b16 %v133, %v132
  %v139 = vpack.c.b16 %v134, %v134
  %vm144 = vcmask 588800
  %v146 = vsel %vm144, %v109, 0
  %v149 = vsel %vm144, %v110, 0
  %v152 = vsel %vm144, %v111, 0
  %v155 = vsel %vm144, %v112, 0
  %v158 = vsel %vm144, %v113, 0
  %v161 = vsel %vm144, %v114, 0
  %v164 = vsel %vm144, %v115, 0
  %v167 = vsel %vm144, %v116, 0
  %vm169 = vcmask 1043456
  %v171 = vsel %vm169, %v139, 0
  %173 = vmatprep.subr.bf16.mxu0 0
  %174 = vmatpush1.bf16.msra.mxu0 0
  %175 = vmatprep.subr.bf16.mxu0 0
  %176 = vmatpush1.bf16.msra.mxu0 0
  %177 = vmatprep.subr.bf16.mxu0 0
  %178 = vmatpush1.bf16.msra.mxu0 0
  %179 = vmatprep.subr.bf16.mxu0 0
  %180 = vmatpush1.bf16.msra.mxu0 %v171
  %181 = vmatprep.subr.bf16.mxu0 0
  %182 = vmatpush1.bf16.msra.mxu0 %v138
  %183 = vmatprep.subr.bf16.mxu0 0
  %184 = vmatpush1.bf16.msra.mxu0 %v137
  %185 = vmatprep.subr.bf16.mxu0 0
  %186 = vmatpush1.bf16.msra.mxu0 %v136
  %187 = vmatprep.subr.bf16.mxu0 0
  %188 = vmatpush1.bf16.msra.mxu0 %v135
  %189 = vmatprep.subr.bf16.mxu0 0
  %190 = vmatpush2.bf16.msra.mxu0 0
  %191 = vmatprep.subr.bf16.mxu0 0
  %192 = vmatpush2.bf16.msra.mxu0 0
  %193 = vmatprep.subr.bf16.mxu0 0
  %194 = vmatpush2.bf16.msra.mxu0 0
  %195 = vmatprep.subr.bf16.mxu0 0
  %196 = vmatpush2.bf16.msra.mxu0 0
  %197 = vmatprep.subr.bf16.mxu0 0
  %198 = vmatpush2.bf16.msra.mxu0 0
  %199 = vmatprep.subr.bf16.mxu0 0
  %200 = vmatpush2.bf16.msra.mxu0 0
  %201 = vmatprep.subr.bf16.mxu0 0
  %202 = vmatpush2.bf16.msra.mxu0 0
  %203 = vmatprep.subr.bf16.mxu0 0
  %204 = vmatpush2.bf16.msra.mxu0 0
  %205 = vmatprep.mubr.bf16.mxu0 0
  %206 = vmatmul.mubr.bf16.gmra.mxu0 %v146
  %v207 = vpop.f32.mrf.mxu0
  %v208 = vadd.f32 0.0, %v207
  %v209 = vpop.f32.mrf.mxu0
  %v210 = vpop.f32.mrf.mxu0
  %v211 = vadd.f32 0.0, %v210
  %v212 = vpop.f32.mrf.mxu0
  %213 = vmatprep.mubr.bf16.mxu0 0
  %214 = vmatmul.mubr.bf16.gmra.mxu0 %v149
  %v215 = vpop.f32.mrf.mxu0
  %v216 = vadd.f32 0.0, %v215
  %v217 = vpop.f32.mrf.mxu0
  %v218 = vpop.f32.mrf.mxu0
  %v219 = vadd.f32 0.0, %v218
  %v220 = vpop.f32.mrf.mxu0
  %221 = vmatprep.mubr.bf16.mxu0 0
  %222 = vmatmul.mubr.bf16.gmra.mxu0 %v152
  %v223 = vpop.f32.mrf.mxu0
  %v224 = vadd.f32 0.0, %v223
  %v225 = vpop.f32.mrf.mxu0
  %v226 = vpop.f32.mrf.mxu0
  %v227 = vadd.f32 0.0, %v226
  %v228 = vpop.f32.mrf.mxu0
  %229 = vmatprep.mubr.bf16.mxu0 0
  %230 = vmatmul.mubr.bf16.gmra.mxu0 %v155
  %v231 = vpop.f32.mrf.mxu0
  %v232 = vadd.f32 0.0, %v231
  %v233 = vpop.f32.mrf.mxu0
  %v234 = vpop.f32.mrf.mxu0
  %v235 = vadd.f32 0.0, %v234
  %v236 = vpop.f32.mrf.mxu0
  %237 = vmatprep.mubr.bf16.mxu0 0
  %238 = vmatmul.mubr.bf16.gmra.mxu0 %v158
  %v239 = vpop.f32.mrf.mxu0
  %v240 = vadd.f32 0.0, %v239
  %v241 = vpop.f32.mrf.mxu0
  %v242 = vpop.f32.mrf.mxu0
  %v243 = vadd.f32 0.0, %v242
  %v244 = vpop.f32.mrf.mxu0
  %245 = vmatprep.mubr.bf16.mxu0 0
  %246 = vmatmul.mubr.bf16.gmra.mxu0 %v161
  %v247 = vpop.f32.mrf.mxu0
  %v248 = vadd.f32 0.0, %v247
  %v249 = vpop.f32.mrf.mxu0
  %v250 = vpop.f32.mrf.mxu0
  %v251 = vadd.f32 0.0, %v250
  %v252 = vpop.f32.mrf.mxu0
  %253 = vmatprep.mubr.bf16.mxu0 0
  %254 = vmatmul.mubr.bf16.gmra.mxu0 %v164
  %v255 = vpop.f32.mrf.mxu0
  %v256 = vadd.f32 0.0, %v255
  %v257 = vpop.f32.mrf.mxu0
  %v258 = vpop.f32.mrf.mxu0
  %v259 = vadd.f32 0.0, %v258
  %v260 = vpop.f32.mrf.mxu0
  %261 = vmatprep.mubr.bf16.mxu0 0
  %262 = vmatmul.mubr.bf16.gmra.mxu0 %v167
  %v263 = vpop.f32.mrf.mxu0
  %v264 = vadd.f32 0.0, %v263
  %v265 = vpop.f32.mrf.mxu0
  %v266 = vpop.f32.mrf.mxu0
  %v267 = vadd.f32 0.0, %v266
  %v268 = vpop.f32.mrf.mxu0
  %269 = vdwg.mxu0
  %v270 = vadd.f32 %v36, %v208
  %v271 = vadd.f32 %v37, %v211
  %v272 = vadd.f32 %v38, %v216
  %v273 = vadd.f32 %v39, %v219
  %v274 = vadd.f32 %v40, %v224
  %v275 = vadd.f32 %v41, %v227
  %v276 = vadd.f32 %v42, %v232
  %v277 = vadd.f32 %v43, %v235
  %v278 = vadd.f32 %v44, %v240
  %v279 = vadd.f32 %v45, %v243
  %v280 = vadd.f32 %v46, %v248
  %v281 = vadd.f32 %v47, %v251
  %v282 = vadd.f32 %v48, %v256
  %v283 = vadd.f32 %v49, %v259
  %v284 = vadd.f32 %v50, %v264
  %v285 = vadd.f32 %v51, %v267
  %vm286 = vcmask 97280
  %287 = vst.msk [vmem:[#allocation2] sm:$0xff] %vm286, %v270
  %288 = vst.msk [vmem:[#allocation2 + $0x8] sm:$0xff] %vm286, %v271
  %289 = vst.msk [vmem:[#allocation2 + $0x10] sm:$0xff] %vm286, %v272
  %290 = vst.msk [vmem:[#allocation2 + $0x18] sm:$0xff] %vm286, %v273
  %291 = vst.msk [vmem:[#allocation2 + $0x20] sm:$0xff] %vm286, %v274
  %292 = vst.msk [vmem:[#allocation2 + $0x28] sm:$0xff] %vm286, %v275
  %293 = vst.msk [vmem:[#allocation2 + $0x30] sm:$0xff] %vm286, %v276
  %294 = vst.msk [vmem:[#allocation2 + $0x38] sm:$0xff] %vm286, %v277
  %295 = vst.msk [vmem:[#allocation2 + $0x40] sm:$0xff] %vm286, %v278
  %296 = vst.msk [vmem:[#allocation2 + $0x48] sm:$0xff] %vm286, %v279
  %297 = vst.msk [vmem:[#allocation2 + $0x50] sm:$0xff] %vm286, %v280
  %298 = vst.msk [vmem:[#allocation2 + $0x58] sm:$0xff] %vm286, %v281
  %299 = vst.msk [vmem:[#allocation2 + $0x60] sm:$0xff] %vm286, %v282
  %300 = vst.msk [vmem:[#allocation2 + $0x68] sm:$0xff] %vm286, %v283
  %301 = vst.msk [vmem:[#allocation2 + $0x70] sm:$0xff] %vm286, %v284
  %302 = vst.msk [vmem:[#allocation2 + $0x78] sm:$0xff] %vm286, %v285
  // Predicated region
  $region18: #{comp_model_forward.8} parent=0 // pred_check
    %p303 = pneg %p15
  $region19: #{comp_model_forward.8} parent=0 // pred_check_branch
    %305 = sbr.rel (%p303) target = $region21
  $region20: #{comp_model_forward.8} parent=0 // pred_region
    %v306 = vld [vmem:[#allocation2] sm:$0xff]
    %v307 = vld [vmem:[#allocation2 + $0x8] sm:$0xff]
    %v308 = vld [vmem:[#allocation2 + $0x10] sm:$0xff]
    %v309 = vld [vmem:[#allocation2 + $0x18] sm:$0xff]
    %v310 = vld [vmem:[#allocation2 + $0x20] sm:$0xff]
    %v311 = vld [vmem:[#allocation2 + $0x28] sm:$0xff]
    %v312 = vld [vmem:[#allocation2 + $0x30] sm:$0xff]
    %v313 = vld [vmem:[#allocation2 + $0x38] sm:$0xff]
    %v314 = vld [vmem:[#allocation2 + $0x40] sm:$0xff]
    %v315 = vld [vmem:[#allocation2 + $0x48] sm:$0xff]
    %v316 = vld [vmem:[#allocation2 + $0x50] sm:$0xff]
    %v317 = vld [vmem:[#allocation2 + $0x58] sm:$0xff]
    %v318 = vld [vmem:[#allocation2 + $0x60] sm:$0xff]
    %v319 = vld [vmem:[#allocation2 + $0x68] sm:$0xff]
    %v320 = vld [vmem:[#allocation2 + $0x70] sm:$0xff]
    %v321 = vld [vmem:[#allocation2 + $0x78] sm:$0xff]
    %v322 = vld [vmem:[%s2] sm:$0x1]
    %v324 = vlaneseq
    %v325 = vshrl.u32 %v324, 7
    %v326 = vsub.s32 0, %v325
    %v327 = vrot.slane %v322, %v326
    %v329 = vadd.f32 %v306, %v327
    %v330 = vadd.f32 %v307, %v327
    %v331 = vadd.f32 %v308, %v327
    %v332 = vadd.f32 %v309, %v327
    %v333 = vadd.f32 %v310, %v327
    %v334 = vadd.f32 %v311, %v327
    %v335 = vadd.f32 %v312, %v327
    %v336 = vadd.f32 %v313, %v327
    %v337 = vadd.f32 %v314, %v327
    %v338 = vadd.f32 %v315, %v327
    %v339 = vadd.f32 %v316, %v327
    %v340 = vadd.f32 %v317, %v327
    %v341 = vadd.f32 %v318, %v327
    %v342 = vadd.f32 %v319, %v327
    %v343 = vadd.f32 %v320, %v327
    %v344 = vadd.f32 %v321, %v327
    %345 = vst.msk [vmem:[%s3] sm:$0xff] %vm286, %v329
    %346 = vst.msk [vmem:[%s3 + $0x8] sm:$0xff] %vm286, %v330
    %347 = vst.msk [vmem:[%s3 + $0x10] sm:$0xff] %vm286, %v331
    %348 = vst.msk [vmem:[%s3 + $0x18] sm:$0xff] %vm286, %v332
    %349 = vst.msk [vmem:[%s3 + $0x20] sm:$0xff] %vm286, %v333
    %350 = vst.msk [vmem:[%s3 + $0x28] sm:$0xff] %vm286, %v334
    %351 = vst.msk [vmem:[%s3 + $0x30] sm:$0xff] %vm286, %v335
    %352 = vst.msk [vmem:[%s3 + $0x38] sm:$0xff] %vm286, %v336
    %353 = vst.msk [vmem:[%s3 + $0x40] sm:$0xff] %vm286, %v337
    %354 = vst.msk [vmem:[%s3 + $0x48] sm:$0xff] %vm286, %v338
    %355 = vst.msk [vmem:[%s3 + $0x50] sm:$0xff] %vm286, %v339
    %356 = vst.msk [vmem:[%s3 + $0x58] sm:$0xff] %vm286, %v340
    %357 = vst.msk [vmem:[%s3 + $0x60] sm:$0xff] %vm286, %v341
    %358 = vst.msk [vmem:[%s3 + $0x68] sm:$0xff] %vm286, %v342
    %359 = vst.msk [vmem:[%s3 + $0x70] sm:$0xff] %vm286, %v343
    %360 = vst.msk [vmem:[%s3 + $0x78] sm:$0xff] %vm286, %v344
  $region21: #{comp_model_forward.8} parent=0 // pred_fallthru
    _
  // Predicated region
  $region22: #{comp_model_forward.8} parent=0 // pred_check
    _
  $region23: #{comp_model_forward.8} parent=0 // pred_check_branch
    %362 = sbr.rel (0) target = $region25
  $region24: #{comp_model_forward.8} parent=0 // pred_region
    _
  $region25: #{comp_model_forward.8} parent=0 // pred_fallthru
    _
  // Predicated region
  $region26: #{comp_model_forward.8} parent=0 // pred_check
    _
  $region27: #{comp_model_forward.8} parent=0 // pred_check_branch
    %364 = sbr.rel (0) target = $region29
  $region28: #{comp_model_forward.8} parent=0 // pred_region
    _
  $region29: #{comp_model_forward.8} parent=0 // pred_fallthru
    _

// kernel: comp_model_forward.9
$region0: #{comp_model_forward.9}
  #allocation0 [shape = 'u32[]', space=smem, size = 0x4, offset = 0x4, fixed_abs, tag = 'smem constant byte address 0x4 - core index']
  #allocation1 [shape = 'u32[144,128]{1,0:T(1,128)}', space=vmem, size = 0x12000, scoped, tag = 'internal scratch']
  %s0 = inlined_call_operand.vmem [shape: f32[32,4], index: 0, kind: input, shape index: {}]
  %s1 = inlined_call_operand.vmem [shape: f32[9,4,4], index: 1, kind: input, shape index: {}]
  %s2 = inlined_call_operand.vmem [shape: f32[9,1,4], index: 2, kind: input, shape index: {}]
  %s3 = inlined_call_operand.hbm [shape: f32[1], index: 3, kind: output, shape index: {}]
  %s4 = sld [smem:[#allocation0]]
  $region22: #{comp_model_forward.9} parent=0
    _
  %s6 = ssub.s32 1, %s4
  %s7 = scalar_select 0, %s6, %s4
  $region1: #{comp_model_forward.9} parent=0
    #allocation2 [shape = 'u8[512]{0}', space=smem, size = 0x200, scoped, tag = 'output window, operand 0, single buffered']
    #allocation3 [shape = 's32[1]{0}', space=sflag, size = 0x4, scoped, tag = 'scoped memory for comp_model_forward.9']
    %8 = vsyncpa [#allocation3], 0
    // Predicated region
    $region2: #{comp_model_forward.9} parent=1 // pred_check
      _
    $region3: #{comp_model_forward.9} parent=1 // pred_check_branch
      %10 = sbr.rel (0) target = $region5
    $region4: #{comp_model_forward.9} parent=1 // pred_region
      _
    $region5: #{comp_model_forward.9} parent=1 // pred_fallthru
      _
    // Predicated region
    $region6: #{comp_model_forward.9} parent=1 // pred_check
      _
    $region7: #{comp_model_forward.9} parent=1 // pred_check_branch
      %12 = sbr.rel (0) target = $region9
    $region8: #{comp_model_forward.9} parent=1 // pred_region
      _
    $region9: #{comp_model_forward.9} parent=1 // pred_fallthru
      _
    // Predicated region
    $region10: #{comp_model_forward.9} parent=1 // pred_check
      _
    $region11: #{comp_model_forward.9} parent=1 // pred_check_branch
      %14 = sbr.rel (0) target = $region13
    $region12: #{comp_model_forward.9} parent=1 // pred_region
      _
    $region13: #{comp_model_forward.9} parent=1 // pred_fallthru
      _
    %v15 = vld [vmem:[%s0] sm:$0xff]
    %v16 = vld [vmem:[%s0 + $0x8] sm:$0xff]
    %v17 = vld [vmem:[%s0 + $0x10] sm:$0xff]
    %v18 = vld [vmem:[%s0 + $0x18] sm:$0xff]
    %v19 = vld [vmem:[%s1] sm:$0xf]
    %v20 = vld [vmem:[%s2] sm:$0x1]
    %v22 = vlaneseq
    %v23 = vshrl.u32 %v22, 7
    %v24 = vsub.s32 0, %v23
    %v25 = vrot.slane %v20, %v24
    %vm27 = vcmask 31744
    %v29 = vsel %vm27, %v15, 0
    %v32 = vsel %vm27, %v16, 0
    %v35 = vsel %vm27, %v17, 0
    %v38 = vsel %vm27, %v18, 0
    %vm40 = vcmask 1043456
    %v42 = vsel %vm40, %v19, 0
    %44 = vmatprep.subr.mxu0 0.0
    %45 = vmatpush1.msra.mxu0 0.0
    %46 = vmatprep.subr.mxu0 0.0
    %47 = vmatpush1.msra.mxu0 0.0
    %48 = vmatprep.subr.mxu0 0.0
    %49 = vmatpush1.msra.mxu0 0.0
    %50 = vmatprep.subr.mxu0 0.0
    %51 = vmatpush1.msra.mxu0 0.0
    %52 = vmatprep.subr.mxu0 0.0
    %53 = vmatpush1.msra.mxu0 0.0
    %54 = vmatprep.subr.mxu0 0.0
    %55 = vmatpush1.msra.mxu0 0.0
    %56 = vmatprep.subr.mxu0 0.0
    %57 = vmatpush1.msra.mxu0 0.0
    %58 = vmatprep.subr.mxu0 0.0
    %59 = vmatpush1.msra.mxu0 0.0
    %60 = vmatprep.subr.mxu0 0.0
    %61 = vmatpush1.msra.mxu0 0.0
    %62 = vmatprep.subr.mxu0 0.0
    %63 = vmatpush1.msra.mxu0 0.0
    %64 = vmatprep.subr.mxu0 0.0
    %65 = vmatpush1.msra.mxu0 0.0
    %66 = vmatprep.subr.mxu0 0.0
    %67 = vmatpush1.msra.mxu0 0.0
    %68 = vmatprep.subr.mxu0 0.0
    %69 = vmatpush1.msra.mxu0 0.0
    %70 = vmatprep.subr.mxu0 0.0
    %71 = vmatpush1.msra.mxu0 0.0
    %72 = vmatprep.subr.mxu0 0.0
    %73 = vmatpush1.msra.mxu0 0.0
    %74 = vmatprep.subr.mxu0 0.0
    %75 = vmatpush1.msra.mxu0 %v42
    %76 = vmatprep.subr.mxu0 0.0
    %77 = vmatpush2.msra.mxu0 0.0
    %78 = vmatprep.subr.mxu0 0.0
    %79 = vmatpush2.msra.mxu0 0.0
    %80 = vmatprep.subr.mxu0 0.0
    %81 = vmatpush2.msra.mxu0 0.0
    %82 = vmatprep.subr.mxu0 0.0
    %83 = vmatpush2.msra.mxu0 0.0
    %84 = vmatprep.subr.mxu0 0.0
    %85 = vmatpush2.msra.mxu0 0.0
    %86 = vmatprep.subr.mxu0 0.0
    %87 = vmatpush2.msra.mxu0 0.0
    %88 = vmatprep.subr.mxu0 0.0
    %89 = vmatpush2.msra.mxu0 0.0
    %90 = vmatprep.subr.mxu0 0.0
    %91 = vmatpush2.msra.mxu0 0.0
    %92 = vmatprep.subr.mxu0 0.0
    %93 = vmatpush2.msra.mxu0 0.0
    %94 = vmatprep.subr.mxu0 0.0
    %95 = vmatpush2.msra.mxu0 0.0
    %96 = vmatprep.subr.mxu0 0.0
    %97 = vmatpush2.msra.mxu0 0.0
    %98 = vmatprep.subr.mxu0 0.0
    %99 = vmatpush2.msra.mxu0 0.0
    %100 = vmatprep.subr.mxu0 0.0
    %101 = vmatpush2.msra.mxu0 0.0
    %102 = vmatprep.subr.mxu0 0.0
    %103 = vmatpush2.msra.mxu0 0.0
    %104 = vmatprep.subr.mxu0 0.0
    %105 = vmatpush2.msra.mxu0 0.0
    %106 = vmatprep.subr.mxu0 0.0
    %107 = vmatpush2.msra.mxu0 0.0
    %108 = vmatprep.mubr.f32.mxu0 0.0
    %109 = vmatmul.mubr.f32.gmra.mxu0 %v29
    %v110 = vpop.f32.mrf.mxu0
    %v111 = vadd.f32 %v25, %v110
    %v112 = vpop.f32.mrf.mxu0
    %113 = vmatprep.mubr.f32.mxu0 0.0
    %114 = vmatmul.mubr.f32.gmra.mxu0 %v32
    %v115 = vpop.f32.mrf.mxu0
    %v116 = vadd.f32 %v25, %v115
    %v117 = vpop.f32.mrf.mxu0
    %118 = vmatprep.mubr.f32.mxu0 0.0
    %119 = vmatmul.mubr.f32.gmra.mxu0 %v35
    %v120 = vpop.f32.mrf.mxu0
    %v121 = vadd.f32 %v25, %v120
    %v122 = vpop.f32.mrf.mxu0
    %123 = vmatprep.mubr.f32.mxu0 0.0
    %124 = vmatmul.mubr.f32.gmra.mxu0 %v38
    %v125 = vpop.f32.mrf.mxu0
    %v126 = vadd.f32 %v25, %v125
    %v127 = vpop.f32.mrf.mxu0
    %128 = vdwg.mxu0
    %s129 = scalar_lea.vmem %s1, 4
    %v130 = vld [vmem:[%s129] sm:$0xf]
    %s131 = scalar_lea.vmem %s2, 1
    %v132 = vld [vmem:[%s131] sm:$0x1]
    %v134 = vlaneseq
    %v135 = vshrl.u32 %v134, 7
    %v136 = vsub.s32 0, %v135
    %v137 = vrot.slane %v132, %v136
    %v140 = vsel %vm40, %v130, 0
    %142 = vmatprep.subr.mxu0 0.0
    %143 = vmatpush1.msra.mxu0 0.0
    %144 = vmatprep.subr.mxu0 0.0
    %145 = vmatpush1.msra.mxu0 0.0
    %146 = vmatprep.subr.mxu0 0.0
    %147 = vmatpush1.msra.mxu0 0.0
    %148 = vmatprep.subr.mxu0 0.0
    %149 = vmatpush1.msra.mxu0 0.0
    %150 = vmatprep.subr.mxu0 0.0
    %151 = vmatpush1.msra.mxu0 0.0
    %152 = vmatprep.subr.mxu0 0.0
    %153 = vmatpush1.msra.mxu0 0.0
    %154 = vmatprep.subr.mxu0 0.0
    %155 = vmatpush1.msra.mxu0 0.0
    %156 = vmatprep.subr.mxu0 0.0
    %157 = vmatpush1.msra.mxu0 0.0
    %158 = vmatprep.subr.mxu0 0.0
    %159 = vmatpush1.msra.mxu0 0.0
    %160 = vmatprep.subr.mxu0 0.0
    %161 = vmatpush1.msra.mxu0 0.0
    %162 = vmatprep.subr.mxu0 0.0
    %163 = vmatpush1.msra.mxu0 0.0
    %164 = vmatprep.subr.mxu0 0.0
    %165 = vmatpush1.msra.mxu0 0.0
    %166 = vmatprep.subr.mxu0 0.0
    %167 = vmatpush1.msra.mxu0 0.0
    %168 = vmatprep.subr.mxu0 0.0
    %169 = vmatpush1.msra.mxu0 0.0
    %170 = vmatprep.subr.mxu0 0.0
    %171 = vmatpush1.msra.mxu0 0.0
    %172 = vmatprep.subr.mxu0 0.0
    %173 = vmatpush1.msra.mxu0 %v140
    %174 = vmatprep.subr.mxu0 0.0
    %175 = vmatpush2.msra.mxu0 0.0
    %176 = vmatprep.subr.mxu0 0.0
    %177 = vmatpush2.msra.mxu0 0.0
    %178 = vmatprep.subr.mxu0 0.0
    %179 = vmatpush2.msra.mxu0 0.0
    %180 = vmatprep.subr.mxu0 0.0
    %181 = vmatpush2.msra.mxu0 0.0
    %182 = vmatprep.subr.mxu0 0.0
    %183 = vmatpush2.msra.mxu0 0.0
    %184 = vmatprep.subr.mxu0 0.0
    %185 = vmatpush2.msra.mxu0 0.0
    %186 = vmatprep.subr.mxu0 0.0
    %187 = vmatpush2.msra.mxu0 0.0
    %188 = vmatprep.subr.mxu0 0.0
    %189 = vmatpush2.msra.mxu0 0.0
    %190 = vmatprep.subr.mxu0 0.0
    %191 = vmatpush2.msra.mxu0 0.0
    %192 = vmatprep.subr.mxu0 0.0
    %193 = vmatpush2.msra.mxu0 0.0
    %194 = vmatprep.subr.mxu0 0.0
    %195 = vmatpush2.msra.mxu0 0.0
    %196 = vmatprep.subr.mxu0 0.0
    %197 = vmatpush2.msra.mxu0 0.0
    %198 = vmatprep.subr.mxu0 0.0
    %199 = vmatpush2.msra.mxu0 0.0
    %200 = vmatprep.subr.mxu0 0.0
    %201 = vmatpush2.msra.mxu0 0.0
    %202 = vmatprep.subr.mxu0 0.0
    %203 = vmatpush2.msra.mxu0 0.0
    %204 = vmatprep.subr.mxu0 0.0
    %205 = vmatpush2.msra.mxu0 0.0
    %206 = vmatprep.mubr.f32.mxu0 0.0
    %207 = vmatmul.mubr.f32.gmra.mxu0 %v29
    %v208 = vpop.f32.mrf.mxu0
    %v209 = vadd.f32 %v137, %v208
    %v210 = vpop.f32.mrf.mxu0
    %211 = vmatprep.mubr.f32.mxu0 0.0
    %212 = vmatmul.mubr.f32.gmra.mxu0 %v32
    %v213 = vpop.f32.mrf.mxu0
    %v214 = vadd.f32 %v137, %v213
    %v215 = vpop.f32.mrf.mxu0
    %216 = vmatprep.mubr.f32.mxu0 0.0
    %217 = vmatmul.mubr.f32.gmra.mxu0 %v35
    %v218 = vpop.f32.mrf.mxu0
    %v219 = vadd.f32 %v137, %v218
    %v220 = vpop.f32.mrf.mxu0
    %221 = vmatprep.mubr.f32.mxu0 0.0
    %222 = vmatmul.mubr.f32.gmra.mxu0 %v38
    %v223 = vpop.f32.mrf.mxu0
    %v224 = vadd.f32 %v137, %v223
    %v225 = vpop.f32.mrf.mxu0
    %226 = vdwg.mxu0
    %s227 = scalar_lea.vmem %s1, 8
    %v228 = vld [vmem:[%s227] sm:$0xf]
    %s229 = scalar_lea.vmem %s2, 2
    %v230 = vld [vmem:[%s229] sm:$0x1]
    %v232 = vlaneseq
    %v233 = vshrl.u32 %v232, 7
    %v234 = vsub.s32 0, %v233
    %v235 = vrot.slane %v230, %v234
    %v238 = vsel %vm40, %v228, 0
    %240 = vmatprep.subr.mxu0 0.0
    %241 = vmatpush1.msra.mxu0 0.0
    %242 = vmatprep.subr.mxu0 0.0
    %243 = vmatpush1.msra.mxu0 0.0
    %244 = vmatprep.subr.mxu0 0.0
    %245 = vmatpush1.msra.mxu0 0.0
    %246 = vmatprep.subr.mxu0 0.0
    %247 = vmatpush1.msra.mxu0 0.0
    %248 = vmatprep.subr.mxu0 0.0
    %249 = vmatpush1.msra.mxu0 0.0
    %250 = vmatprep.subr.mxu0 0.0
    %251 = vmatpush1.msra.mxu0 0.0
    %252 = vmatprep.subr.mxu0 0.0
    %253 = vmatpush1.msra.mxu0 0.0
    %254 = vmatprep.subr.mxu0 0.0
    %255 = vmatpush1.msra.mxu0 0.0
    %256 = vmatprep.subr.mxu0 0.0
    %257 = vmatpush1.msra.mxu0 0.0
    %258 = vmatprep.subr.mxu0 0.0
    %259 = vmatpush1.msra.mxu0 0.0
    %260 = vmatprep.subr.mxu0 0.0
    %261 = vmatpush1.msra.mxu0 0.0
    %262 = vmatprep.subr.mxu0 0.0
    %263 = vmatpush1.msra.mxu0 0.0
    %264 = vmatprep.subr.mxu0 0.0
    %265 = vmatpush1.msra.mxu0 0.0
    %266 = vmatprep.subr.mxu0 0.0
    %267 = vmatpush1.msra.mxu0 0.0
    %268 = vmatprep.subr.mxu0 0.0
    %269 = vmatpush1.msra.mxu0 0.0
    %270 = vmatprep.subr.mxu0 0.0
    %271 = vmatpush1.msra.mxu0 %v238
    %272 = vmatprep.subr.mxu0 0.0
    %273 = vmatpush2.msra.mxu0 0.0
    %274 = vmatprep.subr.mxu0 0.0
    %275 = vmatpush2.msra.mxu0 0.0
    %276 = vmatprep.subr.mxu0 0.0
    %277 = vmatpush2.msra.mxu0 0.0
    %278 = vmatprep.subr.mxu0 0.0
    %279 = vmatpush2.msra.mxu0 0.0
    %280 = vmatprep.subr.mxu0 0.0
    %281 = vmatpush2.msra.mxu0 0.0
    %282 = vmatprep.subr.mxu0 0.0
    %283 = vmatpush2.msra.mxu0 0.0
    %284 = vmatprep.subr.mxu0 0.0
    %285 = vmatpush2.msra.mxu0 0.0
    %286 = vmatprep.subr.mxu0 0.0
    %287 = vmatpush2.msra.mxu0 0.0
    %288 = vmatprep.subr.mxu0 0.0
    %289 = vmatpush2.msra.mxu0 0.0
    %290 = vmatprep.subr.mxu0 0.0
    %291 = vmatpush2.msra.mxu0 0.0
    %292 = vmatprep.subr.mxu0 0.0
    %293 = vmatpush2.msra.mxu0 0.0
    %294 = vmatprep.subr.mxu0 0.0
    %295 = vmatpush2.msra.mxu0 0.0
    %296 = vmatprep.subr.mxu0 0.0
    %297 = vmatpush2.msra.mxu0 0.0
    %298 = vmatprep.subr.mxu0 0.0
    %299 = vmatpush2.msra.mxu0 0.0
    %300 = vmatprep.subr.mxu0 0.0
    %301 = vmatpush2.msra.mxu0 0.0
    %302 = vmatprep.subr.mxu0 0.0
    %303 = vmatpush2.msra.mxu0 0.0
    %304 = vmatprep.mubr.f32.mxu0 0.0
    %305 = vmatmul.mubr.f32.gmra.mxu0 %v29
    %v306 = vpop.f32.mrf.mxu0
    %v307 = vadd.f32 %v235, %v306
    %v308 = vpop.f32.mrf.mxu0
    %309 = vmatprep.mubr.f32.mxu0 0.0
    %310 = vmatmul.mubr.f32.gmra.mxu0 %v32
    %v311 = vpop.f32.mrf.mxu0
    %v312 = vadd.f32 %v235, %v311
    %v313 = vpop.f32.mrf.mxu0
    %314 = vmatprep.mubr.f32.mxu0 0.0
    %315 = vmatmul.mubr.f32.gmra.mxu0 %v35
    %v316 = vpop.f32.mrf.mxu0
    %v317 = vadd.f32 %v235, %v316
    %v318 = vpop.f32.mrf.mxu0
    %319 = vmatprep.mubr.f32.mxu0 0.0
    %320 = vmatmul.mubr.f32.gmra.mxu0 %v38
    %v321 = vpop.f32.mrf.mxu0
    %v322 = vadd.f32 %v235, %v321
    %v323 = vpop.f32.mrf.mxu0
    %324 = vdwg.mxu0
    %s325 = scalar_lea.vmem %s1, 12
    %v326 = vld [vmem:[%s325] sm:$0xf]
    %s327 = scalar_lea.vmem %s2, 3
    %v328 = vld [vmem:[%s327] sm:$0x1]
    %v330 = vlaneseq
    %v331 = vshrl.u32 %v330, 7
    %v332 = vsub.s32 0, %v331
    %v333 = vrot.slane %v328, %v332
    %v336 = vsel %vm40, %v326, 0
    %338 = vmatprep.subr.mxu0 0.0
    %339 = vmatpush1.msra.mxu0 0.0
    %340 = vmatprep.subr.mxu0 0.0
    %341 = vmatpush1.msra.mxu0 0.0
    %342 = vmatprep.subr.mxu0 0.0
    %343 = vmatpush1.msra.mxu0 0.0
    %344 = vmatprep.subr.mxu0 0.0
    %345 = vmatpush1.msra.mxu0 0.0
    %346 = vmatprep.subr.mxu0 0.0
    %347 = vmatpush1.msra.mxu0 0.0
    %348 = vmatprep.subr.mxu0 0.0
    %349 = vmatpush1.msra.mxu0 0.0
    %350 = vmatprep.subr.mxu0 0.0
    %351 = vmatpush1.msra.mxu0 0.0
    %352 = vmatprep.subr.mxu0 0.0
    %353 = vmatpush1.msra.mxu0 0.0
    %354 = vmatprep.subr.mxu0 0.0
    %355 = vmatpush1.msra.mxu0 0.0
    %356 = vmatprep.subr.mxu0 0.0
    %357 = vmatpush1.msra.mxu0 0.0
    %358 = vmatprep.subr.mxu0 0.0
    %359 = vmatpush1.msra.mxu0 0.0
    %360 = vmatprep.subr.mxu0 0.0
    %361 = vmatpush1.msra.mxu0 0.0
    %362 = vmatprep.subr.mxu0 0.0
    %363 = vmatpush1.msra.mxu0 0.0
    %364 = vmatprep.subr.mxu0 0.0
    %365 = vmatpush1.msra.mxu0 0.0
    %366 = vmatprep.subr.mxu0 0.0
    %367 = vmatpush1.msra.mxu0 0.0
    %368 = vmatprep.subr.mxu0 0.0
    %369 = vmatpush1.msra.mxu0 %v336
    %370 = vmatprep.subr.mxu0 0.0
    %371 = vmatpush2.msra.mxu0 0.0
    %372 = vmatprep.subr.mxu0 0.0
    %373 = vmatpush2.msra.mxu0 0.0
    %374 = vmatprep.subr.mxu0 0.0
    %375 = vmatpush2.msra.mxu0 0.0
    %376 = vmatprep.subr.mxu0 0.0
    %377 = vmatpush2.msra.mxu0 0.0
    %378 = vmatprep.subr.mxu0 0.0
    %379 = vmatpush2.msra.mxu0 0.0
    %380 = vmatprep.subr.mxu0 0.0
    %381 = vmatpush2.msra.mxu0 0.0
    %382 = vmatprep.subr.mxu0 0.0
    %383 = vmatpush2.msra.mxu0 0.0
    %384 = vmatprep.subr.mxu0 0.0
    %385 = vmatpush2.msra.mxu0 0.0
    %386 = vmatprep.subr.mxu0 0.0
    %387 = vmatpush2.msra.mxu0 0.0
    %388 = vmatprep.subr.mxu0 0.0
    %389 = vmatpush2.msra.mxu0 0.0
    %390 = vmatprep.subr.mxu0 0.0
    %391 = vmatpush2.msra.mxu0 0.0
    %392 = vmatprep.subr.mxu0 0.0
    %393 = vmatpush2.msra.mxu0 0.0
    %394 = vmatprep.subr.mxu0 0.0
    %395 = vmatpush2.msra.mxu0 0.0
    %396 = vmatprep.subr.mxu0 0.0
    %397 = vmatpush2.msra.mxu0 0.0
    %398 = vmatprep.subr.mxu0 0.0
    %399 = vmatpush2.msra.mxu0 0.0
    %400 = vmatprep.subr.mxu0 0.0
    %401 = vmatpush2.msra.mxu0 0.0
    %402 = vmatprep.mubr.f32.mxu0 0.0
    %403 = vmatmul.mubr.f32.gmra.mxu0 %v29
    %v404 = vpop.f32.mrf.mxu0
    %v405 = vadd.f32 %v333, %v404
    %v406 = vpop.f32.mrf.mxu0
    %407 = vmatprep.mubr.f32.mxu0 0.0
    %408 = vmatmul.mubr.f32.gmra.mxu0 %v32
    %v409 = vpop.f32.mrf.mxu0
    %v410 = vadd.f32 %v333, %v409
    %v411 = vpop.f32.mrf.mxu0
    %412 = vmatprep.mubr.f32.mxu0 0.0
    %413 = vmatmul.mubr.f32.gmra.mxu0 %v35
    %v414 = vpop.f32.mrf.mxu0
    %v415 = vadd.f32 %v333, %v414
    %v416 = vpop.f32.mrf.mxu0
    %417 = vmatprep.mubr.f32.mxu0 0.0
    %418 = vmatmul.mubr.f32.gmra.mxu0 %v38
    %v419 = vpop.f32.mrf.mxu0
    %v420 = vadd.f32 %v333, %v419
    %v421 = vpop.f32.mrf.mxu0
    %422 = vdwg.mxu0
    %s423 = scalar_lea.vmem %s1, 16
    %v424 = vld [vmem:[%s423] sm:$0xf]
    %s425 = scalar_lea.vmem %s2, 4
    %v426 = vld [vmem:[%s425] sm:$0x1]
    %v428 = vlaneseq
    %v429 = vshrl.u32 %v428, 7
    %v430 = vsub.s32 0, %v429
    %v431 = vrot.slane %v426, %v430
    %v434 = vsel %vm40, %v424, 0
    %436 = vmatprep.subr.mxu0 0.0
    %437 = vmatpush1.msra.mxu0 0.0
    %438 = vmatprep.subr.mxu0 0.0
    %439 = vmatpush1.msra.mxu0 0.0
    %440 = vmatprep.subr.mxu0 0.0
    %441 = vmatpush1.msra.mxu0 0.0
    %442 = vmatprep.subr.mxu0 0.0
    %443 = vmatpush1.msra.mxu0 0.0
    %444 = vmatprep.subr.mxu0 0.0
    %445 = vmatpush1.msra.mxu0 0.0
    %446 = vmatprep.subr.mxu0 0.0
    %447 = vmatpush1.msra.mxu0 0.0
    %448 = vmatprep.subr.mxu0 0.0
    %449 = vmatpush1.msra.mxu0 0.0
    %450 = vmatprep.subr.mxu0 0.0
    %451 = vmatpush1.msra.mxu0 0.0
    %452 = vmatprep.subr.mxu0 0.0
    %453 = vmatpush1.msra.mxu0 0.0
    %454 = vmatprep.subr.mxu0 0.0
    %455 = vmatpush1.msra.mxu0 0.0
    %456 = vmatprep.subr.mxu0 0.0
    %457 = vmatpush1.msra.mxu0 0.0
    %458 = vmatprep.subr.mxu0 0.0
    %459 = vmatpush1.msra.mxu0 0.0
    %460 = vmatprep.subr.mxu0 0.0
    %461 = vmatpush1.msra.mxu0 0.0
    %462 = vmatprep.subr.mxu0 0.0
    %463 = vmatpush1.msra.mxu0 0.0
    %464 = vmatprep.subr.mxu0 0.0
    %465 = vmatpush1.msra.mxu0 0.0
    %466 = vmatprep.subr.mxu0 0.0
    %467 = vmatpush1.msra.mxu0 %v434
    %468 = vmatprep.subr.mxu0 0.0
    %469 = vmatpush2.msra.mxu0 0.0
    %470 = vmatprep.subr.mxu0 0.0
    %471 = vmatpush2.msra.mxu0 0.0
    %472 = vmatprep.subr.mxu0 0.0
    %473 = vmatpush2.msra.mxu0 0.0
    %474 = vmatprep.subr.mxu0 0.0
    %475 = vmatpush2.msra.mxu0 0.0
    %476 = vmatprep.subr.mxu0 0.0
    %477 = vmatpush2.msra.mxu0 0.0
    %478 = vmatprep.subr.mxu0 0.0
    %479 = vmatpush2.msra.mxu0 0.0
    %480 = vmatprep.subr.mxu0 0.0
    %481 = vmatpush2.msra.mxu0 0.0
    %482 = vmatprep.subr.mxu0 0.0
    %483 = vmatpush2.msra.mxu0 0.0
    %484 = vmatprep.subr.mxu0 0.0
    %485 = vmatpush2.msra.mxu0 0.0
    %486 = vmatprep.subr.mxu0 0.0
    %487 = vmatpush2.msra.mxu0 0.0
    %488 = vmatprep.subr.mxu0 0.0
    %489 = vmatpush2.msra.mxu0 0.0
    %490 = vmatprep.subr.mxu0 0.0
    %491 = vmatpush2.msra.mxu0 0.0
    %492 = vmatprep.subr.mxu0 0.0
    %493 = vmatpush2.msra.mxu0 0.0
    %494 = vmatprep.subr.mxu0 0.0
    %495 = vmatpush2.msra.mxu0 0.0
    %496 = vmatprep.subr.mxu0 0.0
    %497 = vmatpush2.msra.mxu0 0.0
    %498 = vmatprep.subr.mxu0 0.0
    %499 = vmatpush2.msra.mxu0 0.0
    %500 = vmatprep.mubr.f32.mxu0 0.0
    %501 = vmatmul.mubr.f32.gmra.mxu0 %v29
    %v502 = vpop.f32.mrf.mxu0
    %v503 = vadd.f32 %v431, %v502
    %v504 = vpop.f32.mrf.mxu0
    %505 = vmatprep.mubr.f32.mxu0 0.0
    %506 = vmatmul.mubr.f32.gmra.mxu0 %v32
    %v507 = vpop.f32.mrf.mxu0
    %v508 = vadd.f32 %v431, %v507
    %v509 = vpop.f32.mrf.mxu0
    %510 = vmatprep.mubr.f32.mxu0 0.0
    %511 = vmatmul.mubr.f32.gmra.mxu0 %v35
    %v512 = vpop.f32.mrf.mxu0
    %v513 = vadd.f32 %v431, %v512
    %v514 = vpop.f32.mrf.mxu0
    %515 = vmatprep.mubr.f32.mxu0 0.0
    %516 = vmatmul.mubr.f32.gmra.mxu0 %v38
    %v517 = vpop.f32.mrf.mxu0
    %v518 = vadd.f32 %v431, %v517
    %v519 = vpop.f32.mrf.mxu0
    %520 = vdwg.mxu0
    %s521 = scalar_lea.vmem %s1, 20
    %v522 = vld [vmem:[%s521] sm:$0xf]
    %s523 = scalar_lea.vmem %s2, 5
    %v524 = vld [vmem:[%s523] sm:$0x1]
    %v526 = vlaneseq
    %v527 = vshrl.u32 %v526, 7
    %v528 = vsub.s32 0, %v527
    %v529 = vrot.slane %v524, %v528
    %v532 = vsel %vm40, %v522, 0
    %534 = vmatprep.subr.mxu0 0.0
    %535 = vmatpush1.msra.mxu0 0.0
    %536 = vmatprep.subr.mxu0 0.0
    %537 = vmatpush1.msra.mxu0 0.0
    %538 = vmatprep.subr.mxu0 0.0
    %539 = vmatpush1.msra.mxu0 0.0
    %540 = vmatprep.subr.mxu0 0.0
    %541 = vmatpush1.msra.mxu0 0.0
    %542 = vmatprep.subr.mxu0 0.0
    %543 = vmatpush1.msra.mxu0 0.0
    %544 = vmatprep.subr.mxu0 0.0
    %545 = vmatpush1.msra.mxu0 0.0
    %546 = vmatprep.subr.mxu0 0.0
    %547 = vmatpush1.msra.mxu0 0.0
    %548 = vmatprep.subr.mxu0 0.0
    %549 = vmatpush1.msra.mxu0 0.0
    %550 = vmatprep.subr.mxu0 0.0
    %551 = vmatpush1.msra.mxu0 0.0
    %552 = vmatprep.subr.mxu0 0.0
    %553 = vmatpush1.msra.mxu0 0.0
    %554 = vmatprep.subr.mxu0 0.0
    %555 = vmatpush1.msra.mxu0 0.0
    %556 = vmatprep.subr.mxu0 0.0
    %557 = vmatpush1.msra.mxu0 0.0
    %558 = vmatprep.subr.mxu0 0.0
    %559 = vmatpush1.msra.mxu0 0.0
    %560 = vmatprep.subr.mxu0 0.0
    %561 = vmatpush1.msra.mxu0 0.0
    %562 = vmatprep.subr.mxu0 0.0
    %563 = vmatpush1.msra.mxu0 0.0
    %564 = vmatprep.subr.mxu0 0.0
    %565 = vmatpush1.msra.mxu0 %v532
    %566 = vmatprep.subr.mxu0 0.0
    %567 = vmatpush2.msra.mxu0 0.0
    %568 = vmatprep.subr.mxu0 0.0
    %569 = vmatpush2.msra.mxu0 0.0
    %570 = vmatprep.subr.mxu0 0.0
    %571 = vmatpush2.msra.mxu0 0.0
    %572 = vmatprep.subr.mxu0 0.0
    %573 = vmatpush2.msra.mxu0 0.0
    %574 = vmatprep.subr.mxu0 0.0
    %575 = vmatpush2.msra.mxu0 0.0
    %576 = vmatprep.subr.mxu0 0.0
    %577 = vmatpush2.msra.mxu0 0.0
    %578 = vmatprep.subr.mxu0 0.0
    %579 = vmatpush2.msra.mxu0 0.0
    %580 = vmatprep.subr.mxu0 0.0
    %581 = vmatpush2.msra.mxu0 0.0
    %582 = vmatprep.subr.mxu0 0.0
    %583 = vmatpush2.msra.mxu0 0.0
    %584 = vmatprep.subr.mxu0 0.0
    %585 = vmatpush2.msra.mxu0 0.0
    %586 = vmatprep.subr.mxu0 0.0
    %587 = vmatpush2.msra.mxu0 0.0
    %588 = vmatprep.subr.mxu0 0.0
    %589 = vmatpush2.msra.mxu0 0.0
    %590 = vmatprep.subr.mxu0 0.0
    %591 = vmatpush2.msra.mxu0 0.0
    %592 = vmatprep.subr.mxu0 0.0
    %593 = vmatpush2.msra.mxu0 0.0
    %594 = vmatprep.subr.mxu0 0.0
    %595 = vmatpush2.msra.mxu0 0.0
    %596 = vmatprep.subr.mxu0 0.0
    %597 = vmatpush2.msra.mxu0 0.0
    %598 = vmatprep.mubr.f32.mxu0 0.0
    %599 = vmatmul.mubr.f32.gmra.mxu0 %v29
    %v600 = vpop.f32.mrf.mxu0
    %v601 = vadd.f32 %v529, %v600
    %v602 = vpop.f32.mrf.mxu0
    %603 = vmatprep.mubr.f32.mxu0 0.0
    %604 = vmatmul.mubr.f32.gmra.mxu0 %v32
    %v605 = vpop.f32.mrf.mxu0
    %v606 = vadd.f32 %v529, %v605
    %v607 = vpop.f32.mrf.mxu0
    %608 = vmatprep.mubr.f32.mxu0 0.0
    %609 = vmatmul.mubr.f32.gmra.mxu0 %v35
    %v610 = vpop.f32.mrf.mxu0
    %v611 = vadd.f32 %v529, %v610
    %v612 = vpop.f32.mrf.mxu0
    %613 = vmatprep.mubr.f32.mxu0 0.0
    %614 = vmatmul.mubr.f32.gmra.mxu0 %v38
    %v615 = vpop.f32.mrf.mxu0
    %v616 = vadd.f32 %v529, %v615
    %v617 = vpop.f32.mrf.mxu0
    %618 = vdwg.mxu0
    %s619 = scalar_lea.vmem %s1, 24
    %v620 = vld [vmem:[%s619] sm:$0xf]
    %s621 = scalar_lea.vmem %s2, 6
    %v622 = vld [vmem:[%s621] sm:$0x1]
    %v624 = vlaneseq
    %v625 = vshrl.u32 %v624, 7
    %v626 = vsub.s32 0, %v625
    %v627 = vrot.slane %v622, %v626
    %v630 = vsel %vm40, %v620, 0
    %632 = vmatprep.subr.mxu0 0.0
    %633 = vmatpush1.msra.mxu0 0.0
    %634 = vmatprep.subr.mxu0 0.0
    %635 = vmatpush1.msra.mxu0 0.0
    %636 = vmatprep.subr.mxu0 0.0
    %637 = vmatpush1.msra.mxu0 0.0
    %638 = vmatprep.subr.mxu0 0.0
    %639 = vmatpush1.msra.mxu0 0.0
    %640 = vmatprep.subr.mxu0 0.0
    %641 = vmatpush1.msra.mxu0 0.0
    %642 = vmatprep.subr.mxu0 0.0
    %643 = vmatpush1.msra.mxu0 0.0
    %644 = vmatprep.subr.mxu0 0.0
    %645 = vmatpush1.msra.mxu0 0.0
    %646 = vmatprep.subr.mxu0 0.0
    %647 = vmatpush1.msra.mxu0 0.0
    %648 = vmatprep.subr.mxu0 0.0
    %649 = vmatpush1.msra.mxu0 0.0
    %650 = vmatprep.subr.mxu0 0.0
    %651 = vmatpush1.msra.mxu0 0.0
    %652 = vmatprep.subr.mxu0 0.0
    %653 = vmatpush1.msra.mxu0 0.0
    %654 = vmatprep.subr.mxu0 0.0
    %655 = vmatpush1.msra.mxu0 0.0
    %656 = vmatprep.subr.mxu0 0.0
    %657 = vmatpush1.msra.mxu0 0.0
    %658 = vmatprep.subr.mxu0 0.0
    %659 = vmatpush1.msra.mxu0 0.0
    %660 = vmatprep.subr.mxu0 0.0
    %661 = vmatpush1.msra.mxu0 0.0
    %662 = vmatprep.subr.mxu0 0.0
    %663 = vmatpush1.msra.mxu0 %v630
    %664 = vmatprep.subr.mxu0 0.0
    %665 = vmatpush2.msra.mxu0 0.0
    %666 = vmatprep.subr.mxu0 0.0
    %667 = vmatpush2.msra.mxu0 0.0
    %668 = vmatprep.subr.mxu0 0.0
    %669 = vmatpush2.msra.mxu0 0.0
    %670 = vmatprep.subr.mxu0 0.0
    %671 = vmatpush2.msra.mxu0 0.0
    %672 = vmatprep.subr.mxu0 0.0
    %673 = vmatpush2.msra.mxu0 0.0
    %674 = vmatprep.subr.mxu0 0.0
    %675 = vmatpush2.msra.mxu0 0.0
    %676 = vmatprep.subr.mxu0 0.0
    %677 = vmatpush2.msra.mxu0 0.0
    %678 = vmatprep.subr.mxu0 0.0
    %679 = vmatpush2.msra.mxu0 0.0
    %680 = vmatprep.subr.mxu0 0.0
    %681 = vmatpush2.msra.mxu0 0.0
    %682 = vmatprep.subr.mxu0 0.0
    %683 = vmatpush2.msra.mxu0 0.0
    %684 = vmatprep.subr.mxu0 0.0
    %685 = vmatpush2.msra.mxu0 0.0
    %686 = vmatprep.subr.mxu0 0.0
    %687 = vmatpush2.msra.mxu0 0.0
    %688 = vmatprep.subr.mxu0 0.0
    %689 = vmatpush2.msra.mxu0 0.0
    %690 = vmatprep.subr.mxu0 0.0
    %691 = vmatpush2.msra.mxu0 0.0
    %692 = vmatprep.subr.mxu0 0.0
    %693 = vmatpush2.msra.mxu0 0.0
    %694 = vmatprep.subr.mxu0 0.0
    %695 = vmatpush2.msra.mxu0 0.0
    %696 = vmatprep.mubr.f32.mxu0 0.0
    %697 = vmatmul.mubr.f32.gmra.mxu0 %v29
    %v698 = vpop.f32.mrf.mxu0
    %v699 = vadd.f32 %v627, %v698
    %v700 = vpop.f32.mrf.mxu0
    %701 = vmatprep.mubr.f32.mxu0 0.0
    %702 = vmatmul.mubr.f32.gmra.mxu0 %v32
    %v703 = vpop.f32.mrf.mxu0
    %v704 = vadd.f32 %v627, %v703
    %v705 = vpop.f32.mrf.mxu0
    %706 = vmatprep.mubr.f32.mxu0 0.0
    %707 = vmatmul.mubr.f32.gmra.mxu0 %v35
    %v708 = vpop.f32.mrf.mxu0
    %v709 = vadd.f32 %v627, %v708
    %v710 = vpop.f32.mrf.mxu0
    %711 = vmatprep.mubr.f32.mxu0 0.0
    %712 = vmatmul.mubr.f32.gmra.mxu0 %v38
    %v713 = vpop.f32.mrf.mxu0
    %v714 = vadd.f32 %v627, %v713
    %v715 = vpop.f32.mrf.mxu0
    %716 = vdwg.mxu0
    %s717 = scalar_lea.vmem %s1, 28
    %v718 = vld [vmem:[%s717] sm:$0xf]
    %s719 = scalar_lea.vmem %s2, 7
    %v720 = vld [vmem:[%s719] sm:$0x1]
    %v722 = vlaneseq
    %v723 = vshrl.u32 %v722, 7
    %v724 = vsub.s32 0, %v723
    %v725 = vrot.slane %v720, %v724
    %v728 = vsel %vm40, %v718, 0
    %730 = vmatprep.subr.mxu0 0.0
    %731 = vmatpush1.msra.mxu0 0.0
    %732 = vmatprep.subr.mxu0 0.0
    %733 = vmatpush1.msra.mxu0 0.0
    %734 = vmatprep.subr.mxu0 0.0
    %735 = vmatpush1.msra.mxu0 0.0
    %736 = vmatprep.subr.mxu0 0.0
    %737 = vmatpush1.msra.mxu0 0.0
    %738 = vmatprep.subr.mxu0 0.0
    %739 = vmatpush1.msra.mxu0 0.0
    %740 = vmatprep.subr.mxu0 0.0
    %741 = vmatpush1.msra.mxu0 0.0
    %742 = vmatprep.subr.mxu0 0.0
    %743 = vmatpush1.msra.mxu0 0.0
    %744 = vmatprep.subr.mxu0 0.0
    %745 = vmatpush1.msra.mxu0 0.0
    %746 = vmatprep.subr.mxu0 0.0
    %747 = vmatpush1.msra.mxu0 0.0
    %748 = vmatprep.subr.mxu0 0.0
    %749 = vmatpush1.msra.mxu0 0.0
    %750 = vmatprep.subr.mxu0 0.0
    %751 = vmatpush1.msra.mxu0 0.0
    %752 = vmatprep.subr.mxu0 0.0
    %753 = vmatpush1.msra.mxu0 0.0
    %754 = vmatprep.subr.mxu0 0.0
    %755 = vmatpush1.msra.mxu0 0.0
    %756 = vmatprep.subr.mxu0 0.0
    %757 = vmatpush1.msra.mxu0 0.0
    %758 = vmatprep.subr.mxu0 0.0
    %759 = vmatpush1.msra.mxu0 0.0
    %760 = vmatprep.subr.mxu0 0.0
    %761 = vmatpush1.msra.mxu0 %v728
    %762 = vmatprep.subr.mxu0 0.0
    %763 = vmatpush2.msra.mxu0 0.0
    %764 = vmatprep.subr.mxu0 0.0
    %765 = vmatpush2.msra.mxu0 0.0
    %766 = vmatprep.subr.mxu0 0.0
    %767 = vmatpush2.msra.mxu0 0.0
    %768 = vmatprep.subr.mxu0 0.0
    %769 = vmatpush2.msra.mxu0 0.0
    %770 = vmatprep.subr.mxu0 0.0
    %771 = vmatpush2.msra.mxu0 0.0
    %772 = vmatprep.subr.mxu0 0.0
    %773 = vmatpush2.msra.mxu0 0.0
    %774 = vmatprep.subr.mxu0 0.0
    %775 = vmatpush2.msra.mxu0 0.0
    %776 = vmatprep.subr.mxu0 0.0
    %777 = vmatpush2.msra.mxu0 0.0
    %778 = vmatprep.subr.mxu0 0.0
    %779 = vmatpush2.msra.mxu0 0.0
    %780 = vmatprep.subr.mxu0 0.0
    %781 = vmatpush2.msra.mxu0 0.0
    %782 = vmatprep.subr.mxu0 0.0
    %783 = vmatpush2.msra.mxu0 0.0
    %784 = vmatprep.subr.mxu0 0.0
    %785 = vmatpush2.msra.mxu0 0.0
    %786 = vmatprep.subr.mxu0 0.0
    %787 = vmatpush2.msra.mxu0 0.0
    %788 = vmatprep.subr.mxu0 0.0
    %789 = vmatpush2.msra.mxu0 0.0
    %790 = vmatprep.subr.mxu0 0.0
    %791 = vmatpush2.msra.mxu0 0.0
    %792 = vmatprep.subr.mxu0 0.0
    %793 = vmatpush2.msra.mxu0 0.0
    %794 = vmatprep.mubr.f32.mxu0 0.0
    %795 = vmatmul.mubr.f32.gmra.mxu0 %v29
    %v796 = vpop.f32.mrf.mxu0
    %v797 = vadd.f32 %v725, %v796
    %v798 = vpop.f32.mrf.mxu0
    %799 = vmatprep.mubr.f32.mxu0 0.0
    %800 = vmatmul.mubr.f32.gmra.mxu0 %v32
    %v801 = vpop.f32.mrf.mxu0
    %v802 = vadd.f32 %v725, %v801
    %v803 = vpop.f32.mrf.mxu0
    %804 = vmatprep.mubr.f32.mxu0 0.0
    %805 = vmatmul.mubr.f32.gmra.mxu0 %v35
    %v806 = vpop.f32.mrf.mxu0
    %v807 = vadd.f32 %v725, %v806
    %v808 = vpop.f32.mrf.mxu0
    %809 = vmatprep.mubr.f32.mxu0 0.0
    %810 = vmatmul.mubr.f32.gmra.mxu0 %v38
    %v811 = vpop.f32.mrf.mxu0
    %v812 = vadd.f32 %v725, %v811
    %v813 = vpop.f32.mrf.mxu0
    %814 = vdwg.mxu0
    %s815 = scalar_lea.vmem %s1, 32
    %v816 = vld [vmem:[%s815] sm:$0xf]
    %s817 = scalar_lea.vmem %s2, 8
    %v818 = vld [vmem:[%s817] sm:$0x1]
    %v820 = vlaneseq
    %v821 = vshrl.u32 %v820, 7
    %v822 = vsub.s32 0, %v821
    %v823 = vrot.slane %v818, %v822
    %v826 = vsel %vm40, %v816, 0
    %828 = vmatprep.subr.mxu0 0.0
    %829 = vmatpush1.msra.mxu0 0.0
    %830 = vmatprep.subr.mxu0 0.0
    %831 = vmatpush1.msra.mxu0 0.0
    %832 = vmatprep.subr.mxu0 0.0
    %833 = vmatpush1.msra.mxu0 0.0
    %834 = vmatprep.subr.mxu0 0.0
    %835 = vmatpush1.msra.mxu0 0.0
    %836 = vmatprep.subr.mxu0 0.0
    %837 = vmatpush1.msra.mxu0 0.0
    %838 = vmatprep.subr.mxu0 0.0
    %839 = vmatpush1.msra.mxu0 0.0
    %840 = vmatprep.subr.mxu0 0.0
    %841 = vmatpush1.msra.mxu0 0.0
    %842 = vmatprep.subr.mxu0 0.0
    %843 = vmatpush1.msra.mxu0 0.0
    %844 = vmatprep.subr.mxu0 0.0
    %845 = vmatpush1.msra.mxu0 0.0
    %846 = vmatprep.subr.mxu0 0.0
    %847 = vmatpush1.msra.mxu0 0.0
    %848 = vmatprep.subr.mxu0 0.0
    %849 = vmatpush1.msra.mxu0 0.0
    %850 = vmatprep.subr.mxu0 0.0
    %851 = vmatpush1.msra.mxu0 0.0
    %852 = vmatprep.subr.mxu0 0.0
    %853 = vmatpush1.msra.mxu0 0.0
    %854 = vmatprep.subr.mxu0 0.0
    %855 = vmatpush1.msra.mxu0 0.0
    %856 = vmatprep.subr.mxu0 0.0
    %857 = vmatpush1.msra.mxu0 0.0
    %858 = vmatprep.subr.mxu0 0.0
    %859 = vmatpush1.msra.mxu0 %v826
    %860 = vmatprep.subr.mxu0 0.0
    %861 = vmatpush2.msra.mxu0 0.0
    %862 = vmatprep.subr.mxu0 0.0
    %863 = vmatpush2.msra.mxu0 0.0
    %864 = vmatprep.subr.mxu0 0.0
    %865 = vmatpush2.msra.mxu0 0.0
    %866 = vmatprep.subr.mxu0 0.0
    %867 = vmatpush2.msra.mxu0 0.0
    %868 = vmatprep.subr.mxu0 0.0
    %869 = vmatpush2.msra.mxu0 0.0
    %870 = vmatprep.subr.mxu0 0.0
    %871 = vmatpush2.msra.mxu0 0.0
    %872 = vmatprep.subr.mxu0 0.0
    %873 = vmatpush2.msra.mxu0 0.0
    %874 = vmatprep.subr.mxu0 0.0
    %875 = vmatpush2.msra.mxu0 0.0
    %876 = vmatprep.subr.mxu0 0.0
    %877 = vmatpush2.msra.mxu0 0.0
    %878 = vmatprep.subr.mxu0 0.0
    %879 = vmatpush2.msra.mxu0 0.0
    %880 = vmatprep.subr.mxu0 0.0
    %881 = vmatpush2.msra.mxu0 0.0
    %882 = vmatprep.subr.mxu0 0.0
    %883 = vmatpush2.msra.mxu0 0.0
    %884 = vmatprep.subr.mxu0 0.0
    %885 = vmatpush2.msra.mxu0 0.0
    %886 = vmatprep.subr.mxu0 0.0
    %887 = vmatpush2.msra.mxu0 0.0
    %888 = vmatprep.subr.mxu0 0.0
    %889 = vmatpush2.msra.mxu0 0.0
    %890 = vmatprep.subr.mxu0 0.0
    %891 = vmatpush2.msra.mxu0 0.0
    %892 = vmatprep.mubr.f32.mxu0 0.0
    %893 = vmatmul.mubr.f32.gmra.mxu0 %v29
    %v894 = vpop.f32.mrf.mxu0
    %v895 = vadd.f32 %v823, %v894
    %v896 = vpop.f32.mrf.mxu0
    %897 = vmatprep.mubr.f32.mxu0 0.0
    %898 = vmatmul.mubr.f32.gmra.mxu0 %v32
    %v899 = vpop.f32.mrf.mxu0
    %v900 = vadd.f32 %v823, %v899
    %v901 = vpop.f32.mrf.mxu0
    %902 = vmatprep.mubr.f32.mxu0 0.0
    %903 = vmatmul.mubr.f32.gmra.mxu0 %v35
    %v904 = vpop.f32.mrf.mxu0
    %v905 = vadd.f32 %v823, %v904
    %v906 = vpop.f32.mrf.mxu0
    %907 = vmatprep.mubr.f32.mxu0 0.0
    %908 = vmatmul.mubr.f32.gmra.mxu0 %v38
    %v909 = vpop.f32.mrf.mxu0
    %v910 = vadd.f32 %v823, %v909
    %v911 = vpop.f32.mrf.mxu0
    %912 = vdwg.mxu0
    %v913 = vmax.f32 %v111, %v209
    %v914 = vmax.f32 %v116, %v214
    %v915 = vmax.f32 %v121, %v219
    %v916 = vmax.f32 %v126, %v224
    %v917 = vmax.f32 %v913, %v307
    %v918 = vmax.f32 %v914, %v312
    %v919 = vmax.f32 %v915, %v317
    %v920 = vmax.f32 %v916, %v322
    %v921 = vsub.f32 %v111, %v917
    %v922 = vsub.f32 %v116, %v918
    %v923 = vsub.f32 %v121, %v919
    %v924 = vsub.f32 %v126, %v920
    %v925 = vmul.f32 %v921, 1.442695
    %v926 = vpow.pop %v925
    %v927 = vmul.f32 %v922, 1.442695
    %v928 = vpow.pop %v927
    %v929 = vmul.f32 %v923, 1.442695
    %v930 = vpow.pop %v929
    %v931 = vmul.f32 %v924, 1.442695
    %v932 = vpow.pop %v931
    %vm933 = vcmp.gt.f32.partialorder %v699, 20.0
    %vm934 = vcmp.gt.f32.partialorder %v704, 20.0
    %vm935 = vcmp.gt.f32.partialorder %v709, 20.0
    %vm936 = vcmp.gt.f32.partialorder %v714, 20.0
    %v937 = vmin.f32 %v699, 20.0
    %v938 = vmin.f32 %v704, 20.0
    %v939 = vmin.f32 %v709, 20.0
    %v940 = vmin.f32 %v714, 20.0
    %v941 = vmul.f32 %v937, 1.442695
    %v942 = vpow.pop %v941
    %v943 = vmul.f32 %v938, 1.442695
    %v944 = vpow.pop %v943
    %v945 = vmul.f32 %v939, 1.442695
    %v946 = vpow.pop %v945
    %v947 = vmul.f32 %v940, 1.442695
    %v948 = vpow.pop %v947
    %v949 = vadd.f32 %v942, 1.0
    %v950 = vadd.f32 %v944, 1.0
    %v951 = vadd.f32 %v946, 1.0
    %v952 = vadd.f32 %v948, 1.0
    %v953 = vlog2.pop %v949
    %v954 = vmul.f32 %v953, 0.6931472
    %v955 = vlog2.pop %v950
    %v956 = vmul.f32 %v955, 0.6931472
    %v957 = vlog2.pop %v951
    %v958 = vmul.f32 %v957, 0.6931472
    %v959 = vlog2.pop %v952
    %v960 = vmul.f32 %v959, 0.6931472
    %v961 = vsel %vm933, %v699, %v954
    %v962 = vsel %vm934, %v704, %v956
    %v963 = vsel %vm935, %v709, %v958
    %v964 = vsel %vm936, %v714, %v960
    %v965 = vadd.f32 %v961, 1e-06
    %v966 = vadd.f32 %v962, 1e-06
    %v967 = vadd.f32 %v963, 1e-06
    %v968 = vadd.f32 %v964, 1e-06
    %v969 = vrcp.pop %v965
    %v970 = vmul.f32 1.0, %v969
    %v971 = vrcp.pop %v966
    %v972 = vmul.f32 1.0, %v971
    %v973 = vrcp.pop %v967
    %v974 = vmul.f32 1.0, %v973
    %v975 = vrcp.pop %v968
    %v976 = vmul.f32 1.0, %v975
    %v977 = vadd.f32 %v15, 0.5
    %v978 = vadd.f32 %v16, 0.5
    %v979 = vadd.f32 %v17, 0.5
    %v980 = vadd.f32 %v18, 0.5
    %v981 = vsub.f32 %v977, %v405
    %v982 = vsub.f32 %v978, %v410
    %v983 = vsub.f32 %v979, %v415
    %v984 = vsub.f32 %v980, %v420
    %v985 = vmul.f32 %v981, %v970
    %v986 = vmul.f32 %v982, %v972
    %v987 = vmul.f32 %v983, %v974
    %v988 = vmul.f32 %v984, %v976
    %v989 = vmul.f32 %v985, 0.5
    %v990 = vmul.f32 %v986, 0.5
    %v991 = vmul.f32 %v987, 0.5
    %v992 = vmul.f32 %v988, 0.5
    %v993 = vtanh.pop %v989
    %v994 = vtanh.pop %v990
    %v995 = vtanh.pop %v991
    %v996 = vtanh.pop %v992
    %v997 = vmul.f32 %v993, 0.5
    %v998 = vmul.f32 %v994, 0.5
    %v999 = vmul.f32 %v995, 0.5
    %v1000 = vmul.f32 %v996, 0.5
    %v1001 = vadd.f32 %v997, 0.5
    %v1002 = vadd.f32 %v998, 0.5
    %v1003 = vadd.f32 %v999, 0.5
    %v1004 = vadd.f32 %v1000, 0.5
    %v1005 = vsub.f32 %v15, 0.5
    %v1006 = vsub.f32 %v16, 0.5
    %v1007 = vsub.f32 %v17, 0.5
    %v1008 = vsub.f32 %v18, 0.5
    %v1009 = vsub.f32 %v1005, %v405
    %v1010 = vsub.f32 %v1006, %v410
    %v1011 = vsub.f32 %v1007, %v415
    %v1012 = vsub.f32 %v1008, %v420
    %v1013 = vmul.f32 %v1009, %v970
    %v1014 = vmul.f32 %v1010, %v972
    %v1015 = vmul.f32 %v1011, %v974
    %v1016 = vmul.f32 %v1012, %v976
    %v1017 = vmul.f32 %v1013, 0.5
    %v1018 = vmul.f32 %v1014, 0.5
    %v1019 = vmul.f32 %v1015, 0.5
    %v1020 = vmul.f32 %v1016, 0.5
    %v1021 = vtanh.pop %v1017
    %v1022 = vtanh.pop %v1018
    %v1023 = vtanh.pop %v1019
    %v1024 = vtanh.pop %v1020
    %v1025 = vmul.f32 %v1021, 0.5
    %v1026 = vmul.f32 %v1022, 0.5
    %v1027 = vmul.f32 %v1023, 0.5
    %v1028 = vmul.f32 %v1024, 0.5
    %v1029 = vadd.f32 %v1025, 0.5
    %v1030 = vadd.f32 %v1026, 0.5
    %v1031 = vadd.f32 %v1027, 0.5
    %v1032 = vadd.f32 %v1028, 0.5
    %v1033 = vsub.f32 %v1001, %v1029
    %v1034 = vsub.f32 %v1002, %v1030
    %v1035 = vsub.f32 %v1003, %v1031
    %v1036 = vsub.f32 %v1004, %v1032
    %v1037 = vmul.f32 %v926, %v1033
    %v1038 = vmul.f32 %v928, %v1034
    %v1039 = vmul.f32 %v930, %v1035
    %v1040 = vmul.f32 %v932, %v1036
    %v1041 = vadd.f32 %v1037, 0.0
    %v1042 = vadd.f32 %v1038, 0.0
    %v1043 = vadd.f32 %v1039, 0.0
    %v1044 = vadd.f32 %v1040, 0.0
    %v1045 = vadd.f32 %v926, 0.0
    %v1046 = vadd.f32 %v928, 0.0
    %v1047 = vadd.f32 %v930, 0.0
    %v1048 = vadd.f32 %v932, 0.0
    %v1049 = vsub.f32 %v209, %v917
    %v1050 = vsub.f32 %v214, %v918
    %v1051 = vsub.f32 %v219, %v919
    %v1052 = vsub.f32 %v224, %v920
    %v1053 = vmul.f32 %v1049, 1.442695
    %v1054 = vpow.pop %v1053
    %v1055 = vmul.f32 %v1050, 1.442695
    %v1056 = vpow.pop %v1055
    %v1057 = vmul.f32 %v1051, 1.442695
    %v1058 = vpow.pop %v1057
    %v1059 = vmul.f32 %v1052, 1.442695
    %v1060 = vpow.pop %v1059
    %vm1061 = vcmp.gt.f32.partialorder %v797, 20.0
    %vm1062 = vcmp.gt.f32.partialorder %v802, 20.0
    %vm1063 = vcmp.gt.f32.partialorder %v807, 20.0
    %vm1064 = vcmp.gt.f32.partialorder %v812, 20.0
    %v1065 = vmin.f32 %v797, 20.0
    %v1066 = vmin.f32 %v802, 20.0
    %v1067 = vmin.f32 %v807, 20.0
    %v1068 = vmin.f32 %v812, 20.0
    %v1069 = vmul.f32 %v1065, 1.442695
    %v1070 = vpow.pop %v1069
    %v1071 = vmul.f32 %v1066, 1.442695
    %v1072 = vpow.pop %v1071
    %v1073 = vmul.f32 %v1067, 1.442695
    %v1074 = vpow.pop %v1073
    %v1075 = vmul.f32 %v1068, 1.442695
    %v1076 = vpow.pop %v1075
    %v1077 = vadd.f32 %v1070, 1.0
    %v1078 = vadd.f32 %v1072, 1.0
    %v1079 = vadd.f32 %v1074, 1.0
    %v1080 = vadd.f32 %v1076, 1.0
    %v1081 = vlog2.pop %v1077
    %v1082 = vmul.f32 %v1081, 0.6931472
    %v1083 = vlog2.pop %v1078
    %v1084 = vmul.f32 %v1083, 0.6931472
    %v1085 = vlog2.pop %v1079
    %v1086 = vmul.f32 %v1085, 0.6931472
    %v1087 = vlog2.pop %v1080
    %v1088 = vmul.f32 %v1087, 0.6931472
    %v1089 = vsel %vm1061, %v797, %v1082
    %v1090 = vsel %vm1062, %v802, %v1084
    %v1091 = vsel %vm1063, %v807, %v1086
    %v1092 = vsel %vm1064, %v812, %v1088
    %v1093 = vadd.f32 %v1089, 1e-06
    %v1094 = vadd.f32 %v1090, 1e-06
    %v1095 = vadd.f32 %v1091, 1e-06
    %v1096 = vadd.f32 %v1092, 1e-06
    %v1097 = vrcp.pop %v1093
    %v1098 = vmul.f32 1.0, %v1097
    %v1099 = vrcp.pop %v1094
    %v1100 = vmul.f32 1.0, %v1099
    %v1101 = vrcp.pop %v1095
    %v1102 = vmul.f32 1.0, %v1101
    %v1103 = vrcp.pop %v1096
    %v1104 = vmul.f32 1.0, %v1103
    %v1105 = vsub.f32 %v977, %v503
    %v1106 = vsub.f32 %v978, %v508
    %v1107 = vsub.f32 %v979, %v513
    %v1108 = vsub.f32 %v980, %v518
    %v1109 = vmul.f32 %v1105, %v1098
    %v1110 = vmul.f32 %v1106, %v1100
    %v1111 = vmul.f32 %v1107, %v1102
    %v1112 = vmul.f32 %v1108, %v1104
    %v1113 = vmul.f32 %v1109, 0.5
    %v1114 = vmul.f32 %v1110, 0.5
    %v1115 = vmul.f32 %v1111, 0.5
    %v1116 = vmul.f32 %v1112, 0.5
    %v1117 = vtanh.pop %v1113
    %v1118 = vtanh.pop %v1114
    %v1119 = vtanh.pop %v1115
    %v1120 = vtanh.pop %v1116
    %v1121 = vmul.f32 %v1117, 0.5
    %v1122 = vmul.f32 %v1118, 0.5
    %v1123 = vmul.f32 %v1119, 0.5
    %v1124 = vmul.f32 %v1120, 0.5
    %v1125 = vadd.f32 %v1121, 0.5
    %v1126 = vadd.f32 %v1122, 0.5
    %v1127 = vadd.f32 %v1123, 0.5
    %v1128 = vadd.f32 %v1124, 0.5
    %v1129 = vsub.f32 %v1005, %v503
    %v1130 = vsub.f32 %v1006, %v508
    %v1131 = vsub.f32 %v1007, %v513
    %v1132 = vsub.f32 %v1008, %v518
    %v1133 = vmul.f32 %v1129, %v1098
    %v1134 = vmul.f32 %v1130, %v1100
    %v1135 = vmul.f32 %v1131, %v1102
    %v1136 = vmul.f32 %v1132, %v1104
    %v1137 = vmul.f32 %v1133, 0.5
    %v1138 = vmul.f32 %v1134, 0.5
    %v1139 = vmul.f32 %v1135, 0.5
    %v1140 = vmul.f32 %v1136, 0.5
    %v1141 = vtanh.pop %v1137
    %v1142 = vtanh.pop %v1138
    %v1143 = vtanh.pop %v1139
    %v1144 = vtanh.pop %v1140
    %v1145 = vmul.f32 %v1141, 0.5
    %v1146 = vmul.f32 %v1142, 0.5
    %v1147 = vmul.f32 %v1143, 0.5
    %v1148 = vmul.f32 %v1144, 0.5
    %v1149 = vadd.f32 %v1145, 0.5
    %v1150 = vadd.f32 %v1146, 0.5
    %v1151 = vadd.f32 %v1147, 0.5
    %v1152 = vadd.f32 %v1148, 0.5
    %v1153 = vsub.f32 %v1125, %v1149
    %v1154 = vsub.f32 %v1126, %v1150
    %v1155 = vsub.f32 %v1127, %v1151
    %v1156 = vsub.f32 %v1128, %v1152
    %v1157 = vmul.f32 %v1054, %v1153
    %v1158 = vmul.f32 %v1056, %v1154
    %v1159 = vmul.f32 %v1058, %v1155
    %v1160 = vmul.f32 %v1060, %v1156
    %v1161 = vadd.f32 %v1041, %v1157
    %v1162 = vadd.f32 %v1042, %v1158
    %v1163 = vadd.f32 %v1043, %v1159
    %v1164 = vadd.f32 %v1044, %v1160
    %v1165 = vadd.f32 %v1045, %v1054
    %v1166 = vadd.f32 %v1046, %v1056
    %v1167 = vadd.f32 %v1047, %v1058
    %v1168 = vadd.f32 %v1048, %v1060
    %v1169 = vsub.f32 %v307, %v917
    %v1170 = vsub.f32 %v312, %v918
    %v1171 = vsub.f32 %v317, %v919
    %v1172 = vsub.f32 %v322, %v920
    %v1173 = vmul.f32 %v1169, 1.442695
    %v1174 = vpow.pop %v1173
    %v1175 = vmul.f32 %v1170, 1.442695
    %v1176 = vpow.pop %v1175
    %v1177 = vmul.f32 %v1171, 1.442695
    %v1178 = vpow.pop %v1177
    %v1179 = vmul.f32 %v1172, 1.442695
    %v1180 = vpow.pop %v1179
    %vm1181 = vcmp.gt.f32.partialorder %v895, 20.0
    %vm1182 = vcmp.gt.f32.partialorder %v900, 20.0
    %vm1183 = vcmp.gt.f32.partialorder %v905, 20.0
    %vm1184 = vcmp.gt.f32.partialorder %v910, 20.0
    %v1185 = vmin.f32 %v895, 20.0
    %v1186 = vmin.f32 %v900, 20.0
    %v1187 = vmin.f32 %v905, 20.0
    %v1188 = vmin.f32 %v910, 20.0
    %v1189 = vmul.f32 %v1185, 1.442695
    %v1190 = vpow.pop %v1189
    %v1191 = vmul.f32 %v1186, 1.442695
    %v1192 = vpow.pop %v1191
    %v1193 = vmul.f32 %v1187, 1.442695
    %v1194 = vpow.pop %v1193
    %v1195 = vmul.f32 %v1188, 1.442695
    %v1196 = vpow.pop %v1195
    %v1197 = vadd.f32 %v1190, 1.0
    %v1198 = vadd.f32 %v1192, 1.0
    %v1199 = vadd.f32 %v1194, 1.0
    %v1200 = vadd.f32 %v1196, 1.0
    %v1201 = vlog2.pop %v1197
    %v1202 = vmul.f32 %v1201, 0.6931472
    %v1203 = vlog2.pop %v1198
    %v1204 = vmul.f32 %v1203, 0.6931472
    %v1205 = vlog2.pop %v1199
    %v1206 = vmul.f32 %v1205, 0.6931472
    %v1207 = vlog2.pop %v1200
    %v1208 = vmul.f32 %v1207, 0.6931472
    %v1209 = vsel %vm1181, %v895, %v1202
    %v1210 = vsel %vm1182, %v900, %v1204
    %v1211 = vsel %vm1183, %v905, %v1206
    %v1212 = vsel %vm1184, %v910, %v1208
    %v1213 = vadd.f32 %v1209, 1e-06
    %v1214 = vadd.f32 %v1210, 1e-06
    %v1215 = vadd.f32 %v1211, 1e-06
    %v1216 = vadd.f32 %v1212, 1e-06
    %v1217 = vrcp.pop %v1213
    %v1218 = vmul.f32 1.0, %v1217
    %v1219 = vrcp.pop %v1214
    %v1220 = vmul.f32 1.0, %v1219
    %v1221 = vrcp.pop %v1215
    %v1222 = vmul.f32 1.0, %v1221
    %v1223 = vrcp.pop %v1216
    %v1224 = vmul.f32 1.0, %v1223
    %v1225 = vsub.f32 %v977, %v601
    %v1226 = vsub.f32 %v978, %v606
    %v1227 = vsub.f32 %v979, %v611
    %v1228 = vsub.f32 %v980, %v616
    %v1229 = vmul.f32 %v1225, %v1218
    %v1230 = vmul.f32 %v1226, %v1220
    %v1231 = vmul.f32 %v1227, %v1222
    %v1232 = vmul.f32 %v1228, %v1224
    %v1233 = vmul.f32 %v1229, 0.5
    %v1234 = vmul.f32 %v1230, 0.5
    %v1235 = vmul.f32 %v1231, 0.5
    %v1236 = vmul.f32 %v1232, 0.5
    %v1237 = vtanh.pop %v1233
    %v1238 = vtanh.pop %v1234
    %v1239 = vtanh.pop %v1235
    %v1240 = vtanh.pop %v1236
    %v1241 = vmul.f32 %v1237, 0.5
    %v1242 = vmul.f32 %v1238, 0.5
    %v1243 = vmul.f32 %v1239, 0.5
    %v1244 = vmul.f32 %v1240, 0.5
    %v1245 = vadd.f32 %v1241, 0.5
    %v1246 = vadd.f32 %v1242, 0.5
    %v1247 = vadd.f32 %v1243, 0.5
    %v1248 = vadd.f32 %v1244, 0.5
    %v1249 = vsub.f32 %v1005, %v601
    %v1250 = vsub.f32 %v1006, %v606
    %v1251 = vsub.f32 %v1007, %v611
    %v1252 = vsub.f32 %v1008, %v616
    %v1253 = vmul.f32 %v1249, %v1218
    %v1254 = vmul.f32 %v1250, %v1220
    %v1255 = vmul.f32 %v1251, %v1222
    %v1256 = vmul.f32 %v1252, %v1224
    %v1257 = vmul.f32 %v1253, 0.5
    %v1258 = vmul.f32 %v1254, 0.5
    %v1259 = vmul.f32 %v1255, 0.5
    %v1260 = vmul.f32 %v1256, 0.5
    %v1261 = vtanh.pop %v1257
    %v1262 = vtanh.pop %v1258
    %v1263 = vtanh.pop %v1259
    %v1264 = vtanh.pop %v1260
    %v1265 = vmul.f32 %v1261, 0.5
    %v1266 = vmul.f32 %v1262, 0.5
    %v1267 = vmul.f32 %v1263, 0.5
    %v1268 = vmul.f32 %v1264, 0.5
    %v1269 = vadd.f32 %v1265, 0.5
    %v1270 = vadd.f32 %v1266, 0.5
    %v1271 = vadd.f32 %v1267, 0.5
    %v1272 = vadd.f32 %v1268, 0.5
    %v1273 = vsub.f32 %v1245, %v1269
    %v1274 = vsub.f32 %v1246, %v1270
    %v1275 = vsub.f32 %v1247, %v1271
    %v1276 = vsub.f32 %v1248, %v1272
    %v1277 = vmul.f32 %v1174, %v1273
    %v1278 = vmul.f32 %v1176, %v1274
    %v1279 = vmul.f32 %v1178, %v1275
    %v1280 = vmul.f32 %v1180, %v1276
    %v1281 = vadd.f32 %v1161, %v1277
    %v1282 = vadd.f32 %v1162, %v1278
    %v1283 = vadd.f32 %v1163, %v1279
    %v1284 = vadd.f32 %v1164, %v1280
    %v1285 = vadd.f32 %v1165, %v1174
    %v1286 = vadd.f32 %v1166, %v1176
    %v1287 = vadd.f32 %v1167, %v1178
    %v1288 = vadd.f32 %v1168, %v1180
    %v1289 = vrcp.pop %v1285
    %v1290 = vmul.f32 %v1281, %v1289
    %v1291 = vrcp.pop %v1286
    %v1292 = vmul.f32 %v1282, %v1291
    %v1293 = vrcp.pop %v1287
    %v1294 = vmul.f32 %v1283, %v1293
    %v1295 = vrcp.pop %v1288
    %v1296 = vmul.f32 %v1284, %v1295
    %v1297 = vmax.f32 %v1290, 1e-09
    %v1298 = vmax.f32 %v1292, 1e-09
    %v1299 = vmax.f32 %v1294, 1e-09
    %v1300 = vmax.f32 %v1296, 1e-09
    %v1301 = vmin.f32 %v1297, 1.0
    %v1302 = vmin.f32 %v1298, 1.0
    %v1303 = vmin.f32 %v1299, 1.0
    %v1304 = vmin.f32 %v1300, 1.0
    %v1305 = vlog2.pop %v1301
    %v1306 = vmul.f32 %v1305, 0.6931472
    %v1307 = vlog2.pop %v1302
    %v1308 = vmul.f32 %v1307, 0.6931472
    %v1309 = vlog2.pop %v1303
    %v1310 = vmul.f32 %v1309, 0.6931472
    %v1311 = vlog2.pop %v1304
    %v1312 = vmul.f32 %v1311, 0.6931472
    %v1313 = vsub.f32 0.0, %v1306
    %v1314 = vsub.f32 0.0, %v1308
    %v1315 = vsub.f32 0.0, %v1310
    %v1316 = vsub.f32 0.0, %v1312
    %v1317 = vmul.f32 %v1313, 1.442695
    %v1318 = vmul.f32 %v1314, 1.442695
    %v1319 = vmul.f32 %v1315, 1.442695
    %v1320 = vmul.f32 %v1316, 1.442695
    %v1321 = vsel %vm27, %v1317, 0.0
    %v1322 = vsel %vm27, %v1318, 0.0
    %v1323 = vadd.f32 %v1321, %v1322
    %v1324 = vsel %vm27, %v1319, 0.0
    %v1325 = vadd.f32 %v1323, %v1324
    %v1326 = vsel %vm27, %v1320, 0.0
    %v1327 = vadd.f32 %v1325, %v1326
    %1328 = vadd.xlane.f32.xlu0 %v1327
    %v1329 = vpop.xlane.xlu0 %1328
    %v1330 = vrot.slane %v1329, 4
    %v1331 = vadd.f32 %v1329, %v1330
    %v1332 = vrot.slane %v1331, 2
    %v1333 = vadd.f32 %v1331, %v1332
    %v1334 = vrot.slane %v1333, 1
    %v1335 = vadd.f32 %v1333, %v1334
    %s1336 = vtos %v1335
    %s1337 = scalar_lea.smem [#allocation2], 0
    %1338 = sst [smem:[%s1337]] %s1336
    // Predicated region
    $region14: #{comp_model_forward.9} parent=1 // pred_check
      _
    $region15: #{comp_model_forward.9} parent=1 // pred_check_branch
      %1340 = sbr.rel (0) target = $region17
    $region16: #{comp_model_forward.9} parent=1 // pred_region
      %s1342 = ssub.s32 16, 16
      %1343 = vsyncadd [#allocation3], %s1342
      %1346 = dma.smem_to_hbm [#allocation2], 16, %s3, [#allocation3]
    $region17: #{comp_model_forward.9} parent=1 // pred_fallthru
      _
    // Predicated region
    $region18: #{comp_model_forward.9} parent=1 // pred_check
      _
    $region19: #{comp_model_forward.9} parent=1 // pred_check_branch
      %1348 = sbr.rel (0) target = $region21
    $region20: #{comp_model_forward.9} parent=1 // pred_region
      %1349 = dma.done [#allocation3], 16
    $region21: #{comp_model_forward.9} parent=1 // pred_fallthru
      _
    %1350 = sfence
    %1351 = vsyncpa [#allocation3], 1

</llo_original>
